<compile_context>
chip_gen: v6e
topology: v6e:2x2x1
jax: 0.10.0
libtpu: 0.0.40
codegen_flags: <defaults>
</compile_context>

<pallas_src>
import jax
import jax.numpy as jnp
from jax.experimental import pallas as pl
from jax.experimental.pallas import tpu as pltpu


def _round_up(x, m):
    return ((x + m - 1) // m) * m


def _sigmoid(v):
    # exact formula (reference only)
    return 1.0 / (1.0 + jnp.exp(-v))


def _sigmoid_via_tanh(v):
    # sigmoid(v) == 0.5 * (tanh(0.5 * v) + 1): one EUP transcendental, no divide.
    return 0.5 * (jnp.tanh(0.5 * v) + 1.0)


def glove_blstm_kernel(x_ref, len_ref,
                       wgx_ref, bgx_ref,
                       whh_f_ref, whh_b_ref,
                       w1f_ref, w1b_ref, b1_ref,
                       w2_ref, b2_ref,
                       out_ref):
    """Fused BLSTM + MLP head.

    x_ref   : [T*B, Ipad]  time-major flattened input (row = t*B + b)
    len_ref : [B, 1] int32 per-example lengths
    wgx_ref : [Ipad, 8H]   [W_ih_fwd | W_ih_bwd], g-gate columns pre-scaled by 2
    bgx_ref : [1, 8H]      combined biases (b_ih + b_hh), same scaling
    whh_*   : [H, 4H]      recurrent weights, g-gate columns pre-scaled by 2
    w1f/w1b : [H, L]       Linear(2H -> L) split into fwd/bwd halves
    b1      : [1, L]
    w2_ref  : [L, OUTP]    classifier, zero-padded to a 128-lane output
    b2_ref  : [1, OUTP]
    out_ref : [T*B, OUTP]
    """
    TB = x_ref.shape[0]
    H = whh_f_ref.shape[0]
    B = len_ref.shape[0]
    T = TB // B

    # ---- hoisted input projection: one MXU-friendly matmul, biases folded ----
    gx = jnp.dot(x_ref[...], wgx_ref[...],
                 preferred_element_type=jnp.float32) + bgx_ref[...]   # [T*B, 8H]

    whh_f = whh_f_ref[...]
    whh_b = whh_b_ref[...]
    lengths = len_ref[...]                                            # [B, 1] i32

    h_f = jnp.zeros((B, H), jnp.float32)
    c_f = jnp.zeros((B, H), jnp.float32)
    h_b = jnp.zeros((B, H), jnp.float32)
    c_b = jnp.zeros((B, H), jnp.float32)

    def cell(gates_x, h_prev, c_prev, whh):
        gates = gates_x + jnp.dot(h_prev, whh,
                                  preferred_element_type=jnp.float32)  # [B, 4H]
        s = _sigmoid_via_tanh(gates)          # one transcendental over 4H lanes
        i = s[:, 0:H]
        f = s[:, H:2 * H]
        g = 2.0 * s[:, 2 * H:3 * H] - 1.0     # == tanh(raw g) (weights pre-scaled)
        o = s[:, 3 * H:4 * H]
        c_new = f * c_prev + i * g
        h_new = o * jnp.tanh(c_new)
        return h_new, c_new

    out_f = [None] * T
    out_b = [None] * T

    # Fused fwd/bwd recurrence, statically unrolled (T is small & static) so the
    # LLO scheduler can interleave the two independent dependence chains; the
    # per-step hidden states live in vregs, no per-step VMEM stores.
    for t in range(T):
        tr = T - 1 - t

        # forward direction, time t
        h_new, c_new = cell(gx[t * B:(t + 1) * B, 0:4 * H], h_f, c_f, whh_f)
        keep_f = lengths > t                                          # [B, 1]
        h_f = jnp.where(keep_f, h_new, h_f)
        c_f = jnp.where(keep_f, c_new, c_f)
        out_f[t] = jnp.where(keep_f, h_f, 0.0)

        # backward direction, time tr
        h_new, c_new = cell(gx[tr * B:(tr + 1) * B, 4 * H:8 * H], h_b, c_b, whh_b)
        keep_b = lengths > tr
        h_b = jnp.where(keep_b, h_new, h_b)
        c_b = jnp.where(keep_b, c_new, c_b)
        out_b[tr] = jnp.where(keep_b, h_b, 0.0)

    outf_all = jnp.concatenate(out_f, axis=0)                          # [T*B, H]
    outb_all = jnp.concatenate(out_b, axis=0)                          # [T*B, H]

    # ---- batched MLP head (dropout == identity at inference) ----
    z = (jnp.dot(outf_all, w1f_ref[...], preferred_element_type=jnp.float32)
         + jnp.dot(outb_all, w1b_ref[...], preferred_element_type=jnp.float32)
         + b1_ref[...])
    # ELU(alpha=1); clamp exp arg so the unselected branch cannot overflow.
    z = jnp.where(z > 0.0, z, jnp.exp(jnp.minimum(z, 0.0)) - 1.0)
    out_ref[...] = (jnp.dot(z, w2_ref[...], preferred_element_type=jnp.float32)
                    + b2_ref[...])                                     # [T*B, OUTP]


def glove_blstm_forward(text, lengths, cap, params):
    """Batch-first API matching the PyTorch module: returns [B, T, D_out]."""
    emb = params['embedding'][text]                               # [B, T, E]
    x = jnp.concatenate([emb, cap[..., None]], axis=-1)           # [B, T, E+1]
    x = x.astype(jnp.float32)
    B, T, I = x.shape
    H = params['whh_f'].shape[0]
    L = params['w1f'].shape[1]
    D_out = params['w2'].shape[1]

    Ipad = _round_up(I, 64)        # align contraction dim
    OUTP = _round_up(D_out, 128)   # lane-dense output store

    # time-major flattened input (row = t*B + b), zero-padded feature dim
    x_tm = jnp.transpose(x, (1, 0, 2)).reshape(T * B, I)
    x_tm = jnp.pad(x_tm, ((0, 0), (0, Ipad - I)))

    lengths_v = lengths.astype(jnp.int32).reshape(B, 1)

    def scale_g(w):   # scale the g-gate columns (2H:3H of the 4H axis) by 2
        return jnp.concatenate(
            [w[..., :2 * H], 2.0 * w[..., 2 * H:3 * H], w[..., 3 * H:]], axis=-1)

    wih = jnp.concatenate([scale_g(params['wih_f']),
                           scale_g(params['wih_b'])], axis=1)     # [I, 8H]
    wgx = jnp.pad(wih, ((0, Ipad - I), (0, 0)))                   # [Ipad, 8H]
    bgx = jnp.concatenate([scale_g(params['b_f']),
                           scale_g(params['b_b'])], axis=1)       # [1, 8H]
    whh_f = scale_g(params['whh_f'])
    whh_b = scale_g(params['whh_b'])

    w2p = jnp.pad(params['w2'], ((0, 0), (0, OUTP - D_out)))      # [L, OUTP]
    b2p = jnp.pad(params['b2'], ((0, 0), (0, OUTP - D_out)))      # [1, OUTP]

    out_flat = pl.pallas_call(
        glove_blstm_kernel,
        out_shape=jax.ShapeDtypeStruct((T * B, OUTP), jnp.float32),
        in_specs=[pl.BlockSpec(memory_space=pltpu.MemorySpace.VMEM)] * 11,
        out_specs=pl.BlockSpec(memory_space=pltpu.MemorySpace.VMEM),
    )(x_tm, lengths_v, wgx, bgx, whh_f, whh_b,
      params['w1f'], params['w1b'], params['b1'], w2p, b2p)

    out = out_flat.reshape(T, B, OUTP)[:, :, :D_out]              # [T, B, D_out]
    return jnp.transpose(out, (1, 0, 2))                          # [B, T, D_out]


def init_params(key, vocab, E, H, L, D_out):
    """Deterministic synthetic weights (shapes match the PyTorch module)."""
    I = E + 1
    ks = jax.random.split(key, 16)
    u = lambda k, shape, s: jax.random.uniform(k, shape, jnp.float32, -s, s)
    sH = 1.0 / float(H) ** 0.5
    return {
        'embedding': u(ks[0], (vocab, E), 1.0),
        # LSTM weights stored transposed (x @ W): torch W_ih is [4H, I].
        'wih_f': u(ks[1], (I, 4 * H), sH),
        'whh_f': u(ks[2], (H, 4 * H), sH),
        'b_f':   u(ks[3], (1, 4 * H), sH),     # b_ih + b_hh combined
        'wih_b': u(ks[4], (I, 4 * H), sH),
        'whh_b': u(ks[5], (H, 4 * H), sH),
        'b_b':   u(ks[6], (1, 4 * H), sH),
        # Linear(2H -> L), split by forward/backward halves of the input dim.
        'w1f': u(ks[7], (H, L), 0.2),
        'w1b': u(ks[8], (H, L), 0.2),
        'b1':  u(ks[9], (1, L), 0.1),
        # classifier Linear(L -> D_out)
        'w2': u(ks[10], (L, D_out), 0.2),
        'b2': u(ks[11], (1, D_out), 0.1),
    }


def ref_forward(text, lengths, cap, params):
    """Pure-JAX reference mirroring the PyTorch forward (for verification)."""
    emb = params['embedding'][text]
    x = jnp.concatenate([emb, cap[..., None]], axis=-1)
    B, T, _ = x.shape
    H = params['whh_f'].shape[0]

    def run_dir(wih, whh, b, reverse):
        h = jnp.zeros((B, H), jnp.float32)
        c = jnp.zeros((B, H), jnp.float32)
        outs = [None] * T
        ts = range(T - 1, -1, -1) if reverse else range(T)
        for t in ts:
            gates = x[:, t, :] @ wih + h @ whh + b[0]
            i = _sigmoid(gates[:, :H]); f = _sigmoid(gates[:, H:2 * H])
            g = jnp.tanh(gates[:, 2 * H:3 * H]); o = _sigmoid(gates[:, 3 * H:])
            c_new = f * c + i * g
            h_new = o * jnp.tanh(c_new)
            m = (t < lengths).astype(jnp.float32)[:, None]
            h = jnp.where(m > 0, h_new, h)
            c = jnp.where(m > 0, c_new, c)
            outs[t] = h * m
        return jnp.stack(outs, axis=1)

    of = run_dir(params['wih_f'], params['whh_f'], params['b_f'], False)
    ob = run_dir(params['wih_b'], params['whh_b'], params['b_b'], True)
    z = of @ params['w1f'] + ob @ params['w1b'] + params['b1'][0]
    z = jnp.where(z > 0, z, jnp.exp(jnp.minimum(z, 0.0)) - 1.0)
    return z @ params['w2'] + params['b2'][0]


if __name__ == "__main__":
    B, T = 2, 8
    VOCAB, E, H, L, D_OUT = 50, 32, 32, 32, 10

    key = jax.random.PRNGKey(0)
    k_param, k_text, k_cap = jax.random.split(key, 3)

    params = init_params(k_param, VOCAB, E, H, L, D_OUT)
    text = jax.random.randint(k_text, (B, T), 0, VOCAB, dtype=jnp.int32)
    cap = (jax.random.uniform(k_cap, (B, T)) > 0.5).astype(jnp.float32)
    lengths = jnp.array([8, 5], dtype=jnp.int32)

    out = glove_blstm_forward(text, lengths, cap, params)
    out = jax.block_until_ready(out)

    ref = ref_forward(text, lengths, cap, params)
    assert out.shape == (B, T, D_OUT)
    assert bool(jnp.all(jnp.isfinite(out)))
    assert bool(jnp.allclose(out, ref, rtol=1e-3, atol=1e-3)), \
        f"max err {float(jnp.max(jnp.abs(out - ref)))}"

    print("KERNEL_OK")
</pallas_src>

<mosaic_0001>
module attributes {stable_mosaic.version = 11 : i64} {
  func.func @glove_blstm_kernel(%arg0: memref<16x64xf32, #tpu.memory_space<vmem>>, %arg1: memref<2x1xi32, #tpu.memory_space<vmem>>, %arg2: memref<64x256xf32, #tpu.memory_space<vmem>>, %arg3: memref<1x256xf32, #tpu.memory_space<vmem>>, %arg4: memref<32x128xf32, #tpu.memory_space<vmem>>, %arg5: memref<32x128xf32, #tpu.memory_space<vmem>>, %arg6: memref<32x32xf32, #tpu.memory_space<vmem>>, %arg7: memref<32x32xf32, #tpu.memory_space<vmem>>, %arg8: memref<1x32xf32, #tpu.memory_space<vmem>>, %arg9: memref<32x128xf32, #tpu.memory_space<vmem>>, %arg10: memref<1x128xf32, #tpu.memory_space<vmem>>, %arg11: memref<16x128xf32, #tpu.memory_space<vmem>>) attributes {dimension_semantics = [], scalar_prefetch = 0 : i64, scratch_operands = 0 : i64, tpu.core_type = #tpu.core_type<tc>} {
    %c0 = arith.constant 0 : index
    %c0_0 = arith.constant 0 : index
    %0 = vector.load %arg0[%c0, %c0_0] : memref<16x64xf32, #tpu.memory_space<vmem>>, vector<16x64xf32>
    %c0_1 = arith.constant 0 : index
    %c0_2 = arith.constant 0 : index
    %1 = vector.load %arg2[%c0_1, %c0_2] : memref<64x256xf32, #tpu.memory_space<vmem>>, vector<64x256xf32>
    %cst = arith.constant dense<0.000000e+00> : vector<16x256xf32>
    %2 = tpu.matmul %0, %1, %cst {dimension_numbers = #tpu.dot_dimension_numbers<[1], [0], [0], [1], [0, 0, 1, 1], [], []>} : vector<16x64xf32>, vector<64x256xf32>, vector<16x256xf32> -> vector<16x256xf32>
    %c0_3 = arith.constant 0 : index
    %c0_4 = arith.constant 0 : index
    %3 = vector.load %arg3[%c0_3, %c0_4] : memref<1x256xf32, #tpu.memory_space<vmem>>, vector<1x256xf32>
    %4 = vector.broadcast %3 : vector<1x256xf32> to vector<16x256xf32>
    %5 = arith.addf %2, %4 : vector<16x256xf32>
    %c0_5 = arith.constant 0 : index
    %c0_6 = arith.constant 0 : index
    %6 = vector.load %arg4[%c0_5, %c0_6] : memref<32x128xf32, #tpu.memory_space<vmem>>, vector<32x128xf32>
    %c0_7 = arith.constant 0 : index
    %c0_8 = arith.constant 0 : index
    %7 = vector.load %arg5[%c0_7, %c0_8] : memref<32x128xf32, #tpu.memory_space<vmem>>, vector<32x128xf32>
    %c0_9 = arith.constant 0 : index
    %c0_10 = arith.constant 0 : index
    %8 = vector.load %arg1[%c0_9, %c0_10] : memref<2x1xi32, #tpu.memory_space<vmem>>, vector<2x1xi32>
    %cst_11 = arith.constant 0.000000e+00 : f32
    %9 = vector.broadcast %cst_11 : f32 to vector<2x32xf32>
    %cst_12 = arith.constant 0.000000e+00 : f32
    %10 = vector.broadcast %cst_12 : f32 to vector<2x32xf32>
    %cst_13 = arith.constant 0.000000e+00 : f32
    %11 = vector.broadcast %cst_13 : f32 to vector<2x32xf32>
    %cst_14 = arith.constant 0.000000e+00 : f32
    %12 = vector.broadcast %cst_14 : f32 to vector<2x32xf32>
    %13 = vector.extract_strided_slice %5 {offsets = [0, 0], sizes = [2, 128], strides = [1, 1]} : vector<16x256xf32> to vector<2x128xf32>
    %cst_15 = arith.constant dense<0.000000e+00> : vector<2x128xf32>
    %14 = tpu.matmul %9, %6, %cst_15 {dimension_numbers = #tpu.dot_dimension_numbers<[1], [0], [0], [1], [0, 0, 1, 1], [], []>} : vector<2x32xf32>, vector<32x128xf32>, vector<2x128xf32> -> vector<2x128xf32>
    %15 = arith.addf %13, %14 : vector<2x128xf32>
    %cst_16 = arith.constant 5.000000e-01 : f32
    %16 = vector.broadcast %cst_16 : f32 to vector<2x128xf32>
    %17 = arith.mulf %16, %15 : vector<2x128xf32>
    %18 = math.tanh %17 : vector<2x128xf32>
    %cst_17 = arith.constant 1.000000e+00 : f32
    %19 = vector.broadcast %cst_17 : f32 to vector<2x128xf32>
    %20 = arith.addf %18, %19 : vector<2x128xf32>
    %cst_18 = arith.constant 5.000000e-01 : f32
    %21 = vector.broadcast %cst_18 : f32 to vector<2x128xf32>
    %22 = arith.mulf %21, %20 : vector<2x128xf32>
    %23 = vector.extract_strided_slice %22 {offsets = [0, 0], sizes = [2, 32], strides = [1, 1]} : vector<2x128xf32> to vector<2x32xf32>
    %24 = vector.extract_strided_slice %22 {offsets = [0, 32], sizes = [2, 32], strides = [1, 1]} : vector<2x128xf32> to vector<2x32xf32>
    %25 = vector.extract_strided_slice %22 {offsets = [0, 64], sizes = [2, 32], strides = [1, 1]} : vector<2x128xf32> to vector<2x32xf32>
    %cst_19 = arith.constant 2.000000e+00 : f32
    %26 = vector.broadcast %cst_19 : f32 to vector<2x32xf32>
    %27 = arith.mulf %26, %25 : vector<2x32xf32>
    %cst_20 = arith.constant 1.000000e+00 : f32
    %28 = vector.broadcast %cst_20 : f32 to vector<2x32xf32>
    %29 = arith.subf %27, %28 : vector<2x32xf32>
    %30 = vector.extract_strided_slice %22 {offsets = [0, 96], sizes = [2, 32], strides = [1, 1]} : vector<2x128xf32> to vector<2x32xf32>
    %31 = arith.mulf %24, %10 : vector<2x32xf32>
    %32 = arith.mulf %23, %29 : vector<2x32xf32>
    %33 = arith.addf %31, %32 : vector<2x32xf32>
    %34 = math.tanh %33 : vector<2x32xf32>
    %35 = arith.mulf %30, %34 : vector<2x32xf32>
    %c0_i32 = arith.constant 0 : i32
    %36 = vector.broadcast %c0_i32 : i32 to vector<2x1xi32>
    %37 = arith.cmpi sgt, %8, %36 : vector<2x1xi32>
    %38 = vector.shape_cast %37 : vector<2x1xi1> to vector<2x1xi1>
    %39 = vector.broadcast %38 : vector<2x1xi1> to vector<2x32xi1>
    %40 = arith.select %39, %35, %9 : vector<2x32xi1>, vector<2x32xf32>
    %41 = vector.shape_cast %37 : vector<2x1xi1> to vector<2x1xi1>
    %42 = vector.broadcast %41 : vector<2x1xi1> to vector<2x32xi1>
    %43 = arith.select %42, %33, %10 : vector<2x32xi1>, vector<2x32xf32>
    %cst_21 = arith.constant 0.000000e+00 : f32
    %44 = vector.shape_cast %37 : vector<2x1xi1> to vector<2x1xi1>
    %45 = vector.broadcast %44 : vector<2x1xi1> to vector<2x32xi1>
    %46 = vector.broadcast %cst_21 : f32 to vector<2x32xf32>
    %47 = arith.select %45, %40, %46 : vector<2x32xi1>, vector<2x32xf32>
    %48 = vector.extract_strided_slice %5 {offsets = [14, 128], sizes = [2, 128], strides = [1, 1]} : vector<16x256xf32> to vector<2x128xf32>
    %cst_22 = arith.constant dense<0.000000e+00> : vector<2x128xf32>
    %49 = tpu.matmul %11, %7, %cst_22 {dimension_numbers = #tpu.dot_dimension_numbers<[1], [0], [0], [1], [0, 0, 1, 1], [], []>} : vector<2x32xf32>, vector<32x128xf32>, vector<2x128xf32> -> vector<2x128xf32>
    %50 = arith.addf %48, %49 : vector<2x128xf32>
    %cst_23 = arith.constant 5.000000e-01 : f32
    %51 = vector.broadcast %cst_23 : f32 to vector<2x128xf32>
    %52 = arith.mulf %51, %50 : vector<2x128xf32>
    %53 = math.tanh %52 : vector<2x128xf32>
    %cst_24 = arith.constant 1.000000e+00 : f32
    %54 = vector.broadcast %cst_24 : f32 to vector<2x128xf32>
    %55 = arith.addf %53, %54 : vector<2x128xf32>
    %cst_25 = arith.constant 5.000000e-01 : f32
    %56 = vector.broadcast %cst_25 : f32 to vector<2x128xf32>
    %57 = arith.mulf %56, %55 : vector<2x128xf32>
    %58 = vector.extract_strided_slice %57 {offsets = [0, 0], sizes = [2, 32], strides = [1, 1]} : vector<2x128xf32> to vector<2x32xf32>
    %59 = vector.extract_strided_slice %57 {offsets = [0, 32], sizes = [2, 32], strides = [1, 1]} : vector<2x128xf32> to vector<2x32xf32>
    %60 = vector.extract_strided_slice %57 {offsets = [0, 64], sizes = [2, 32], strides = [1, 1]} : vector<2x128xf32> to vector<2x32xf32>
    %cst_26 = arith.constant 2.000000e+00 : f32
    %61 = vector.broadcast %cst_26 : f32 to vector<2x32xf32>
    %62 = arith.mulf %61, %60 : vector<2x32xf32>
    %cst_27 = arith.constant 1.000000e+00 : f32
    %63 = vector.broadcast %cst_27 : f32 to vector<2x32xf32>
    %64 = arith.subf %62, %63 : vector<2x32xf32>
    %65 = vector.extract_strided_slice %57 {offsets = [0, 96], sizes = [2, 32], strides = [1, 1]} : vector<2x128xf32> to vector<2x32xf32>
    %66 = arith.mulf %59, %12 : vector<2x32xf32>
    %67 = arith.mulf %58, %64 : vector<2x32xf32>
    %68 = arith.addf %66, %67 : vector<2x32xf32>
    %69 = math.tanh %68 : vector<2x32xf32>
    %70 = arith.mulf %65, %69 : vector<2x32xf32>
    %c7_i32 = arith.constant 7 : i32
    %71 = vector.broadcast %c7_i32 : i32 to vector<2x1xi32>
    %72 = arith.cmpi sgt, %8, %71 : vector<2x1xi32>
    %73 = vector.shape_cast %72 : vector<2x1xi1> to vector<2x1xi1>
    %74 = vector.broadcast %73 : vector<2x1xi1> to vector<2x32xi1>
    %75 = arith.select %74, %70, %11 : vector<2x32xi1>, vector<2x32xf32>
    %76 = vector.shape_cast %72 : vector<2x1xi1> to vector<2x1xi1>
    %77 = vector.broadcast %76 : vector<2x1xi1> to vector<2x32xi1>
    %78 = arith.select %77, %68, %12 : vector<2x32xi1>, vector<2x32xf32>
    %cst_28 = arith.constant 0.000000e+00 : f32
    %79 = vector.shape_cast %72 : vector<2x1xi1> to vector<2x1xi1>
    %80 = vector.broadcast %79 : vector<2x1xi1> to vector<2x32xi1>
    %81 = vector.broadcast %cst_28 : f32 to vector<2x32xf32>
    %82 = arith.select %80, %75, %81 : vector<2x32xi1>, vector<2x32xf32>
    %83 = vector.extract_strided_slice %5 {offsets = [2, 0], sizes = [2, 128], strides = [1, 1]} : vector<16x256xf32> to vector<2x128xf32>
    %cst_29 = arith.constant dense<0.000000e+00> : vector<2x128xf32>
    %84 = tpu.matmul %40, %6, %cst_29 {dimension_numbers = #tpu.dot_dimension_numbers<[1], [0], [0], [1], [0, 0, 1, 1], [], []>} : vector<2x32xf32>, vector<32x128xf32>, vector<2x128xf32> -> vector<2x128xf32>
    %85 = arith.addf %83, %84 : vector<2x128xf32>
    %cst_30 = arith.constant 5.000000e-01 : f32
    %86 = vector.broadcast %cst_30 : f32 to vector<2x128xf32>
    %87 = arith.mulf %86, %85 : vector<2x128xf32>
    %88 = math.tanh %87 : vector<2x128xf32>
    %cst_31 = arith.constant 1.000000e+00 : f32
    %89 = vector.broadcast %cst_31 : f32 to vector<2x128xf32>
    %90 = arith.addf %88, %89 : vector<2x128xf32>
    %cst_32 = arith.constant 5.000000e-01 : f32
    %91 = vector.broadcast %cst_32 : f32 to vector<2x128xf32>
    %92 = arith.mulf %91, %90 : vector<2x128xf32>
    %93 = vector.extract_strided_slice %92 {offsets = [0, 0], sizes = [2, 32], strides = [1, 1]} : vector<2x128xf32> to vector<2x32xf32>
    %94 = vector.extract_strided_slice %92 {offsets = [0, 32], sizes = [2, 32], strides = [1, 1]} : vector<2x128xf32> to vector<2x32xf32>
    %95 = vector.extract_strided_slice %92 {offsets = [0, 64], sizes = [2, 32], strides = [1, 1]} : vector<2x128xf32> to vector<2x32xf32>
    %cst_33 = arith.constant 2.000000e+00 : f32
    %96 = vector.broadcast %cst_33 : f32 to vector<2x32xf32>
    %97 = arith.mulf %96, %95 : vector<2x32xf32>
    %cst_34 = arith.constant 1.000000e+00 : f32
    %98 = vector.broadcast %cst_34 : f32 to vector<2x32xf32>
    %99 = arith.subf %97, %98 : vector<2x32xf32>
    %100 = vector.extract_strided_slice %92 {offsets = [0, 96], sizes = [2, 32], strides = [1, 1]} : vector<2x128xf32> to vector<2x32xf32>
    %101 = arith.mulf %94, %43 : vector<2x32xf32>
    %102 = arith.mulf %93, %99 : vector<2x32xf32>
    %103 = arith.addf %101, %102 : vector<2x32xf32>
    %104 = math.tanh %103 : vector<2x32xf32>
    %105 = arith.mulf %100, %104 : vector<2x32xf32>
    %c1_i32 = arith.constant 1 : i32
    %106 = vector.broadcast %c1_i32 : i32 to vector<2x1xi32>
    %107 = arith.cmpi sgt, %8, %106 : vector<2x1xi32>
    %108 = vector.shape_cast %107 : vector<2x1xi1> to vector<2x1xi1>
    %109 = vector.broadcast %108 : vector<2x1xi1> to vector<2x32xi1>
    %110 = arith.select %109, %105, %40 : vector<2x32xi1>, vector<2x32xf32>
    %111 = vector.shape_cast %107 : vector<2x1xi1> to vector<2x1xi1>
    %112 = vector.broadcast %111 : vector<2x1xi1> to vector<2x32xi1>
    %113 = arith.select %112, %103, %43 : vector<2x32xi1>, vector<2x32xf32>
    %cst_35 = arith.constant 0.000000e+00 : f32
    %114 = vector.shape_cast %107 : vector<2x1xi1> to vector<2x1xi1>
    %115 = vector.broadcast %114 : vector<2x1xi1> to vector<2x32xi1>
    %116 = vector.broadcast %cst_35 : f32 to vector<2x32xf32>
    %117 = arith.select %115, %110, %116 : vector<2x32xi1>, vector<2x32xf32>
    %118 = vector.extract_strided_slice %5 {offsets = [12, 128], sizes = [2, 128], strides = [1, 1]} : vector<16x256xf32> to vector<2x128xf32>
    %cst_36 = arith.constant dense<0.000000e+00> : vector<2x128xf32>
    %119 = tpu.matmul %75, %7, %cst_36 {dimension_numbers = #tpu.dot_dimension_numbers<[1], [0], [0], [1], [0, 0, 1, 1], [], []>} : vector<2x32xf32>, vector<32x128xf32>, vector<2x128xf32> -> vector<2x128xf32>
    %120 = arith.addf %118, %119 : vector<2x128xf32>
    %cst_37 = arith.constant 5.000000e-01 : f32
    %121 = vector.broadcast %cst_37 : f32 to vector<2x128xf32>
    %122 = arith.mulf %121, %120 : vector<2x128xf32>
    %123 = math.tanh %122 : vector<2x128xf32>
    %cst_38 = arith.constant 1.000000e+00 : f32
    %124 = vector.broadcast %cst_38 : f32 to vector<2x128xf32>
    %125 = arith.addf %123, %124 : vector<2x128xf32>
    %cst_39 = arith.constant 5.000000e-01 : f32
    %126 = vector.broadcast %cst_39 : f32 to vector<2x128xf32>
    %127 = arith.mulf %126, %125 : vector<2x128xf32>
    %128 = vector.extract_strided_slice %127 {offsets = [0, 0], sizes = [2, 32], strides = [1, 1]} : vector<2x128xf32> to vector<2x32xf32>
    %129 = vector.extract_strided_slice %127 {offsets = [0, 32], sizes = [2, 32], strides = [1, 1]} : vector<2x128xf32> to vector<2x32xf32>
    %130 = vector.extract_strided_slice %127 {offsets = [0, 64], sizes = [2, 32], strides = [1, 1]} : vector<2x128xf32> to vector<2x32xf32>
    %cst_40 = arith.constant 2.000000e+00 : f32
    %131 = vector.broadcast %cst_40 : f32 to vector<2x32xf32>
    %132 = arith.mulf %131, %130 : vector<2x32xf32>
    %cst_41 = arith.constant 1.000000e+00 : f32
    %133 = vector.broadcast %cst_41 : f32 to vector<2x32xf32>
    %134 = arith.subf %132, %133 : vector<2x32xf32>
    %135 = vector.extract_strided_slice %127 {offsets = [0, 96], sizes = [2, 32], strides = [1, 1]} : vector<2x128xf32> to vector<2x32xf32>
    %136 = arith.mulf %129, %78 : vector<2x32xf32>
    %137 = arith.mulf %128, %134 : vector<2x32xf32>
    %138 = arith.addf %136, %137 : vector<2x32xf32>
    %139 = math.tanh %138 : vector<2x32xf32>
    %140 = arith.mulf %135, %139 : vector<2x32xf32>
    %c6_i32 = arith.constant 6 : i32
    %141 = vector.broadcast %c6_i32 : i32 to vector<2x1xi32>
    %142 = arith.cmpi sgt, %8, %141 : vector<2x1xi32>
    %143 = vector.shape_cast %142 : vector<2x1xi1> to vector<2x1xi1>
    %144 = vector.broadcast %143 : vector<2x1xi1> to vector<2x32xi1>
    %145 = arith.select %144, %140, %75 : vector<2x32xi1>, vector<2x32xf32>
    %146 = vector.shape_cast %142 : vector<2x1xi1> to vector<2x1xi1>
    %147 = vector.broadcast %146 : vector<2x1xi1> to vector<2x32xi1>
    %148 = arith.select %147, %138, %78 : vector<2x32xi1>, vector<2x32xf32>
    %cst_42 = arith.constant 0.000000e+00 : f32
    %149 = vector.shape_cast %142 : vector<2x1xi1> to vector<2x1xi1>
    %150 = vector.broadcast %149 : vector<2x1xi1> to vector<2x32xi1>
    %151 = vector.broadcast %cst_42 : f32 to vector<2x32xf32>
    %152 = arith.select %150, %145, %151 : vector<2x32xi1>, vector<2x32xf32>
    %153 = vector.extract_strided_slice %5 {offsets = [4, 0], sizes = [2, 128], strides = [1, 1]} : vector<16x256xf32> to vector<2x128xf32>
    %cst_43 = arith.constant dense<0.000000e+00> : vector<2x128xf32>
    %154 = tpu.matmul %110, %6, %cst_43 {dimension_numbers = #tpu.dot_dimension_numbers<[1], [0], [0], [1], [0, 0, 1, 1], [], []>} : vector<2x32xf32>, vector<32x128xf32>, vector<2x128xf32> -> vector<2x128xf32>
    %155 = arith.addf %153, %154 : vector<2x128xf32>
    %cst_44 = arith.constant 5.000000e-01 : f32
    %156 = vector.broadcast %cst_44 : f32 to vector<2x128xf32>
    %157 = arith.mulf %156, %155 : vector<2x128xf32>
    %158 = math.tanh %157 : vector<2x128xf32>
    %cst_45 = arith.constant 1.000000e+00 : f32
    %159 = vector.broadcast %cst_45 : f32 to vector<2x128xf32>
    %160 = arith.addf %158, %159 : vector<2x128xf32>
    %cst_46 = arith.constant 5.000000e-01 : f32
    %161 = vector.broadcast %cst_46 : f32 to vector<2x128xf32>
    %162 = arith.mulf %161, %160 : vector<2x128xf32>
    %163 = vector.extract_strided_slice %162 {offsets = [0, 0], sizes = [2, 32], strides = [1, 1]} : vector<2x128xf32> to vector<2x32xf32>
    %164 = vector.extract_strided_slice %162 {offsets = [0, 32], sizes = [2, 32], strides = [1, 1]} : vector<2x128xf32> to vector<2x32xf32>
    %165 = vector.extract_strided_slice %162 {offsets = [0, 64], sizes = [2, 32], strides = [1, 1]} : vector<2x128xf32> to vector<2x32xf32>
    %cst_47 = arith.constant 2.000000e+00 : f32
    %166 = vector.broadcast %cst_47 : f32 to vector<2x32xf32>
    %167 = arith.mulf %166, %165 : vector<2x32xf32>
    %cst_48 = arith.constant 1.000000e+00 : f32
    %168 = vector.broadcast %cst_48 : f32 to vector<2x32xf32>
    %169 = arith.subf %167, %168 : vector<2x32xf32>
    %170 = vector.extract_strided_slice %162 {offsets = [0, 96], sizes = [2, 32], strides = [1, 1]} : vector<2x128xf32> to vector<2x32xf32>
    %171 = arith.mulf %164, %113 : vector<2x32xf32>
    %172 = arith.mulf %163, %169 : vector<2x32xf32>
    %173 = arith.addf %171, %172 : vector<2x32xf32>
    %174 = math.tanh %173 : vector<2x32xf32>
    %175 = arith.mulf %170, %174 : vector<2x32xf32>
    %c2_i32 = arith.constant 2 : i32
    %176 = vector.broadcast %c2_i32 : i32 to vector<2x1xi32>
    %177 = arith.cmpi sgt, %8, %176 : vector<2x1xi32>
    %178 = vector.shape_cast %177 : vector<2x1xi1> to vector<2x1xi1>
    %179 = vector.broadcast %178 : vector<2x1xi1> to vector<2x32xi1>
    %180 = arith.select %179, %175, %110 : vector<2x32xi1>, vector<2x32xf32>
    %181 = vector.shape_cast %177 : vector<2x1xi1> to vector<2x1xi1>
    %182 = vector.broadcast %181 : vector<2x1xi1> to vector<2x32xi1>
    %183 = arith.select %182, %173, %113 : vector<2x32xi1>, vector<2x32xf32>
    %cst_49 = arith.constant 0.000000e+00 : f32
    %184 = vector.shape_cast %177 : vector<2x1xi1> to vector<2x1xi1>
    %185 = vector.broadcast %184 : vector<2x1xi1> to vector<2x32xi1>
    %186 = vector.broadcast %cst_49 : f32 to vector<2x32xf32>
    %187 = arith.select %185, %180, %186 : vector<2x32xi1>, vector<2x32xf32>
    %188 = vector.extract_strided_slice %5 {offsets = [10, 128], sizes = [2, 128], strides = [1, 1]} : vector<16x256xf32> to vector<2x128xf32>
    %cst_50 = arith.constant dense<0.000000e+00> : vector<2x128xf32>
    %189 = tpu.matmul %145, %7, %cst_50 {dimension_numbers = #tpu.dot_dimension_numbers<[1], [0], [0], [1], [0, 0, 1, 1], [], []>} : vector<2x32xf32>, vector<32x128xf32>, vector<2x128xf32> -> vector<2x128xf32>
    %190 = arith.addf %188, %189 : vector<2x128xf32>
    %cst_51 = arith.constant 5.000000e-01 : f32
    %191 = vector.broadcast %cst_51 : f32 to vector<2x128xf32>
    %192 = arith.mulf %191, %190 : vector<2x128xf32>
    %193 = math.tanh %192 : vector<2x128xf32>
    %cst_52 = arith.constant 1.000000e+00 : f32
    %194 = vector.broadcast %cst_52 : f32 to vector<2x128xf32>
    %195 = arith.addf %193, %194 : vector<2x128xf32>
    %cst_53 = arith.constant 5.000000e-01 : f32
    %196 = vector.broadcast %cst_53 : f32 to vector<2x128xf32>
    %197 = arith.mulf %196, %195 : vector<2x128xf32>
    %198 = vector.extract_strided_slice %197 {offsets = [0, 0], sizes = [2, 32], strides = [1, 1]} : vector<2x128xf32> to vector<2x32xf32>
    %199 = vector.extract_strided_slice %197 {offsets = [0, 32], sizes = [2, 32], strides = [1, 1]} : vector<2x128xf32> to vector<2x32xf32>
    %200 = vector.extract_strided_slice %197 {offsets = [0, 64], sizes = [2, 32], strides = [1, 1]} : vector<2x128xf32> to vector<2x32xf32>
    %cst_54 = arith.constant 2.000000e+00 : f32
    %201 = vector.broadcast %cst_54 : f32 to vector<2x32xf32>
    %202 = arith.mulf %201, %200 : vector<2x32xf32>
    %cst_55 = arith.constant 1.000000e+00 : f32
    %203 = vector.broadcast %cst_55 : f32 to vector<2x32xf32>
    %204 = arith.subf %202, %203 : vector<2x32xf32>
    %205 = vector.extract_strided_slice %197 {offsets = [0, 96], sizes = [2, 32], strides = [1, 1]} : vector<2x128xf32> to vector<2x32xf32>
    %206 = arith.mulf %199, %148 : vector<2x32xf32>
    %207 = arith.mulf %198, %204 : vector<2x32xf32>
    %208 = arith.addf %206, %207 : vector<2x32xf32>
    %209 = math.tanh %208 : vector<2x32xf32>
    %210 = arith.mulf %205, %209 : vector<2x32xf32>
    %c5_i32 = arith.constant 5 : i32
    %211 = vector.broadcast %c5_i32 : i32 to vector<2x1xi32>
    %212 = arith.cmpi sgt, %8, %211 : vector<2x1xi32>
    %213 = vector.shape_cast %212 : vector<2x1xi1> to vector<2x1xi1>
    %214 = vector.broadcast %213 : vector<2x1xi1> to vector<2x32xi1>
    %215 = arith.select %214, %210, %145 : vector<2x32xi1>, vector<2x32xf32>
    %216 = vector.shape_cast %212 : vector<2x1xi1> to vector<2x1xi1>
    %217 = vector.broadcast %216 : vector<2x1xi1> to vector<2x32xi1>
    %218 = arith.select %217, %208, %148 : vector<2x32xi1>, vector<2x32xf32>
    %cst_56 = arith.constant 0.000000e+00 : f32
    %219 = vector.shape_cast %212 : vector<2x1xi1> to vector<2x1xi1>
    %220 = vector.broadcast %219 : vector<2x1xi1> to vector<2x32xi1>
    %221 = vector.broadcast %cst_56 : f32 to vector<2x32xf32>
    %222 = arith.select %220, %215, %221 : vector<2x32xi1>, vector<2x32xf32>
    %223 = vector.extract_strided_slice %5 {offsets = [6, 0], sizes = [2, 128], strides = [1, 1]} : vector<16x256xf32> to vector<2x128xf32>
    %cst_57 = arith.constant dense<0.000000e+00> : vector<2x128xf32>
    %224 = tpu.matmul %180, %6, %cst_57 {dimension_numbers = #tpu.dot_dimension_numbers<[1], [0], [0], [1], [0, 0, 1, 1], [], []>} : vector<2x32xf32>, vector<32x128xf32>, vector<2x128xf32> -> vector<2x128xf32>
    %225 = arith.addf %223, %224 : vector<2x128xf32>
    %cst_58 = arith.constant 5.000000e-01 : f32
    %226 = vector.broadcast %cst_58 : f32 to vector<2x128xf32>
    %227 = arith.mulf %226, %225 : vector<2x128xf32>
    %228 = math.tanh %227 : vector<2x128xf32>
    %cst_59 = arith.constant 1.000000e+00 : f32
    %229 = vector.broadcast %cst_59 : f32 to vector<2x128xf32>
    %230 = arith.addf %228, %229 : vector<2x128xf32>
    %cst_60 = arith.constant 5.000000e-01 : f32
    %231 = vector.broadcast %cst_60 : f32 to vector<2x128xf32>
    %232 = arith.mulf %231, %230 : vector<2x128xf32>
    %233 = vector.extract_strided_slice %232 {offsets = [0, 0], sizes = [2, 32], strides = [1, 1]} : vector<2x128xf32> to vector<2x32xf32>
    %234 = vector.extract_strided_slice %232 {offsets = [0, 32], sizes = [2, 32], strides = [1, 1]} : vector<2x128xf32> to vector<2x32xf32>
    %235 = vector.extract_strided_slice %232 {offsets = [0, 64], sizes = [2, 32], strides = [1, 1]} : vector<2x128xf32> to vector<2x32xf32>
    %cst_61 = arith.constant 2.000000e+00 : f32
    %236 = vector.broadcast %cst_61 : f32 to vector<2x32xf32>
    %237 = arith.mulf %236, %235 : vector<2x32xf32>
    %cst_62 = arith.constant 1.000000e+00 : f32
    %238 = vector.broadcast %cst_62 : f32 to vector<2x32xf32>
    %239 = arith.subf %237, %238 : vector<2x32xf32>
    %240 = vector.extract_strided_slice %232 {offsets = [0, 96], sizes = [2, 32], strides = [1, 1]} : vector<2x128xf32> to vector<2x32xf32>
    %241 = arith.mulf %234, %183 : vector<2x32xf32>
    %242 = arith.mulf %233, %239 : vector<2x32xf32>
    %243 = arith.addf %241, %242 : vector<2x32xf32>
    %244 = math.tanh %243 : vector<2x32xf32>
    %245 = arith.mulf %240, %244 : vector<2x32xf32>
    %c3_i32 = arith.constant 3 : i32
    %246 = vector.broadcast %c3_i32 : i32 to vector<2x1xi32>
    %247 = arith.cmpi sgt, %8, %246 : vector<2x1xi32>
    %248 = vector.shape_cast %247 : vector<2x1xi1> to vector<2x1xi1>
    %249 = vector.broadcast %248 : vector<2x1xi1> to vector<2x32xi1>
    %250 = arith.select %249, %245, %180 : vector<2x32xi1>, vector<2x32xf32>
    %251 = vector.shape_cast %247 : vector<2x1xi1> to vector<2x1xi1>
    %252 = vector.broadcast %251 : vector<2x1xi1> to vector<2x32xi1>
    %253 = arith.select %252, %243, %183 : vector<2x32xi1>, vector<2x32xf32>
    %cst_63 = arith.constant 0.000000e+00 : f32
    %254 = vector.shape_cast %247 : vector<2x1xi1> to vector<2x1xi1>
    %255 = vector.broadcast %254 : vector<2x1xi1> to vector<2x32xi1>
    %256 = vector.broadcast %cst_63 : f32 to vector<2x32xf32>
    %257 = arith.select %255, %250, %256 : vector<2x32xi1>, vector<2x32xf32>
    %258 = vector.extract_strided_slice %5 {offsets = [8, 128], sizes = [2, 128], strides = [1, 1]} : vector<16x256xf32> to vector<2x128xf32>
    %cst_64 = arith.constant dense<0.000000e+00> : vector<2x128xf32>
    %259 = tpu.matmul %215, %7, %cst_64 {dimension_numbers = #tpu.dot_dimension_numbers<[1], [0], [0], [1], [0, 0, 1, 1], [], []>} : vector<2x32xf32>, vector<32x128xf32>, vector<2x128xf32> -> vector<2x128xf32>
    %260 = arith.addf %258, %259 : vector<2x128xf32>
    %cst_65 = arith.constant 5.000000e-01 : f32
    %261 = vector.broadcast %cst_65 : f32 to vector<2x128xf32>
    %262 = arith.mulf %261, %260 : vector<2x128xf32>
    %263 = math.tanh %262 : vector<2x128xf32>
    %cst_66 = arith.constant 1.000000e+00 : f32
    %264 = vector.broadcast %cst_66 : f32 to vector<2x128xf32>
    %265 = arith.addf %263, %264 : vector<2x128xf32>
    %cst_67 = arith.constant 5.000000e-01 : f32
    %266 = vector.broadcast %cst_67 : f32 to vector<2x128xf32>
    %267 = arith.mulf %266, %265 : vector<2x128xf32>
    %268 = vector.extract_strided_slice %267 {offsets = [0, 0], sizes = [2, 32], strides = [1, 1]} : vector<2x128xf32> to vector<2x32xf32>
    %269 = vector.extract_strided_slice %267 {offsets = [0, 32], sizes = [2, 32], strides = [1, 1]} : vector<2x128xf32> to vector<2x32xf32>
    %270 = vector.extract_strided_slice %267 {offsets = [0, 64], sizes = [2, 32], strides = [1, 1]} : vector<2x128xf32> to vector<2x32xf32>
    %cst_68 = arith.constant 2.000000e+00 : f32
    %271 = vector.broadcast %cst_68 : f32 to vector<2x32xf32>
    %272 = arith.mulf %271, %270 : vector<2x32xf32>
    %cst_69 = arith.constant 1.000000e+00 : f32
    %273 = vector.broadcast %cst_69 : f32 to vector<2x32xf32>
    %274 = arith.subf %272, %273 : vector<2x32xf32>
    %275 = vector.extract_strided_slice %267 {offsets = [0, 96], sizes = [2, 32], strides = [1, 1]} : vector<2x128xf32> to vector<2x32xf32>
    %276 = arith.mulf %269, %218 : vector<2x32xf32>
    %277 = arith.mulf %268, %274 : vector<2x32xf32>
    %278 = arith.addf %276, %277 : vector<2x32xf32>
    %279 = math.tanh %278 : vector<2x32xf32>
    %280 = arith.mulf %275, %279 : vector<2x32xf32>
    %c4_i32 = arith.constant 4 : i32
    %281 = vector.broadcast %c4_i32 : i32 to vector<2x1xi32>
    %282 = arith.cmpi sgt, %8, %281 : vector<2x1xi32>
    %283 = vector.shape_cast %282 : vector<2x1xi1> to vector<2x1xi1>
    %284 = vector.broadcast %283 : vector<2x1xi1> to vector<2x32xi1>
    %285 = arith.select %284, %280, %215 : vector<2x32xi1>, vector<2x32xf32>
    %286 = vector.shape_cast %282 : vector<2x1xi1> to vector<2x1xi1>
    %287 = vector.broadcast %286 : vector<2x1xi1> to vector<2x32xi1>
    %288 = arith.select %287, %278, %218 : vector<2x32xi1>, vector<2x32xf32>
    %cst_70 = arith.constant 0.000000e+00 : f32
    %289 = vector.shape_cast %282 : vector<2x1xi1> to vector<2x1xi1>
    %290 = vector.broadcast %289 : vector<2x1xi1> to vector<2x32xi1>
    %291 = vector.broadcast %cst_70 : f32 to vector<2x32xf32>
    %292 = arith.select %290, %285, %291 : vector<2x32xi1>, vector<2x32xf32>
    %293 = vector.extract_strided_slice %5 {offsets = [8, 0], sizes = [2, 128], strides = [1, 1]} : vector<16x256xf32> to vector<2x128xf32>
    %cst_71 = arith.constant dense<0.000000e+00> : vector<2x128xf32>
    %294 = tpu.matmul %250, %6, %cst_71 {dimension_numbers = #tpu.dot_dimension_numbers<[1], [0], [0], [1], [0, 0, 1, 1], [], []>} : vector<2x32xf32>, vector<32x128xf32>, vector<2x128xf32> -> vector<2x128xf32>
    %295 = arith.addf %293, %294 : vector<2x128xf32>
    %cst_72 = arith.constant 5.000000e-01 : f32
    %296 = vector.broadcast %cst_72 : f32 to vector<2x128xf32>
    %297 = arith.mulf %296, %295 : vector<2x128xf32>
    %298 = math.tanh %297 : vector<2x128xf32>
    %cst_73 = arith.constant 1.000000e+00 : f32
    %299 = vector.broadcast %cst_73 : f32 to vector<2x128xf32>
    %300 = arith.addf %298, %299 : vector<2x128xf32>
    %cst_74 = arith.constant 5.000000e-01 : f32
    %301 = vector.broadcast %cst_74 : f32 to vector<2x128xf32>
    %302 = arith.mulf %301, %300 : vector<2x128xf32>
    %303 = vector.extract_strided_slice %302 {offsets = [0, 0], sizes = [2, 32], strides = [1, 1]} : vector<2x128xf32> to vector<2x32xf32>
    %304 = vector.extract_strided_slice %302 {offsets = [0, 32], sizes = [2, 32], strides = [1, 1]} : vector<2x128xf32> to vector<2x32xf32>
    %305 = vector.extract_strided_slice %302 {offsets = [0, 64], sizes = [2, 32], strides = [1, 1]} : vector<2x128xf32> to vector<2x32xf32>
    %cst_75 = arith.constant 2.000000e+00 : f32
    %306 = vector.broadcast %cst_75 : f32 to vector<2x32xf32>
    %307 = arith.mulf %306, %305 : vector<2x32xf32>
    %cst_76 = arith.constant 1.000000e+00 : f32
    %308 = vector.broadcast %cst_76 : f32 to vector<2x32xf32>
    %309 = arith.subf %307, %308 : vector<2x32xf32>
    %310 = vector.extract_strided_slice %302 {offsets = [0, 96], sizes = [2, 32], strides = [1, 1]} : vector<2x128xf32> to vector<2x32xf32>
    %311 = arith.mulf %304, %253 : vector<2x32xf32>
    %312 = arith.mulf %303, %309 : vector<2x32xf32>
    %313 = arith.addf %311, %312 : vector<2x32xf32>
    %314 = math.tanh %313 : vector<2x32xf32>
    %315 = arith.mulf %310, %314 : vector<2x32xf32>
    %c4_i32_77 = arith.constant 4 : i32
    %316 = vector.broadcast %c4_i32_77 : i32 to vector<2x1xi32>
    %317 = arith.cmpi sgt, %8, %316 : vector<2x1xi32>
    %318 = vector.shape_cast %317 : vector<2x1xi1> to vector<2x1xi1>
    %319 = vector.broadcast %318 : vector<2x1xi1> to vector<2x32xi1>
    %320 = arith.select %319, %315, %250 : vector<2x32xi1>, vector<2x32xf32>
    %321 = vector.shape_cast %317 : vector<2x1xi1> to vector<2x1xi1>
    %322 = vector.broadcast %321 : vector<2x1xi1> to vector<2x32xi1>
    %323 = arith.select %322, %313, %253 : vector<2x32xi1>, vector<2x32xf32>
    %cst_78 = arith.constant 0.000000e+00 : f32
    %324 = vector.shape_cast %317 : vector<2x1xi1> to vector<2x1xi1>
    %325 = vector.broadcast %324 : vector<2x1xi1> to vector<2x32xi1>
    %326 = vector.broadcast %cst_78 : f32 to vector<2x32xf32>
    %327 = arith.select %325, %320, %326 : vector<2x32xi1>, vector<2x32xf32>
    %328 = vector.extract_strided_slice %5 {offsets = [6, 128], sizes = [2, 128], strides = [1, 1]} : vector<16x256xf32> to vector<2x128xf32>
    %cst_79 = arith.constant dense<0.000000e+00> : vector<2x128xf32>
    %329 = tpu.matmul %285, %7, %cst_79 {dimension_numbers = #tpu.dot_dimension_numbers<[1], [0], [0], [1], [0, 0, 1, 1], [], []>} : vector<2x32xf32>, vector<32x128xf32>, vector<2x128xf32> -> vector<2x128xf32>
    %330 = arith.addf %328, %329 : vector<2x128xf32>
    %cst_80 = arith.constant 5.000000e-01 : f32
    %331 = vector.broadcast %cst_80 : f32 to vector<2x128xf32>
    %332 = arith.mulf %331, %330 : vector<2x128xf32>
    %333 = math.tanh %332 : vector<2x128xf32>
    %cst_81 = arith.constant 1.000000e+00 : f32
    %334 = vector.broadcast %cst_81 : f32 to vector<2x128xf32>
    %335 = arith.addf %333, %334 : vector<2x128xf32>
    %cst_82 = arith.constant 5.000000e-01 : f32
    %336 = vector.broadcast %cst_82 : f32 to vector<2x128xf32>
    %337 = arith.mulf %336, %335 : vector<2x128xf32>
    %338 = vector.extract_strided_slice %337 {offsets = [0, 0], sizes = [2, 32], strides = [1, 1]} : vector<2x128xf32> to vector<2x32xf32>
    %339 = vector.extract_strided_slice %337 {offsets = [0, 32], sizes = [2, 32], strides = [1, 1]} : vector<2x128xf32> to vector<2x32xf32>
    %340 = vector.extract_strided_slice %337 {offsets = [0, 64], sizes = [2, 32], strides = [1, 1]} : vector<2x128xf32> to vector<2x32xf32>
    %cst_83 = arith.constant 2.000000e+00 : f32
    %341 = vector.broadcast %cst_83 : f32 to vector<2x32xf32>
    %342 = arith.mulf %341, %340 : vector<2x32xf32>
    %cst_84 = arith.constant 1.000000e+00 : f32
    %343 = vector.broadcast %cst_84 : f32 to vector<2x32xf32>
    %344 = arith.subf %342, %343 : vector<2x32xf32>
    %345 = vector.extract_strided_slice %337 {offsets = [0, 96], sizes = [2, 32], strides = [1, 1]} : vector<2x128xf32> to vector<2x32xf32>
    %346 = arith.mulf %339, %288 : vector<2x32xf32>
    %347 = arith.mulf %338, %344 : vector<2x32xf32>
    %348 = arith.addf %346, %347 : vector<2x32xf32>
    %349 = math.tanh %348 : vector<2x32xf32>
    %350 = arith.mulf %345, %349 : vector<2x32xf32>
    %c3_i32_85 = arith.constant 3 : i32
    %351 = vector.broadcast %c3_i32_85 : i32 to vector<2x1xi32>
    %352 = arith.cmpi sgt, %8, %351 : vector<2x1xi32>
    %353 = vector.shape_cast %352 : vector<2x1xi1> to vector<2x1xi1>
    %354 = vector.broadcast %353 : vector<2x1xi1> to vector<2x32xi1>
    %355 = arith.select %354, %350, %285 : vector<2x32xi1>, vector<2x32xf32>
    %356 = vector.shape_cast %352 : vector<2x1xi1> to vector<2x1xi1>
    %357 = vector.broadcast %356 : vector<2x1xi1> to vector<2x32xi1>
    %358 = arith.select %357, %348, %288 : vector<2x32xi1>, vector<2x32xf32>
    %cst_86 = arith.constant 0.000000e+00 : f32
    %359 = vector.shape_cast %352 : vector<2x1xi1> to vector<2x1xi1>
    %360 = vector.broadcast %359 : vector<2x1xi1> to vector<2x32xi1>
    %361 = vector.broadcast %cst_86 : f32 to vector<2x32xf32>
    %362 = arith.select %360, %355, %361 : vector<2x32xi1>, vector<2x32xf32>
    %363 = vector.extract_strided_slice %5 {offsets = [10, 0], sizes = [2, 128], strides = [1, 1]} : vector<16x256xf32> to vector<2x128xf32>
    %cst_87 = arith.constant dense<0.000000e+00> : vector<2x128xf32>
    %364 = tpu.matmul %320, %6, %cst_87 {dimension_numbers = #tpu.dot_dimension_numbers<[1], [0], [0], [1], [0, 0, 1, 1], [], []>} : vector<2x32xf32>, vector<32x128xf32>, vector<2x128xf32> -> vector<2x128xf32>
    %365 = arith.addf %363, %364 : vector<2x128xf32>
    %cst_88 = arith.constant 5.000000e-01 : f32
    %366 = vector.broadcast %cst_88 : f32 to vector<2x128xf32>
    %367 = arith.mulf %366, %365 : vector<2x128xf32>
    %368 = math.tanh %367 : vector<2x128xf32>
    %cst_89 = arith.constant 1.000000e+00 : f32
    %369 = vector.broadcast %cst_89 : f32 to vector<2x128xf32>
    %370 = arith.addf %368, %369 : vector<2x128xf32>
    %cst_90 = arith.constant 5.000000e-01 : f32
    %371 = vector.broadcast %cst_90 : f32 to vector<2x128xf32>
    %372 = arith.mulf %371, %370 : vector<2x128xf32>
    %373 = vector.extract_strided_slice %372 {offsets = [0, 0], sizes = [2, 32], strides = [1, 1]} : vector<2x128xf32> to vector<2x32xf32>
    %374 = vector.extract_strided_slice %372 {offsets = [0, 32], sizes = [2, 32], strides = [1, 1]} : vector<2x128xf32> to vector<2x32xf32>
    %375 = vector.extract_strided_slice %372 {offsets = [0, 64], sizes = [2, 32], strides = [1, 1]} : vector<2x128xf32> to vector<2x32xf32>
    %cst_91 = arith.constant 2.000000e+00 : f32
    %376 = vector.broadcast %cst_91 : f32 to vector<2x32xf32>
    %377 = arith.mulf %376, %375 : vector<2x32xf32>
    %cst_92 = arith.constant 1.000000e+00 : f32
    %378 = vector.broadcast %cst_92 : f32 to vector<2x32xf32>
    %379 = arith.subf %377, %378 : vector<2x32xf32>
    %380 = vector.extract_strided_slice %372 {offsets = [0, 96], sizes = [2, 32], strides = [1, 1]} : vector<2x128xf32> to vector<2x32xf32>
    %381 = arith.mulf %374, %323 : vector<2x32xf32>
    %382 = arith.mulf %373, %379 : vector<2x32xf32>
    %383 = arith.addf %381, %382 : vector<2x32xf32>
    %384 = math.tanh %383 : vector<2x32xf32>
    %385 = arith.mulf %380, %384 : vector<2x32xf32>
    %c5_i32_93 = arith.constant 5 : i32
    %386 = vector.broadcast %c5_i32_93 : i32 to vector<2x1xi32>
    %387 = arith.cmpi sgt, %8, %386 : vector<2x1xi32>
    %388 = vector.shape_cast %387 : vector<2x1xi1> to vector<2x1xi1>
    %389 = vector.broadcast %388 : vector<2x1xi1> to vector<2x32xi1>
    %390 = arith.select %389, %385, %320 : vector<2x32xi1>, vector<2x32xf32>
    %391 = vector.shape_cast %387 : vector<2x1xi1> to vector<2x1xi1>
    %392 = vector.broadcast %391 : vector<2x1xi1> to vector<2x32xi1>
    %393 = arith.select %392, %383, %323 : vector<2x32xi1>, vector<2x32xf32>
    %cst_94 = arith.constant 0.000000e+00 : f32
    %394 = vector.shape_cast %387 : vector<2x1xi1> to vector<2x1xi1>
    %395 = vector.broadcast %394 : vector<2x1xi1> to vector<2x32xi1>
    %396 = vector.broadcast %cst_94 : f32 to vector<2x32xf32>
    %397 = arith.select %395, %390, %396 : vector<2x32xi1>, vector<2x32xf32>
    %398 = vector.extract_strided_slice %5 {offsets = [4, 128], sizes = [2, 128], strides = [1, 1]} : vector<16x256xf32> to vector<2x128xf32>
    %cst_95 = arith.constant dense<0.000000e+00> : vector<2x128xf32>
    %399 = tpu.matmul %355, %7, %cst_95 {dimension_numbers = #tpu.dot_dimension_numbers<[1], [0], [0], [1], [0, 0, 1, 1], [], []>} : vector<2x32xf32>, vector<32x128xf32>, vector<2x128xf32> -> vector<2x128xf32>
    %400 = arith.addf %398, %399 : vector<2x128xf32>
    %cst_96 = arith.constant 5.000000e-01 : f32
    %401 = vector.broadcast %cst_96 : f32 to vector<2x128xf32>
    %402 = arith.mulf %401, %400 : vector<2x128xf32>
    %403 = math.tanh %402 : vector<2x128xf32>
    %cst_97 = arith.constant 1.000000e+00 : f32
    %404 = vector.broadcast %cst_97 : f32 to vector<2x128xf32>
    %405 = arith.addf %403, %404 : vector<2x128xf32>
    %cst_98 = arith.constant 5.000000e-01 : f32
    %406 = vector.broadcast %cst_98 : f32 to vector<2x128xf32>
    %407 = arith.mulf %406, %405 : vector<2x128xf32>
    %408 = vector.extract_strided_slice %407 {offsets = [0, 0], sizes = [2, 32], strides = [1, 1]} : vector<2x128xf32> to vector<2x32xf32>
    %409 = vector.extract_strided_slice %407 {offsets = [0, 32], sizes = [2, 32], strides = [1, 1]} : vector<2x128xf32> to vector<2x32xf32>
    %410 = vector.extract_strided_slice %407 {offsets = [0, 64], sizes = [2, 32], strides = [1, 1]} : vector<2x128xf32> to vector<2x32xf32>
    %cst_99 = arith.constant 2.000000e+00 : f32
    %411 = vector.broadcast %cst_99 : f32 to vector<2x32xf32>
    %412 = arith.mulf %411, %410 : vector<2x32xf32>
    %cst_100 = arith.constant 1.000000e+00 : f32
    %413 = vector.broadcast %cst_100 : f32 to vector<2x32xf32>
    %414 = arith.subf %412, %413 : vector<2x32xf32>
    %415 = vector.extract_strided_slice %407 {offsets = [0, 96], sizes = [2, 32], strides = [1, 1]} : vector<2x128xf32> to vector<2x32xf32>
    %416 = arith.mulf %409, %358 : vector<2x32xf32>
    %417 = arith.mulf %408, %414 : vector<2x32xf32>
    %418 = arith.addf %416, %417 : vector<2x32xf32>
    %419 = math.tanh %418 : vector<2x32xf32>
    %420 = arith.mulf %415, %419 : vector<2x32xf32>
    %c2_i32_101 = arith.constant 2 : i32
    %421 = vector.broadcast %c2_i32_101 : i32 to vector<2x1xi32>
    %422 = arith.cmpi sgt, %8, %421 : vector<2x1xi32>
    %423 = vector.shape_cast %422 : vector<2x1xi1> to vector<2x1xi1>
    %424 = vector.broadcast %423 : vector<2x1xi1> to vector<2x32xi1>
    %425 = arith.select %424, %420, %355 : vector<2x32xi1>, vector<2x32xf32>
    %426 = vector.shape_cast %422 : vector<2x1xi1> to vector<2x1xi1>
    %427 = vector.broadcast %426 : vector<2x1xi1> to vector<2x32xi1>
    %428 = arith.select %427, %418, %358 : vector<2x32xi1>, vector<2x32xf32>
    %cst_102 = arith.constant 0.000000e+00 : f32
    %429 = vector.shape_cast %422 : vector<2x1xi1> to vector<2x1xi1>
    %430 = vector.broadcast %429 : vector<2x1xi1> to vector<2x32xi1>
    %431 = vector.broadcast %cst_102 : f32 to vector<2x32xf32>
    %432 = arith.select %430, %425, %431 : vector<2x32xi1>, vector<2x32xf32>
    %433 = vector.extract_strided_slice %5 {offsets = [12, 0], sizes = [2, 128], strides = [1, 1]} : vector<16x256xf32> to vector<2x128xf32>
    %cst_103 = arith.constant dense<0.000000e+00> : vector<2x128xf32>
    %434 = tpu.matmul %390, %6, %cst_103 {dimension_numbers = #tpu.dot_dimension_numbers<[1], [0], [0], [1], [0, 0, 1, 1], [], []>} : vector<2x32xf32>, vector<32x128xf32>, vector<2x128xf32> -> vector<2x128xf32>
    %435 = arith.addf %433, %434 : vector<2x128xf32>
    %cst_104 = arith.constant 5.000000e-01 : f32
    %436 = vector.broadcast %cst_104 : f32 to vector<2x128xf32>
    %437 = arith.mulf %436, %435 : vector<2x128xf32>
    %438 = math.tanh %437 : vector<2x128xf32>
    %cst_105 = arith.constant 1.000000e+00 : f32
    %439 = vector.broadcast %cst_105 : f32 to vector<2x128xf32>
    %440 = arith.addf %438, %439 : vector<2x128xf32>
    %cst_106 = arith.constant 5.000000e-01 : f32
    %441 = vector.broadcast %cst_106 : f32 to vector<2x128xf32>
    %442 = arith.mulf %441, %440 : vector<2x128xf32>
    %443 = vector.extract_strided_slice %442 {offsets = [0, 0], sizes = [2, 32], strides = [1, 1]} : vector<2x128xf32> to vector<2x32xf32>
    %444 = vector.extract_strided_slice %442 {offsets = [0, 32], sizes = [2, 32], strides = [1, 1]} : vector<2x128xf32> to vector<2x32xf32>
    %445 = vector.extract_strided_slice %442 {offsets = [0, 64], sizes = [2, 32], strides = [1, 1]} : vector<2x128xf32> to vector<2x32xf32>
    %cst_107 = arith.constant 2.000000e+00 : f32
    %446 = vector.broadcast %cst_107 : f32 to vector<2x32xf32>
    %447 = arith.mulf %446, %445 : vector<2x32xf32>
    %cst_108 = arith.constant 1.000000e+00 : f32
    %448 = vector.broadcast %cst_108 : f32 to vector<2x32xf32>
    %449 = arith.subf %447, %448 : vector<2x32xf32>
    %450 = vector.extract_strided_slice %442 {offsets = [0, 96], sizes = [2, 32], strides = [1, 1]} : vector<2x128xf32> to vector<2x32xf32>
    %451 = arith.mulf %444, %393 : vector<2x32xf32>
    %452 = arith.mulf %443, %449 : vector<2x32xf32>
    %453 = arith.addf %451, %452 : vector<2x32xf32>
    %454 = math.tanh %453 : vector<2x32xf32>
    %455 = arith.mulf %450, %454 : vector<2x32xf32>
    %c6_i32_109 = arith.constant 6 : i32
    %456 = vector.broadcast %c6_i32_109 : i32 to vector<2x1xi32>
    %457 = arith.cmpi sgt, %8, %456 : vector<2x1xi32>
    %458 = vector.shape_cast %457 : vector<2x1xi1> to vector<2x1xi1>
    %459 = vector.broadcast %458 : vector<2x1xi1> to vector<2x32xi1>
    %460 = arith.select %459, %455, %390 : vector<2x32xi1>, vector<2x32xf32>
    %461 = vector.shape_cast %457 : vector<2x1xi1> to vector<2x1xi1>
    %462 = vector.broadcast %461 : vector<2x1xi1> to vector<2x32xi1>
    %463 = arith.select %462, %453, %393 : vector<2x32xi1>, vector<2x32xf32>
    %cst_110 = arith.constant 0.000000e+00 : f32
    %464 = vector.shape_cast %457 : vector<2x1xi1> to vector<2x1xi1>
    %465 = vector.broadcast %464 : vector<2x1xi1> to vector<2x32xi1>
    %466 = vector.broadcast %cst_110 : f32 to vector<2x32xf32>
    %467 = arith.select %465, %460, %466 : vector<2x32xi1>, vector<2x32xf32>
    %468 = vector.extract_strided_slice %5 {offsets = [2, 128], sizes = [2, 128], strides = [1, 1]} : vector<16x256xf32> to vector<2x128xf32>
    %cst_111 = arith.constant dense<0.000000e+00> : vector<2x128xf32>
    %469 = tpu.matmul %425, %7, %cst_111 {dimension_numbers = #tpu.dot_dimension_numbers<[1], [0], [0], [1], [0, 0, 1, 1], [], []>} : vector<2x32xf32>, vector<32x128xf32>, vector<2x128xf32> -> vector<2x128xf32>
    %470 = arith.addf %468, %469 : vector<2x128xf32>
    %cst_112 = arith.constant 5.000000e-01 : f32
    %471 = vector.broadcast %cst_112 : f32 to vector<2x128xf32>
    %472 = arith.mulf %471, %470 : vector<2x128xf32>
    %473 = math.tanh %472 : vector<2x128xf32>
    %cst_113 = arith.constant 1.000000e+00 : f32
    %474 = vector.broadcast %cst_113 : f32 to vector<2x128xf32>
    %475 = arith.addf %473, %474 : vector<2x128xf32>
    %cst_114 = arith.constant 5.000000e-01 : f32
    %476 = vector.broadcast %cst_114 : f32 to vector<2x128xf32>
    %477 = arith.mulf %476, %475 : vector<2x128xf32>
    %478 = vector.extract_strided_slice %477 {offsets = [0, 0], sizes = [2, 32], strides = [1, 1]} : vector<2x128xf32> to vector<2x32xf32>
    %479 = vector.extract_strided_slice %477 {offsets = [0, 32], sizes = [2, 32], strides = [1, 1]} : vector<2x128xf32> to vector<2x32xf32>
    %480 = vector.extract_strided_slice %477 {offsets = [0, 64], sizes = [2, 32], strides = [1, 1]} : vector<2x128xf32> to vector<2x32xf32>
    %cst_115 = arith.constant 2.000000e+00 : f32
    %481 = vector.broadcast %cst_115 : f32 to vector<2x32xf32>
    %482 = arith.mulf %481, %480 : vector<2x32xf32>
    %cst_116 = arith.constant 1.000000e+00 : f32
    %483 = vector.broadcast %cst_116 : f32 to vector<2x32xf32>
    %484 = arith.subf %482, %483 : vector<2x32xf32>
    %485 = vector.extract_strided_slice %477 {offsets = [0, 96], sizes = [2, 32], strides = [1, 1]} : vector<2x128xf32> to vector<2x32xf32>
    %486 = arith.mulf %479, %428 : vector<2x32xf32>
    %487 = arith.mulf %478, %484 : vector<2x32xf32>
    %488 = arith.addf %486, %487 : vector<2x32xf32>
    %489 = math.tanh %488 : vector<2x32xf32>
    %490 = arith.mulf %485, %489 : vector<2x32xf32>
    %c1_i32_117 = arith.constant 1 : i32
    %491 = vector.broadcast %c1_i32_117 : i32 to vector<2x1xi32>
    %492 = arith.cmpi sgt, %8, %491 : vector<2x1xi32>
    %493 = vector.shape_cast %492 : vector<2x1xi1> to vector<2x1xi1>
    %494 = vector.broadcast %493 : vector<2x1xi1> to vector<2x32xi1>
    %495 = arith.select %494, %490, %425 : vector<2x32xi1>, vector<2x32xf32>
    %496 = vector.shape_cast %492 : vector<2x1xi1> to vector<2x1xi1>
    %497 = vector.broadcast %496 : vector<2x1xi1> to vector<2x32xi1>
    %498 = arith.select %497, %488, %428 : vector<2x32xi1>, vector<2x32xf32>
    %cst_118 = arith.constant 0.000000e+00 : f32
    %499 = vector.shape_cast %492 : vector<2x1xi1> to vector<2x1xi1>
    %500 = vector.broadcast %499 : vector<2x1xi1> to vector<2x32xi1>
    %501 = vector.broadcast %cst_118 : f32 to vector<2x32xf32>
    %502 = arith.select %500, %495, %501 : vector<2x32xi1>, vector<2x32xf32>
    %503 = vector.extract_strided_slice %5 {offsets = [14, 0], sizes = [2, 128], strides = [1, 1]} : vector<16x256xf32> to vector<2x128xf32>
    %cst_119 = arith.constant dense<0.000000e+00> : vector<2x128xf32>
    %504 = tpu.matmul %460, %6, %cst_119 {dimension_numbers = #tpu.dot_dimension_numbers<[1], [0], [0], [1], [0, 0, 1, 1], [], []>} : vector<2x32xf32>, vector<32x128xf32>, vector<2x128xf32> -> vector<2x128xf32>
    %505 = arith.addf %503, %504 : vector<2x128xf32>
    %cst_120 = arith.constant 5.000000e-01 : f32
    %506 = vector.broadcast %cst_120 : f32 to vector<2x128xf32>
    %507 = arith.mulf %506, %505 : vector<2x128xf32>
    %508 = math.tanh %507 : vector<2x128xf32>
    %cst_121 = arith.constant 1.000000e+00 : f32
    %509 = vector.broadcast %cst_121 : f32 to vector<2x128xf32>
    %510 = arith.addf %508, %509 : vector<2x128xf32>
    %cst_122 = arith.constant 5.000000e-01 : f32
    %511 = vector.broadcast %cst_122 : f32 to vector<2x128xf32>
    %512 = arith.mulf %511, %510 : vector<2x128xf32>
    %513 = vector.extract_strided_slice %512 {offsets = [0, 0], sizes = [2, 32], strides = [1, 1]} : vector<2x128xf32> to vector<2x32xf32>
    %514 = vector.extract_strided_slice %512 {offsets = [0, 32], sizes = [2, 32], strides = [1, 1]} : vector<2x128xf32> to vector<2x32xf32>
    %515 = vector.extract_strided_slice %512 {offsets = [0, 64], sizes = [2, 32], strides = [1, 1]} : vector<2x128xf32> to vector<2x32xf32>
    %cst_123 = arith.constant 2.000000e+00 : f32
    %516 = vector.broadcast %cst_123 : f32 to vector<2x32xf32>
    %517 = arith.mulf %516, %515 : vector<2x32xf32>
    %cst_124 = arith.constant 1.000000e+00 : f32
    %518 = vector.broadcast %cst_124 : f32 to vector<2x32xf32>
    %519 = arith.subf %517, %518 : vector<2x32xf32>
    %520 = vector.extract_strided_slice %512 {offsets = [0, 96], sizes = [2, 32], strides = [1, 1]} : vector<2x128xf32> to vector<2x32xf32>
    %521 = arith.mulf %514, %463 : vector<2x32xf32>
    %522 = arith.mulf %513, %519 : vector<2x32xf32>
    %523 = arith.addf %521, %522 : vector<2x32xf32>
    %524 = math.tanh %523 : vector<2x32xf32>
    %525 = arith.mulf %520, %524 : vector<2x32xf32>
    %c7_i32_125 = arith.constant 7 : i32
    %526 = vector.broadcast %c7_i32_125 : i32 to vector<2x1xi32>
    %527 = arith.cmpi sgt, %8, %526 : vector<2x1xi32>
    %528 = vector.shape_cast %527 : vector<2x1xi1> to vector<2x1xi1>
    %529 = vector.broadcast %528 : vector<2x1xi1> to vector<2x32xi1>
    %530 = arith.select %529, %525, %460 : vector<2x32xi1>, vector<2x32xf32>
    %cst_126 = arith.constant 0.000000e+00 : f32
    %531 = vector.shape_cast %527 : vector<2x1xi1> to vector<2x1xi1>
    %532 = vector.broadcast %531 : vector<2x1xi1> to vector<2x32xi1>
    %533 = vector.broadcast %cst_126 : f32 to vector<2x32xf32>
    %534 = arith.select %532, %530, %533 : vector<2x32xi1>, vector<2x32xf32>
    %535 = vector.extract_strided_slice %5 {offsets = [0, 128], sizes = [2, 128], strides = [1, 1]} : vector<16x256xf32> to vector<2x128xf32>
    %cst_127 = arith.constant dense<0.000000e+00> : vector<2x128xf32>
    %536 = tpu.matmul %495, %7, %cst_127 {dimension_numbers = #tpu.dot_dimension_numbers<[1], [0], [0], [1], [0, 0, 1, 1], [], []>} : vector<2x32xf32>, vector<32x128xf32>, vector<2x128xf32> -> vector<2x128xf32>
    %537 = arith.addf %535, %536 : vector<2x128xf32>
    %cst_128 = arith.constant 5.000000e-01 : f32
    %538 = vector.broadcast %cst_128 : f32 to vector<2x128xf32>
    %539 = arith.mulf %538, %537 : vector<2x128xf32>
    %540 = math.tanh %539 : vector<2x128xf32>
    %cst_129 = arith.constant 1.000000e+00 : f32
    %541 = vector.broadcast %cst_129 : f32 to vector<2x128xf32>
    %542 = arith.addf %540, %541 : vector<2x128xf32>
    %cst_130 = arith.constant 5.000000e-01 : f32
    %543 = vector.broadcast %cst_130 : f32 to vector<2x128xf32>
    %544 = arith.mulf %543, %542 : vector<2x128xf32>
    %545 = vector.extract_strided_slice %544 {offsets = [0, 0], sizes = [2, 32], strides = [1, 1]} : vector<2x128xf32> to vector<2x32xf32>
    %546 = vector.extract_strided_slice %544 {offsets = [0, 32], sizes = [2, 32], strides = [1, 1]} : vector<2x128xf32> to vector<2x32xf32>
    %547 = vector.extract_strided_slice %544 {offsets = [0, 64], sizes = [2, 32], strides = [1, 1]} : vector<2x128xf32> to vector<2x32xf32>
    %cst_131 = arith.constant 2.000000e+00 : f32
    %548 = vector.broadcast %cst_131 : f32 to vector<2x32xf32>
    %549 = arith.mulf %548, %547 : vector<2x32xf32>
    %cst_132 = arith.constant 1.000000e+00 : f32
    %550 = vector.broadcast %cst_132 : f32 to vector<2x32xf32>
    %551 = arith.subf %549, %550 : vector<2x32xf32>
    %552 = vector.extract_strided_slice %544 {offsets = [0, 96], sizes = [2, 32], strides = [1, 1]} : vector<2x128xf32> to vector<2x32xf32>
    %553 = arith.mulf %546, %498 : vector<2x32xf32>
    %554 = arith.mulf %545, %551 : vector<2x32xf32>
    %555 = arith.addf %553, %554 : vector<2x32xf32>
    %556 = math.tanh %555 : vector<2x32xf32>
    %557 = arith.mulf %552, %556 : vector<2x32xf32>
    %c0_i32_133 = arith.constant 0 : i32
    %558 = vector.broadcast %c0_i32_133 : i32 to vector<2x1xi32>
    %559 = arith.cmpi sgt, %8, %558 : vector<2x1xi32>
    %560 = vector.shape_cast %559 : vector<2x1xi1> to vector<2x1xi1>
    %561 = vector.broadcast %560 : vector<2x1xi1> to vector<2x32xi1>
    %562 = arith.select %561, %557, %495 : vector<2x32xi1>, vector<2x32xf32>
    %cst_134 = arith.constant 0.000000e+00 : f32
    %563 = vector.shape_cast %559 : vector<2x1xi1> to vector<2x1xi1>
    %564 = vector.broadcast %563 : vector<2x1xi1> to vector<2x32xi1>
    %565 = vector.broadcast %cst_134 : f32 to vector<2x32xf32>
    %566 = arith.select %564, %562, %565 : vector<2x32xi1>, vector<2x32xf32>
    %567 = tpu.concatenate %47, %117, %187, %257, %327, %397, %467, %534 in 0 : vector<2x32xf32>, vector<2x32xf32>, vector<2x32xf32>, vector<2x32xf32>, vector<2x32xf32>, vector<2x32xf32>, vector<2x32xf32>, vector<2x32xf32> -> vector<16x32xf32>
    %568 = tpu.concatenate %566, %502, %432, %362, %292, %222, %152, %82 in 0 : vector<2x32xf32>, vector<2x32xf32>, vector<2x32xf32>, vector<2x32xf32>, vector<2x32xf32>, vector<2x32xf32>, vector<2x32xf32>, vector<2x32xf32> -> vector<16x32xf32>
    %c0_135 = arith.constant 0 : index
    %c0_136 = arith.constant 0 : index
    %569 = vector.load %arg6[%c0_135, %c0_136] : memref<32x32xf32, #tpu.memory_space<vmem>>, vector<32x32xf32>
    %cst_137 = arith.constant dense<0.000000e+00> : vector<16x32xf32>
    %570 = tpu.matmul %567, %569, %cst_137 {dimension_numbers = #tpu.dot_dimension_numbers<[1], [0], [0], [1], [0, 0, 1, 1], [], []>} : vector<16x32xf32>, vector<32x32xf32>, vector<16x32xf32> -> vector<16x32xf32>
    %c0_138 = arith.constant 0 : index
    %c0_139 = arith.constant 0 : index
    %571 = vector.load %arg7[%c0_138, %c0_139] : memref<32x32xf32, #tpu.memory_space<vmem>>, vector<32x32xf32>
    %cst_140 = arith.constant dense<0.000000e+00> : vector<16x32xf32>
    %572 = tpu.matmul %568, %571, %cst_140 {dimension_numbers = #tpu.dot_dimension_numbers<[1], [0], [0], [1], [0, 0, 1, 1], [], []>} : vector<16x32xf32>, vector<32x32xf32>, vector<16x32xf32> -> vector<16x32xf32>
    %573 = arith.addf %570, %572 : vector<16x32xf32>
    %c0_141 = arith.constant 0 : index
    %c0_142 = arith.constant 0 : index
    %574 = vector.load %arg8[%c0_141, %c0_142] : memref<1x32xf32, #tpu.memory_space<vmem>>, vector<1x32xf32>
    %575 = vector.broadcast %574 : vector<1x32xf32> to vector<16x32xf32>
    %576 = arith.addf %573, %575 : vector<16x32xf32>
    %cst_143 = arith.constant 0.000000e+00 : f32
    %577 = vector.broadcast %cst_143 : f32 to vector<16x32xf32>
    %578 = arith.cmpf ogt, %576, %577 : vector<16x32xf32>
    %cst_144 = arith.constant 0.000000e+00 : f32
    %579 = vector.broadcast %cst_144 : f32 to vector<16x32xf32>
    %580 = arith.minimumf %576, %579 : vector<16x32xf32>
    %581 = math.exp %580 : vector<16x32xf32>
    %cst_145 = arith.constant 1.000000e+00 : f32
    %582 = vector.broadcast %cst_145 : f32 to vector<16x32xf32>
    %583 = arith.subf %581, %582 : vector<16x32xf32>
    %584 = arith.select %578, %576, %583 : vector<16x32xi1>, vector<16x32xf32>
    %c0_146 = arith.constant 0 : index
    %c0_147 = arith.constant 0 : index
    %585 = vector.load %arg9[%c0_146, %c0_147] : memref<32x128xf32, #tpu.memory_space<vmem>>, vector<32x128xf32>
    %cst_148 = arith.constant dense<0.000000e+00> : vector<16x128xf32>
    %586 = tpu.matmul %584, %585, %cst_148 {dimension_numbers = #tpu.dot_dimension_numbers<[1], [0], [0], [1], [0, 0, 1, 1], [], []>} : vector<16x32xf32>, vector<32x128xf32>, vector<16x128xf32> -> vector<16x128xf32>
    %c0_149 = arith.constant 0 : index
    %c0_150 = arith.constant 0 : index
    %587 = vector.load %arg10[%c0_149, %c0_150] : memref<1x128xf32, #tpu.memory_space<vmem>>, vector<1x128xf32>
    %588 = vector.broadcast %587 : vector<1x128xf32> to vector<16x128xf32>
    %589 = arith.addf %586, %588 : vector<16x128xf32>
    %c0_151 = arith.constant 0 : index
    %c0_152 = arith.constant 0 : index
    %590 = vector.load %arg11[%c0_151, %c0_152] : memref<16x128xf32, #tpu.memory_space<vmem>>, vector<16x128xf32>
    tpu.vector_store %arg11[%c0_151, %c0_152], %589 {strides = array<i32>} : memref<16x128xf32, #tpu.memory_space<vmem>>, vector<16x128xf32>,
    return
  }
}

</mosaic_0001>

<llo_original>
// kernel: tpu_custom_call.1
$region0: #{tpu_custom_call.1}
  #allocation0 [shape = 'u32[]', space=smem, size = 0x4, offset = 0x4, fixed_abs, tag = 'smem constant byte address 0x4 - core index']
  #allocation1 [shape = 'u32[144,128]{1,0:T(1,128)}', space=vmem, size = 0x12000, scoped, tag = 'internal scratch']
  %s0 = inlined_call_operand.hbm [shape: f32[16,64], index: 0, kind: input, shape index: {}]
  %s1 = inlined_call_operand.vmem [shape: s32[2,1], index: 1, kind: input, shape index: {}]
  %s2 = inlined_call_operand.hbm [shape: f32[64,256], index: 2, kind: input, shape index: {}]
  %s3 = inlined_call_operand.vmem [shape: f32[1,256], index: 3, kind: input, shape index: {}]
  %s4 = inlined_call_operand.hbm [shape: f32[32,128], index: 4, kind: input, shape index: {}]
  %s5 = inlined_call_operand.hbm [shape: f32[32,128], index: 5, kind: input, shape index: {}]
  %s6 = inlined_call_operand.hbm [shape: f32[32,32], index: 6, kind: input, shape index: {}]
  %s7 = inlined_call_operand.hbm [shape: f32[32,32], index: 7, kind: input, shape index: {}]
  %s8 = inlined_call_operand.vmem [shape: f32[1,32], index: 8, kind: input, shape index: {}]
  %s9 = inlined_call_operand.hbm [shape: f32[32,128], index: 9, kind: input, shape index: {}]
  %s10 = inlined_call_operand.vmem [shape: f32[1,128], index: 10, kind: input, shape index: {}]
  %s11 = inlined_call_operand.hbm [shape: f32[16,128], index: 11, kind: output, shape index: {}]
  %s12 = sld [smem:[#allocation0]]
  $region82: #{tpu_custom_call.1} parent=0
    _
  %s14 = ssub.s32 1, %s12
  %s15 = scalar_select 0, %s14, %s12
  $region1: #{tpu_custom_call.1} parent=0
    #allocation2 [shape = 'u8[8192]{0}', space=vmem, size = 0x2000, scoped, tag = 'input window, operand 0, single buffered']
    #allocation3 [shape = 's32[1]{0}', space=sflag, size = 0x4, scoped, tag = 'scoped memory for tpu_custom_call.1']
    #allocation4 [shape = 's32[1]{0}', space=sflag, size = 0x4, scoped, tag = 'scoped memory for tpu_custom_call.1']
    #allocation5 [shape = 'u8[65536]{0}', space=vmem, size = 0x10000, scoped, tag = 'input window, operand 2, single buffered']
    #allocation6 [shape = 's32[1]{0}', space=sflag, size = 0x4, scoped, tag = 'scoped memory for tpu_custom_call.1']
    #allocation7 [shape = 'u8[16384]{0}', space=vmem, size = 0x4000, scoped, tag = 'input window, operand 4, single buffered']
    #allocation8 [shape = 'u8[16384]{0}', space=vmem, size = 0x4000, scoped, tag = 'input window, operand 5, single buffered']
    #allocation9 [shape = 's32[1]{0}', space=sflag, size = 0x4, scoped, tag = 'scoped memory for tpu_custom_call.1']
    #allocation10 [shape = 'u8[16384]{0}', space=vmem, size = 0x4000, scoped, tag = 'input window, operand 6, single buffered']
    #allocation11 [shape = 'u8[16384]{0}', space=vmem, size = 0x4000, scoped, tag = 'input window, operand 7, single buffered']
    #allocation12 [shape = 's32[1]{0}', space=sflag, size = 0x4, scoped, tag = 'scoped memory for tpu_custom_call.1']
    #allocation13 [shape = 'u8[16384]{0}', space=vmem, size = 0x4000, scoped, tag = 'input window, operand 9, single buffered']
    #allocation14 [shape = 'u8[8192]{0}', space=vmem, size = 0x2000, scoped, tag = 'output window, operand 0, single buffered']
    %16 = vsyncpa [#allocation3], 0
    %17 = vsyncpa [#allocation6], 0
    %18 = vsyncpa [#allocation9], 0
    %19 = vsyncpa [#allocation12], 0
    %20 = vsyncpa [#allocation4], 0
    // Predicated region
    $region2: #{tpu_custom_call.1} parent=1 // pred_check
      _
    $region3: #{tpu_custom_call.1} parent=1 // pred_check_branch
      %22 = sbr.rel (0) target = $region5
    $region4: #{tpu_custom_call.1} parent=1 // pred_region
      %s24 = ssub.s32 256, 256
      %25 = vsyncadd [#allocation3], %s24
      %s26 = sshll.u32 [#allocation2], 4
      %s27 = int_to_ptr.vmem [resolvable:$true] %s26
      %32 = dma.hbm_to_vmem [thread:$0]  %s0, 256, %s27, [#allocation3], 128, 128, 8
    $region5: #{tpu_custom_call.1} parent=1 // pred_fallthru
      _
    // Predicated region
    $region6: #{tpu_custom_call.1} parent=1 // pred_check
      _
    $region7: #{tpu_custom_call.1} parent=1 // pred_check_branch
      %34 = sbr.rel (0) target = $region9
    $region8: #{tpu_custom_call.1} parent=1 // pred_region
      _
    $region9: #{tpu_custom_call.1} parent=1 // pred_fallthru
      _
    // Predicated region
    $region10: #{tpu_custom_call.1} parent=1 // pred_check
      _
    $region11: #{tpu_custom_call.1} parent=1 // pred_check_branch
      %36 = sbr.rel (0) target = $region13
    $region12: #{tpu_custom_call.1} parent=1 // pred_region
      %s38 = ssub.s32 2048, 2048
      %39 = vsyncadd [#allocation6], %s38
      %s40 = sshll.u32 [#allocation5], 4
      %s41 = int_to_ptr.vmem [resolvable:$true] %s40
      %46 = dma.hbm_to_vmem [thread:$0]  %s2, 2048, %s41, [#allocation6], 256, 256, 16
    $region13: #{tpu_custom_call.1} parent=1 // pred_fallthru
      _
    // Predicated region
    $region14: #{tpu_custom_call.1} parent=1 // pred_check
      _
    $region15: #{tpu_custom_call.1} parent=1 // pred_check_branch
      %48 = sbr.rel (0) target = $region17
    $region16: #{tpu_custom_call.1} parent=1 // pred_region
      _
    $region17: #{tpu_custom_call.1} parent=1 // pred_fallthru
      _
    // Predicated region
    $region18: #{tpu_custom_call.1} parent=1 // pred_check
      _
    $region19: #{tpu_custom_call.1} parent=1 // pred_check_branch
      %50 = sbr.rel (0) target = $region21
    $region20: #{tpu_custom_call.1} parent=1 // pred_region
      %s52 = ssub.s32 512, 512
      %53 = vsyncadd [#allocation6], %s52
      %s54 = sshll.u32 [#allocation7], 4
      %s55 = int_to_ptr.vmem [resolvable:$true] %s54
      %60 = dma.hbm_to_vmem [thread:$0]  %s4, 512, %s55, [#allocation6], 128, 128, 8
    $region21: #{tpu_custom_call.1} parent=1 // pred_fallthru
      _
    // Predicated region
    $region22: #{tpu_custom_call.1} parent=1 // pred_check
      _
    $region23: #{tpu_custom_call.1} parent=1 // pred_check_branch
      %62 = sbr.rel (0) target = $region25
    $region24: #{tpu_custom_call.1} parent=1 // pred_region
      %s64 = ssub.s32 512, 512
      %65 = vsyncadd [#allocation9], %s64
      %s66 = sshll.u32 [#allocation8], 4
      %s67 = int_to_ptr.vmem [resolvable:$true] %s66
      %72 = dma.hbm_to_vmem [thread:$0]  %s5, 512, %s67, [#allocation9], 128, 128, 8
    $region25: #{tpu_custom_call.1} parent=1 // pred_fallthru
      _
    // Predicated region
    $region26: #{tpu_custom_call.1} parent=1 // pred_check
      _
    $region27: #{tpu_custom_call.1} parent=1 // pred_check_branch
      %74 = sbr.rel (0) target = $region29
    $region28: #{tpu_custom_call.1} parent=1 // pred_region
      %s76 = ssub.s32 512, 512
      %77 = vsyncadd [#allocation9], %s76
      %s78 = sshll.u32 [#allocation10], 4
      %s79 = int_to_ptr.vmem [resolvable:$true] %s78
      %84 = dma.hbm_to_vmem [thread:$0]  %s6, 512, %s79, [#allocation9], 128, 128, 8
    $region29: #{tpu_custom_call.1} parent=1 // pred_fallthru
      _
    // Predicated region
    $region30: #{tpu_custom_call.1} parent=1 // pred_check
      _
    $region31: #{tpu_custom_call.1} parent=1 // pred_check_branch
      %86 = sbr.rel (0) target = $region33
    $region32: #{tpu_custom_call.1} parent=1 // pred_region
      %s88 = ssub.s32 512, 512
      %89 = vsyncadd [#allocation12], %s88
      %s90 = sshll.u32 [#allocation11], 4
      %s91 = int_to_ptr.vmem [resolvable:$true] %s90
      %96 = dma.hbm_to_vmem [thread:$0]  %s7, 512, %s91, [#allocation12], 128, 128, 8
    $region33: #{tpu_custom_call.1} parent=1 // pred_fallthru
      _
    // Predicated region
    $region34: #{tpu_custom_call.1} parent=1 // pred_check
      _
    $region35: #{tpu_custom_call.1} parent=1 // pred_check_branch
      %98 = sbr.rel (0) target = $region37
    $region36: #{tpu_custom_call.1} parent=1 // pred_region
      _
    $region37: #{tpu_custom_call.1} parent=1 // pred_fallthru
      _
    // Predicated region
    $region38: #{tpu_custom_call.1} parent=1 // pred_check
      _
    $region39: #{tpu_custom_call.1} parent=1 // pred_check_branch
      %100 = sbr.rel (0) target = $region41
    $region40: #{tpu_custom_call.1} parent=1 // pred_region
      %s102 = ssub.s32 512, 512
      %103 = vsyncadd [#allocation12], %s102
      %s104 = sshll.u32 [#allocation13], 4
      %s105 = int_to_ptr.vmem [resolvable:$true] %s104
      %110 = dma.hbm_to_vmem [thread:$0]  %s9, 512, %s105, [#allocation12], 128, 128, 8
    $region41: #{tpu_custom_call.1} parent=1 // pred_fallthru
      _
    // Predicated region
    $region42: #{tpu_custom_call.1} parent=1 // pred_check
      _
    $region43: #{tpu_custom_call.1} parent=1 // pred_check_branch
      %112 = sbr.rel (0) target = $region45
    $region44: #{tpu_custom_call.1} parent=1 // pred_region
      _
    $region45: #{tpu_custom_call.1} parent=1 // pred_fallthru
      _
    // Predicated region
    $region46: #{tpu_custom_call.1} parent=1 // pred_check
      _
    $region47: #{tpu_custom_call.1} parent=1 // pred_check_branch
      %114 = sbr.rel (0) target = $region49
    $region48: #{tpu_custom_call.1} parent=1 // pred_region
      %115 = dma.done [#allocation3], 256
    $region49: #{tpu_custom_call.1} parent=1 // pred_fallthru
      _
    // Predicated region
    $region50: #{tpu_custom_call.1} parent=1 // pred_check
      _
    $region51: #{tpu_custom_call.1} parent=1 // pred_check_branch
      %117 = sbr.rel (0) target = $region53
    $region52: #{tpu_custom_call.1} parent=1 // pred_region
      %118 = dma.done [#allocation6], 2048
    $region53: #{tpu_custom_call.1} parent=1 // pred_fallthru
      _
    // Predicated region
    $region54: #{tpu_custom_call.1} parent=1 // pred_check
      _
    $region55: #{tpu_custom_call.1} parent=1 // pred_check_branch
      %120 = sbr.rel (0) target = $region57
    $region56: #{tpu_custom_call.1} parent=1 // pred_region
      %121 = dma.done [#allocation6], 512
    $region57: #{tpu_custom_call.1} parent=1 // pred_fallthru
      _
    // Predicated region
    $region58: #{tpu_custom_call.1} parent=1 // pred_check
      _
    $region59: #{tpu_custom_call.1} parent=1 // pred_check_branch
      %123 = sbr.rel (0) target = $region61
    $region60: #{tpu_custom_call.1} parent=1 // pred_region
      %124 = dma.done [#allocation9], 512
    $region61: #{tpu_custom_call.1} parent=1 // pred_fallthru
      _
    // Predicated region
    $region62: #{tpu_custom_call.1} parent=1 // pred_check
      _
    $region63: #{tpu_custom_call.1} parent=1 // pred_check_branch
      %126 = sbr.rel (0) target = $region65
    $region64: #{tpu_custom_call.1} parent=1 // pred_region
      %127 = dma.done [#allocation9], 512
    $region65: #{tpu_custom_call.1} parent=1 // pred_fallthru
      _
    // Predicated region
    $region66: #{tpu_custom_call.1} parent=1 // pred_check
      _
    $region67: #{tpu_custom_call.1} parent=1 // pred_check_branch
      %129 = sbr.rel (0) target = $region69
    $region68: #{tpu_custom_call.1} parent=1 // pred_region
      %130 = dma.done [#allocation12], 512
    $region69: #{tpu_custom_call.1} parent=1 // pred_fallthru
      _
    // Predicated region
    $region70: #{tpu_custom_call.1} parent=1 // pred_check
      _
    $region71: #{tpu_custom_call.1} parent=1 // pred_check_branch
      %132 = sbr.rel (0) target = $region73
    $region72: #{tpu_custom_call.1} parent=1 // pred_region
      %133 = dma.done [#allocation12], 512
    $region73: #{tpu_custom_call.1} parent=1 // pred_fallthru
      _
    %v134 = vld [vmem:[#allocation2] sm:$0xff]
    %v135 = vld [vmem:[#allocation2 + $0x8] sm:$0xff]
    %v136 = vld [vmem:[#allocation5] sm:$0xff]
    %v137 = vld [vmem:[#allocation5 + $0x8] sm:$0xff]
    %v138 = vld [vmem:[#allocation5 + $0x10] sm:$0xff]
    %v139 = vld [vmem:[#allocation5 + $0x18] sm:$0xff]
    %v140 = vld [vmem:[#allocation5 + $0x20] sm:$0xff]
    %v141 = vld [vmem:[#allocation5 + $0x28] sm:$0xff]
    %v142 = vld [vmem:[#allocation5 + $0x30] sm:$0xff]
    %v143 = vld [vmem:[#allocation5 + $0x38] sm:$0xff]
    %v144 = vld [vmem:[#allocation5 + $0x40] sm:$0xff]
    %v145 = vld [vmem:[#allocation5 + $0x48] sm:$0xff]
    %v146 = vld [vmem:[#allocation5 + $0x50] sm:$0xff]
    %v147 = vld [vmem:[#allocation5 + $0x58] sm:$0xff]
    %v148 = vld [vmem:[#allocation5 + $0x60] sm:$0xff]
    %v149 = vld [vmem:[#allocation5 + $0x68] sm:$0xff]
    %v150 = vld [vmem:[#allocation5 + $0x70] sm:$0xff]
    %v151 = vld [vmem:[#allocation5 + $0x78] sm:$0xff]
    %v152 = vld [vmem:[%s3] sm:$0x3]
    %v154 = vlaneseq
    %v155 = vshrl.u32 %v154, 7
    %v156 = vsub.s32 0, %v155
    %v157 = vrot.slane %v152, %v156
    %v158 = vlaneseq
    %v159 = vshrl.u32 %v158, 7
    %v160 = vsub.s32 1, %v159
    %v161 = vrot.slane %v152, %v160
    %vm164 = vcmask 523264
    %v166 = vsel %vm164, %v134, 0
    %v169 = vsel %vm164, %v135, 0
    %171 = vmatprep.subr.mxu0 0.0
    %172 = vmatpush1.msra.mxu0 0.0
    %173 = vmatprep.subr.mxu0 0.0
    %174 = vmatpush1.msra.mxu0 0.0
    %175 = vmatprep.subr.mxu0 0.0
    %176 = vmatpush1.msra.mxu0 0.0
    %177 = vmatprep.subr.mxu0 0.0
    %178 = vmatpush1.msra.mxu0 0.0
    %179 = vmatprep.subr.mxu0 0.0
    %180 = vmatpush1.msra.mxu0 0.0
    %181 = vmatprep.subr.mxu0 0.0
    %182 = vmatpush1.msra.mxu0 0.0
    %183 = vmatprep.subr.mxu0 0.0
    %184 = vmatpush1.msra.mxu0 0.0
    %185 = vmatprep.subr.mxu0 0.0
    %186 = vmatpush1.msra.mxu0 0.0
    %187 = vmatprep.subr.mxu0 %v151
    %188 = vmatpush1.msra.mxu0 %v150
    %189 = vmatprep.subr.mxu0 %v149
    %190 = vmatpush1.msra.mxu0 %v148
    %191 = vmatprep.subr.mxu0 %v147
    %192 = vmatpush1.msra.mxu0 %v146
    %193 = vmatprep.subr.mxu0 %v145
    %194 = vmatpush1.msra.mxu0 %v144
    %195 = vmatprep.subr.mxu0 %v143
    %196 = vmatpush1.msra.mxu0 %v142
    %197 = vmatprep.subr.mxu0 %v141
    %198 = vmatpush1.msra.mxu0 %v140
    %199 = vmatprep.subr.mxu0 %v139
    %200 = vmatpush1.msra.mxu0 %v138
    %201 = vmatprep.subr.mxu0 %v137
    %202 = vmatpush1.msra.mxu0 %v136
    %203 = vmatprep.subr.mxu0 0.0
    %204 = vmatpush2.msra.mxu0 0.0
    %205 = vmatprep.subr.mxu0 0.0
    %206 = vmatpush2.msra.mxu0 0.0
    %207 = vmatprep.subr.mxu0 0.0
    %208 = vmatpush2.msra.mxu0 0.0
    %209 = vmatprep.subr.mxu0 0.0
    %210 = vmatpush2.msra.mxu0 0.0
    %211 = vmatprep.subr.mxu0 0.0
    %212 = vmatpush2.msra.mxu0 0.0
    %213 = vmatprep.subr.mxu0 0.0
    %214 = vmatpush2.msra.mxu0 0.0
    %215 = vmatprep.subr.mxu0 0.0
    %216 = vmatpush2.msra.mxu0 0.0
    %217 = vmatprep.subr.mxu0 0.0
    %218 = vmatpush2.msra.mxu0 0.0
    %219 = vmatprep.subr.mxu0 0.0
    %220 = vmatpush2.msra.mxu0 0.0
    %221 = vmatprep.subr.mxu0 0.0
    %222 = vmatpush2.msra.mxu0 0.0
    %223 = vmatprep.subr.mxu0 0.0
    %224 = vmatpush2.msra.mxu0 0.0
    %225 = vmatprep.subr.mxu0 0.0
    %226 = vmatpush2.msra.mxu0 0.0
    %227 = vmatprep.subr.mxu0 0.0
    %228 = vmatpush2.msra.mxu0 0.0
    %229 = vmatprep.subr.mxu0 0.0
    %230 = vmatpush2.msra.mxu0 0.0
    %231 = vmatprep.subr.mxu0 0.0
    %232 = vmatpush2.msra.mxu0 0.0
    %233 = vmatprep.subr.mxu0 0.0
    %234 = vmatpush2.msra.mxu0 0.0
    %235 = vmatprep.mubr.f32.mxu0 0.0
    %236 = vmatmul.mubr.f32.gmra.mxu0 %v166
    %v237 = vpop.f32.mrf.mxu0
    %v238 = vadd.f32 %v157, %v237
    %v239 = vpop.f32.mrf.mxu0
    %v240 = vadd.f32 %v161, %v239
    %241 = vmatprep.mubr.f32.mxu0 0.0
    %242 = vmatmul.mubr.f32.gmra.mxu0 %v169
    %v243 = vpop.f32.mrf.mxu0
    %v244 = vadd.f32 %v157, %v243
    %v245 = vpop.f32.mrf.mxu0
    %v246 = vadd.f32 %v161, %v245
    %247 = vdwg.mxu0
    %v248 = vld [vmem:[#allocation7] sm:$0xff]
    %v249 = vld [vmem:[#allocation7 + $0x8] sm:$0xff]
    %v250 = vld [vmem:[#allocation7 + $0x10] sm:$0xff]
    %v251 = vld [vmem:[#allocation7 + $0x18] sm:$0xff]
    %v252 = vld [vmem:[#allocation8] sm:$0xff]
    %v253 = vld [vmem:[#allocation8 + $0x8] sm:$0xff]
    %v254 = vld [vmem:[#allocation8 + $0x10] sm:$0xff]
    %v255 = vld [vmem:[#allocation8 + $0x18] sm:$0xff]
    %v256 = vld [vmem:[%s1] sm:$0x3]
    %vm257 = vcmask 261120
    %v259 = vsel %vm257, 0.0, 0
    %261 = vmatprep.subr.mxu0 0.0
    %262 = vmatpush1.msra.mxu0 0.0
    %263 = vmatprep.subr.mxu0 0.0
    %264 = vmatpush1.msra.mxu0 0.0
    %265 = vmatprep.subr.mxu0 0.0
    %266 = vmatpush1.msra.mxu0 0.0
    %267 = vmatprep.subr.mxu0 0.0
    %268 = vmatpush1.msra.mxu0 0.0
    %269 = vmatprep.subr.mxu0 0.0
    %270 = vmatpush1.msra.mxu0 0.0
    %271 = vmatprep.subr.mxu0 0.0
    %272 = vmatpush1.msra.mxu0 0.0
    %273 = vmatprep.subr.mxu0 0.0
    %274 = vmatpush1.msra.mxu0 0.0
    %275 = vmatprep.subr.mxu0 0.0
    %276 = vmatpush1.msra.mxu0 0.0
    %277 = vmatprep.subr.mxu0 0.0
    %278 = vmatpush1.msra.mxu0 0.0
    %279 = vmatprep.subr.mxu0 0.0
    %280 = vmatpush1.msra.mxu0 0.0
    %281 = vmatprep.subr.mxu0 0.0
    %282 = vmatpush1.msra.mxu0 0.0
    %283 = vmatprep.subr.mxu0 0.0
    %284 = vmatpush1.msra.mxu0 0.0
    %285 = vmatprep.subr.mxu0 0.0
    %286 = vmatpush1.msra.mxu0 %v251
    %287 = vmatprep.subr.mxu0 0.0
    %288 = vmatpush1.msra.mxu0 %v250
    %289 = vmatprep.subr.mxu0 0.0
    %290 = vmatpush1.msra.mxu0 %v249
    %291 = vmatprep.subr.mxu0 0.0
    %292 = vmatpush1.msra.mxu0 %v248
    %293 = vmatprep.subr.mxu0 0.0
    %294 = vmatpush2.msra.mxu0 0.0
    %295 = vmatprep.subr.mxu0 0.0
    %296 = vmatpush2.msra.mxu0 0.0
    %297 = vmatprep.subr.mxu0 0.0
    %298 = vmatpush2.msra.mxu0 0.0
    %299 = vmatprep.subr.mxu0 0.0
    %300 = vmatpush2.msra.mxu0 0.0
    %301 = vmatprep.subr.mxu0 0.0
    %302 = vmatpush2.msra.mxu0 0.0
    %303 = vmatprep.subr.mxu0 0.0
    %304 = vmatpush2.msra.mxu0 0.0
    %305 = vmatprep.subr.mxu0 0.0
    %306 = vmatpush2.msra.mxu0 0.0
    %307 = vmatprep.subr.mxu0 0.0
    %308 = vmatpush2.msra.mxu0 0.0
    %309 = vmatprep.subr.mxu0 0.0
    %310 = vmatpush2.msra.mxu0 0.0
    %311 = vmatprep.subr.mxu0 0.0
    %312 = vmatpush2.msra.mxu0 0.0
    %313 = vmatprep.subr.mxu0 0.0
    %314 = vmatpush2.msra.mxu0 0.0
    %315 = vmatprep.subr.mxu0 0.0
    %316 = vmatpush2.msra.mxu0 0.0
    %317 = vmatprep.subr.mxu0 0.0
    %318 = vmatpush2.msra.mxu0 0.0
    %319 = vmatprep.subr.mxu0 0.0
    %320 = vmatpush2.msra.mxu0 0.0
    %321 = vmatprep.subr.mxu0 0.0
    %322 = vmatpush2.msra.mxu0 0.0
    %323 = vmatprep.subr.mxu0 0.0
    %324 = vmatpush2.msra.mxu0 0.0
    %325 = vmatprep.mubr.f32.mxu0 0.0
    %326 = vmatmul.mubr.f32.gmra.mxu0 %v259
    %v327 = vpop.f32.mrf.mxu0
    %v328 = vadd.f32 0.0, %v327
    %v329 = vpop.f32.mrf.mxu0
    %330 = vdwg.mxu0
    %v331 = vadd.f32 %v238, %v328
    %v332 = vmul.f32 %v331, 0.5
    %v333 = vtanh.pop %v332
    %v334 = vadd.f32 %v333, 1.0
    %v335 = vmul.f32 %v334, 0.5
    %v336 = vmul.f32 %v335, 2.0
    %v337 = vsub.f32 %v336, 1.0
    %v338 = vmul.f32 %v335, 0.0
    %340 = vrot.lane.b32.xlu0 %v337, 64
    %v341 = vpop.permute.xlu0 %340
    %v343 = vmul.f32 %v335, %v341
    %345 = vrot.lane.b32.xlu0 %v343, 32
    %v346 = vpop.permute.xlu0 %345
    %v348 = vadd.f32 %v338, %v346
    %v349 = vtanh.pop %v348
    %351 = vrot.lane.b32.xlu0 %v349, 64
    %v352 = vpop.permute.xlu0 %351
    %v354 = vmul.f32 %v335, %v352
    %vm355 = vcmp.gt.s32.totalorder %v256, 0
    %v356 = vsel %vm355, 1, 0
    %357 = vset.pattern.permute.xlu0 0
    %358 = vperm.xlu0 %357, %v356
    %v359 = vpop.permute.xlu0 %358
    %vm360 = vcmp.eq.s32.totalorder %v359, 1
    %v361 = vsel %vm360, %v354, 0.0
    %v362 = vsel %vm360, %v348, 0.0
    %363 = vmatprep.subr.mxu0 0.0
    %364 = vmatpush1.msra.mxu0 0.0
    %365 = vmatprep.subr.mxu0 0.0
    %366 = vmatpush1.msra.mxu0 0.0
    %367 = vmatprep.subr.mxu0 0.0
    %368 = vmatpush1.msra.mxu0 0.0
    %369 = vmatprep.subr.mxu0 0.0
    %370 = vmatpush1.msra.mxu0 0.0
    %371 = vmatprep.subr.mxu0 0.0
    %372 = vmatpush1.msra.mxu0 0.0
    %373 = vmatprep.subr.mxu0 0.0
    %374 = vmatpush1.msra.mxu0 0.0
    %375 = vmatprep.subr.mxu0 0.0
    %376 = vmatpush1.msra.mxu0 0.0
    %377 = vmatprep.subr.mxu0 0.0
    %378 = vmatpush1.msra.mxu0 0.0
    %379 = vmatprep.subr.mxu0 0.0
    %380 = vmatpush1.msra.mxu0 0.0
    %381 = vmatprep.subr.mxu0 0.0
    %382 = vmatpush1.msra.mxu0 0.0
    %383 = vmatprep.subr.mxu0 0.0
    %384 = vmatpush1.msra.mxu0 0.0
    %385 = vmatprep.subr.mxu0 0.0
    %386 = vmatpush1.msra.mxu0 0.0
    %387 = vmatprep.subr.mxu0 0.0
    %388 = vmatpush1.msra.mxu0 %v255
    %389 = vmatprep.subr.mxu0 0.0
    %390 = vmatpush1.msra.mxu0 %v254
    %391 = vmatprep.subr.mxu0 0.0
    %392 = vmatpush1.msra.mxu0 %v253
    %393 = vmatprep.subr.mxu0 0.0
    %394 = vmatpush1.msra.mxu0 %v252
    %395 = vmatprep.subr.mxu0 0.0
    %396 = vmatpush2.msra.mxu0 0.0
    %397 = vmatprep.subr.mxu0 0.0
    %398 = vmatpush2.msra.mxu0 0.0
    %399 = vmatprep.subr.mxu0 0.0
    %400 = vmatpush2.msra.mxu0 0.0
    %401 = vmatprep.subr.mxu0 0.0
    %402 = vmatpush2.msra.mxu0 0.0
    %403 = vmatprep.subr.mxu0 0.0
    %404 = vmatpush2.msra.mxu0 0.0
    %405 = vmatprep.subr.mxu0 0.0
    %406 = vmatpush2.msra.mxu0 0.0
    %407 = vmatprep.subr.mxu0 0.0
    %408 = vmatpush2.msra.mxu0 0.0
    %409 = vmatprep.subr.mxu0 0.0
    %410 = vmatpush2.msra.mxu0 0.0
    %411 = vmatprep.subr.mxu0 0.0
    %412 = vmatpush2.msra.mxu0 0.0
    %413 = vmatprep.subr.mxu0 0.0
    %414 = vmatpush2.msra.mxu0 0.0
    %415 = vmatprep.subr.mxu0 0.0
    %416 = vmatpush2.msra.mxu0 0.0
    %417 = vmatprep.subr.mxu0 0.0
    %418 = vmatpush2.msra.mxu0 0.0
    %419 = vmatprep.subr.mxu0 0.0
    %420 = vmatpush2.msra.mxu0 0.0
    %421 = vmatprep.subr.mxu0 0.0
    %422 = vmatpush2.msra.mxu0 0.0
    %423 = vmatprep.subr.mxu0 0.0
    %424 = vmatpush2.msra.mxu0 0.0
    %425 = vmatprep.subr.mxu0 0.0
    %426 = vmatpush2.msra.mxu0 0.0
    %427 = vmatprep.mubr.f32.mxu0 0.0
    %428 = vmatmul.mubr.f32.gmra.mxu0 %v259
    %v429 = vpop.f32.mrf.mxu0
    %v430 = vadd.f32 0.0, %v429
    %v431 = vpop.f32.mrf.mxu0
    %432 = vdwg.mxu0
    %v434 = vrot.slane %v430, 2
    %v436 = vadd.f32 %v246, %v434
    %v437 = vmul.f32 %v436, 0.5
    %v438 = vtanh.pop %v437
    %v439 = vadd.f32 %v438, 1.0
    %v440 = vmul.f32 %v439, 0.5
    %v441 = vmul.f32 %v440, 2.0
    %v442 = vsub.f32 %v441, 1.0
    %v443 = vmul.f32 %v440, 0.0
    %445 = vrot.lane.b32.xlu0 %v442, 64
    %v446 = vpop.permute.xlu0 %445
    %v448 = vmul.f32 %v440, %v446
    %450 = vrot.lane.b32.xlu0 %v448, 32
    %v451 = vpop.permute.xlu0 %450
    %v453 = vadd.f32 %v443, %v451
    %v454 = vtanh.pop %v453
    %456 = vrot.lane.b32.xlu0 %v454, 64
    %v457 = vpop.permute.xlu0 %456
    %v459 = vmul.f32 %v440, %v457
    %vm460 = vcmp.gt.s32.totalorder %v256, 7
    %v461 = vsel %vm460, 1, 0
    %462 = vset.pattern.permute.xlu0 0
    %463 = vperm.xlu0 %462, %v461
    %v464 = vpop.permute.xlu0 %463
    %vm465 = vcmp.eq.s32.totalorder %v464, 1
    %v467 = vrot.slane %v459, 6
    %468 = vrot.lane.b32.xlu0 %v467, 32
    %v469 = vpop.permute.xlu0 %468
    %v471 = vsel %vm465, %v469, 0.0
    %v473 = vrot.slane %v453, 6
    %474 = vrot.lane.b32.xlu0 %v473, 96
    %v475 = vpop.permute.xlu0 %474
    %v477 = vsel %vm465, %v475, 0.0
    %479 = vrot.lane.b32.xlu0 %v361, 32
    %v480 = vpop.permute.xlu0 %479
    %v481 = vsel %vm257, %v480, 0
    %483 = vmatprep.subr.mxu0 0.0
    %484 = vmatpush1.msra.mxu0 0.0
    %485 = vmatprep.subr.mxu0 0.0
    %486 = vmatpush1.msra.mxu0 0.0
    %487 = vmatprep.subr.mxu0 0.0
    %488 = vmatpush1.msra.mxu0 0.0
    %489 = vmatprep.subr.mxu0 0.0
    %490 = vmatpush1.msra.mxu0 0.0
    %491 = vmatprep.subr.mxu0 0.0
    %492 = vmatpush1.msra.mxu0 0.0
    %493 = vmatprep.subr.mxu0 0.0
    %494 = vmatpush1.msra.mxu0 0.0
    %495 = vmatprep.subr.mxu0 0.0
    %496 = vmatpush1.msra.mxu0 0.0
    %497 = vmatprep.subr.mxu0 0.0
    %498 = vmatpush1.msra.mxu0 0.0
    %499 = vmatprep.subr.mxu0 0.0
    %500 = vmatpush1.msra.mxu0 0.0
    %501 = vmatprep.subr.mxu0 0.0
    %502 = vmatpush1.msra.mxu0 0.0
    %503 = vmatprep.subr.mxu0 0.0
    %504 = vmatpush1.msra.mxu0 0.0
    %505 = vmatprep.subr.mxu0 0.0
    %506 = vmatpush1.msra.mxu0 0.0
    %507 = vmatprep.subr.mxu0 0.0
    %508 = vmatpush1.msra.mxu0 %v251
    %509 = vmatprep.subr.mxu0 0.0
    %510 = vmatpush1.msra.mxu0 %v250
    %511 = vmatprep.subr.mxu0 0.0
    %512 = vmatpush1.msra.mxu0 %v249
    %513 = vmatprep.subr.mxu0 0.0
    %514 = vmatpush1.msra.mxu0 %v248
    %515 = vmatprep.subr.mxu0 0.0
    %516 = vmatpush2.msra.mxu0 0.0
    %517 = vmatprep.subr.mxu0 0.0
    %518 = vmatpush2.msra.mxu0 0.0
    %519 = vmatprep.subr.mxu0 0.0
    %520 = vmatpush2.msra.mxu0 0.0
    %521 = vmatprep.subr.mxu0 0.0
    %522 = vmatpush2.msra.mxu0 0.0
    %523 = vmatprep.subr.mxu0 0.0
    %524 = vmatpush2.msra.mxu0 0.0
    %525 = vmatprep.subr.mxu0 0.0
    %526 = vmatpush2.msra.mxu0 0.0
    %527 = vmatprep.subr.mxu0 0.0
    %528 = vmatpush2.msra.mxu0 0.0
    %529 = vmatprep.subr.mxu0 0.0
    %530 = vmatpush2.msra.mxu0 0.0
    %531 = vmatprep.subr.mxu0 0.0
    %532 = vmatpush2.msra.mxu0 0.0
    %533 = vmatprep.subr.mxu0 0.0
    %534 = vmatpush2.msra.mxu0 0.0
    %535 = vmatprep.subr.mxu0 0.0
    %536 = vmatpush2.msra.mxu0 0.0
    %537 = vmatprep.subr.mxu0 0.0
    %538 = vmatpush2.msra.mxu0 0.0
    %539 = vmatprep.subr.mxu0 0.0
    %540 = vmatpush2.msra.mxu0 0.0
    %541 = vmatprep.subr.mxu0 0.0
    %542 = vmatpush2.msra.mxu0 0.0
    %543 = vmatprep.subr.mxu0 0.0
    %544 = vmatpush2.msra.mxu0 0.0
    %545 = vmatprep.subr.mxu0 0.0
    %546 = vmatpush2.msra.mxu0 0.0
    %547 = vmatprep.mubr.f32.mxu0 0.0
    %548 = vmatmul.mubr.f32.gmra.mxu0 %v481
    %v549 = vpop.f32.mrf.mxu0
    %v550 = vadd.f32 0.0, %v549
    %v551 = vpop.f32.mrf.mxu0
    %552 = vdwg.mxu0
    %v554 = vrot.slane %v550, 6
    %v556 = vadd.f32 %v238, %v554
    %v557 = vmul.f32 %v556, 0.5
    %v558 = vtanh.pop %v557
    %v559 = vadd.f32 %v558, 1.0
    %v560 = vmul.f32 %v559, 0.5
    %v561 = vmul.f32 %v560, 2.0
    %v562 = vsub.f32 %v561, 1.0
    %v564 = vrot.slane %v362, 6
    %v566 = vmul.f32 %v560, %v564
    %568 = vrot.lane.b32.xlu0 %v562, 64
    %v569 = vpop.permute.xlu0 %568
    %v571 = vmul.f32 %v560, %v569
    %573 = vrot.lane.b32.xlu0 %v571, 32
    %v574 = vpop.permute.xlu0 %573
    %v576 = vadd.f32 %v566, %v574
    %v577 = vtanh.pop %v576
    %579 = vrot.lane.b32.xlu0 %v577, 64
    %v580 = vpop.permute.xlu0 %579
    %v582 = vmul.f32 %v560, %v580
    %vm583 = vcmp.gt.s32.totalorder %v256, 1
    %v584 = vsel %vm583, 1, 0
    %585 = vset.pattern.permute.xlu0 0
    %586 = vperm.xlu0 %585, %v584
    %v587 = vpop.permute.xlu0 %586
    %vm588 = vcmp.eq.s32.totalorder %v587, 1
    %v590 = vrot.slane %v582, 2
    %591 = vrot.lane.b32.xlu0 %v590, 32
    %v592 = vpop.permute.xlu0 %591
    %v595 = vsel %vm588, %v592, %v480
    %v597 = vrot.slane %v576, 2
    %598 = vrot.lane.b32.xlu0 %v597, 96
    %v599 = vpop.permute.xlu0 %598
    %601 = vrot.lane.b32.xlu0 %v362, 96
    %v602 = vpop.permute.xlu0 %601
    %v604 = vsel %vm588, %v599, %v602
    %v605 = vsel %vm588, %v592, 0.0
    %v607 = vsel %vm257, %v471, 0
    %609 = vmatprep.subr.mxu0 0.0
    %610 = vmatpush1.msra.mxu0 0.0
    %611 = vmatprep.subr.mxu0 0.0
    %612 = vmatpush1.msra.mxu0 0.0
    %613 = vmatprep.subr.mxu0 0.0
    %614 = vmatpush1.msra.mxu0 0.0
    %615 = vmatprep.subr.mxu0 0.0
    %616 = vmatpush1.msra.mxu0 0.0
    %617 = vmatprep.subr.mxu0 0.0
    %618 = vmatpush1.msra.mxu0 0.0
    %619 = vmatprep.subr.mxu0 0.0
    %620 = vmatpush1.msra.mxu0 0.0
    %621 = vmatprep.subr.mxu0 0.0
    %622 = vmatpush1.msra.mxu0 0.0
    %623 = vmatprep.subr.mxu0 0.0
    %624 = vmatpush1.msra.mxu0 0.0
    %625 = vmatprep.subr.mxu0 0.0
    %626 = vmatpush1.msra.mxu0 0.0
    %627 = vmatprep.subr.mxu0 0.0
    %628 = vmatpush1.msra.mxu0 0.0
    %629 = vmatprep.subr.mxu0 0.0
    %630 = vmatpush1.msra.mxu0 0.0
    %631 = vmatprep.subr.mxu0 0.0
    %632 = vmatpush1.msra.mxu0 0.0
    %633 = vmatprep.subr.mxu0 0.0
    %634 = vmatpush1.msra.mxu0 %v255
    %635 = vmatprep.subr.mxu0 0.0
    %636 = vmatpush1.msra.mxu0 %v254
    %637 = vmatprep.subr.mxu0 0.0
    %638 = vmatpush1.msra.mxu0 %v253
    %639 = vmatprep.subr.mxu0 0.0
    %640 = vmatpush1.msra.mxu0 %v252
    %641 = vmatprep.subr.mxu0 0.0
    %642 = vmatpush2.msra.mxu0 0.0
    %643 = vmatprep.subr.mxu0 0.0
    %644 = vmatpush2.msra.mxu0 0.0
    %645 = vmatprep.subr.mxu0 0.0
    %646 = vmatpush2.msra.mxu0 0.0
    %647 = vmatprep.subr.mxu0 0.0
    %648 = vmatpush2.msra.mxu0 0.0
    %649 = vmatprep.subr.mxu0 0.0
    %650 = vmatpush2.msra.mxu0 0.0
    %651 = vmatprep.subr.mxu0 0.0
    %652 = vmatpush2.msra.mxu0 0.0
    %653 = vmatprep.subr.mxu0 0.0
    %654 = vmatpush2.msra.mxu0 0.0
    %655 = vmatprep.subr.mxu0 0.0
    %656 = vmatpush2.msra.mxu0 0.0
    %657 = vmatprep.subr.mxu0 0.0
    %658 = vmatpush2.msra.mxu0 0.0
    %659 = vmatprep.subr.mxu0 0.0
    %660 = vmatpush2.msra.mxu0 0.0
    %661 = vmatprep.subr.mxu0 0.0
    %662 = vmatpush2.msra.mxu0 0.0
    %663 = vmatprep.subr.mxu0 0.0
    %664 = vmatpush2.msra.mxu0 0.0
    %665 = vmatprep.subr.mxu0 0.0
    %666 = vmatpush2.msra.mxu0 0.0
    %667 = vmatprep.subr.mxu0 0.0
    %668 = vmatpush2.msra.mxu0 0.0
    %669 = vmatprep.subr.mxu0 0.0
    %670 = vmatpush2.msra.mxu0 0.0
    %671 = vmatprep.subr.mxu0 0.0
    %672 = vmatpush2.msra.mxu0 0.0
    %673 = vmatprep.mubr.f32.mxu0 0.0
    %674 = vmatmul.mubr.f32.gmra.mxu0 %v607
    %v675 = vpop.f32.mrf.mxu0
    %v676 = vadd.f32 0.0, %v675
    %v677 = vpop.f32.mrf.mxu0
    %678 = vdwg.mxu0
    %v680 = vrot.slane %v676, 4
    %v682 = vadd.f32 %v246, %v680
    %v683 = vmul.f32 %v682, 0.5
    %v684 = vtanh.pop %v683
    %v685 = vadd.f32 %v684, 1.0
    %v686 = vmul.f32 %v685, 0.5
    %v687 = vmul.f32 %v686, 2.0
    %v688 = vsub.f32 %v687, 1.0
    %v690 = vrot.slane %v477, 4
    %691 = vrot.lane.b32.xlu0 %v690, 32
    %v692 = vpop.permute.xlu0 %691
    %v694 = vmul.f32 %v686, %v692
    %696 = vrot.lane.b32.xlu0 %v688, 64
    %v697 = vpop.permute.xlu0 %696
    %v699 = vmul.f32 %v686, %v697
    %701 = vrot.lane.b32.xlu0 %v699, 32
    %v702 = vpop.permute.xlu0 %701
    %v704 = vadd.f32 %v694, %v702
    %v705 = vtanh.pop %v704
    %707 = vrot.lane.b32.xlu0 %v705, 64
    %v708 = vpop.permute.xlu0 %707
    %v710 = vmul.f32 %v686, %v708
    %vm711 = vcmp.gt.s32.totalorder %v256, 6
    %v712 = vsel %vm711, 1, 0
    %713 = vset.pattern.permute.xlu0 0
    %714 = vperm.xlu0 %713, %v712
    %v715 = vpop.permute.xlu0 %714
    %vm716 = vcmp.eq.s32.totalorder %v715, 1
    %v718 = vrot.slane %v710, 4
    %719 = vrot.lane.b32.xlu0 %v718, 32
    %v720 = vpop.permute.xlu0 %719
    %v722 = vsel %vm716, %v720, %v471
    %v724 = vrot.slane %v704, 4
    %725 = vrot.lane.b32.xlu0 %v724, 96
    %v726 = vpop.permute.xlu0 %725
    %v728 = vsel %vm716, %v726, %v477
    %v729 = vsel %vm716, %v720, 0.0
    %v731 = vsel %vm257, %v595, 0
    %733 = vmatprep.subr.mxu0 0.0
    %734 = vmatpush1.msra.mxu0 0.0
    %735 = vmatprep.subr.mxu0 0.0
    %736 = vmatpush1.msra.mxu0 0.0
    %737 = vmatprep.subr.mxu0 0.0
    %738 = vmatpush1.msra.mxu0 0.0
    %739 = vmatprep.subr.mxu0 0.0
    %740 = vmatpush1.msra.mxu0 0.0
    %741 = vmatprep.subr.mxu0 0.0
    %742 = vmatpush1.msra.mxu0 0.0
    %743 = vmatprep.subr.mxu0 0.0
    %744 = vmatpush1.msra.mxu0 0.0
    %745 = vmatprep.subr.mxu0 0.0
    %746 = vmatpush1.msra.mxu0 0.0
    %747 = vmatprep.subr.mxu0 0.0
    %748 = vmatpush1.msra.mxu0 0.0
    %749 = vmatprep.subr.mxu0 0.0
    %750 = vmatpush1.msra.mxu0 0.0
    %751 = vmatprep.subr.mxu0 0.0
    %752 = vmatpush1.msra.mxu0 0.0
    %753 = vmatprep.subr.mxu0 0.0
    %754 = vmatpush1.msra.mxu0 0.0
    %755 = vmatprep.subr.mxu0 0.0
    %756 = vmatpush1.msra.mxu0 0.0
    %757 = vmatprep.subr.mxu0 0.0
    %758 = vmatpush1.msra.mxu0 %v251
    %759 = vmatprep.subr.mxu0 0.0
    %760 = vmatpush1.msra.mxu0 %v250
    %761 = vmatprep.subr.mxu0 0.0
    %762 = vmatpush1.msra.mxu0 %v249
    %763 = vmatprep.subr.mxu0 0.0
    %764 = vmatpush1.msra.mxu0 %v248
    %765 = vmatprep.subr.mxu0 0.0
    %766 = vmatpush2.msra.mxu0 0.0
    %767 = vmatprep.subr.mxu0 0.0
    %768 = vmatpush2.msra.mxu0 0.0
    %769 = vmatprep.subr.mxu0 0.0
    %770 = vmatpush2.msra.mxu0 0.0
    %771 = vmatprep.subr.mxu0 0.0
    %772 = vmatpush2.msra.mxu0 0.0
    %773 = vmatprep.subr.mxu0 0.0
    %774 = vmatpush2.msra.mxu0 0.0
    %775 = vmatprep.subr.mxu0 0.0
    %776 = vmatpush2.msra.mxu0 0.0
    %777 = vmatprep.subr.mxu0 0.0
    %778 = vmatpush2.msra.mxu0 0.0
    %779 = vmatprep.subr.mxu0 0.0
    %780 = vmatpush2.msra.mxu0 0.0
    %781 = vmatprep.subr.mxu0 0.0
    %782 = vmatpush2.msra.mxu0 0.0
    %783 = vmatprep.subr.mxu0 0.0
    %784 = vmatpush2.msra.mxu0 0.0
    %785 = vmatprep.subr.mxu0 0.0
    %786 = vmatpush2.msra.mxu0 0.0
    %787 = vmatprep.subr.mxu0 0.0
    %788 = vmatpush2.msra.mxu0 0.0
    %789 = vmatprep.subr.mxu0 0.0
    %790 = vmatpush2.msra.mxu0 0.0
    %791 = vmatprep.subr.mxu0 0.0
    %792 = vmatpush2.msra.mxu0 0.0
    %793 = vmatprep.subr.mxu0 0.0
    %794 = vmatpush2.msra.mxu0 0.0
    %795 = vmatprep.subr.mxu0 0.0
    %796 = vmatpush2.msra.mxu0 0.0
    %797 = vmatprep.mubr.f32.mxu0 0.0
    %798 = vmatmul.mubr.f32.gmra.mxu0 %v731
    %v799 = vpop.f32.mrf.mxu0
    %v800 = vadd.f32 0.0, %v799
    %v801 = vpop.f32.mrf.mxu0
    %802 = vdwg.mxu0
    %v804 = vrot.slane %v800, 4
    %v806 = vadd.f32 %v238, %v804
    %v807 = vmul.f32 %v806, 0.5
    %v808 = vtanh.pop %v807
    %v809 = vadd.f32 %v808, 1.0
    %v810 = vmul.f32 %v809, 0.5
    %v811 = vmul.f32 %v810, 2.0
    %v812 = vsub.f32 %v811, 1.0
    %v814 = vrot.slane %v604, 4
    %815 = vrot.lane.b32.xlu0 %v814, 32
    %v816 = vpop.permute.xlu0 %815
    %v818 = vmul.f32 %v810, %v816
    %820 = vrot.lane.b32.xlu0 %v812, 64
    %v821 = vpop.permute.xlu0 %820
    %v823 = vmul.f32 %v810, %v821
    %825 = vrot.lane.b32.xlu0 %v823, 32
    %v826 = vpop.permute.xlu0 %825
    %v828 = vadd.f32 %v818, %v826
    %v829 = vtanh.pop %v828
    %831 = vrot.lane.b32.xlu0 %v829, 64
    %v832 = vpop.permute.xlu0 %831
    %v834 = vmul.f32 %v810, %v832
    %vm835 = vcmp.gt.s32.totalorder %v256, 2
    %v836 = vsel %vm835, 1, 0
    %837 = vset.pattern.permute.xlu0 0
    %838 = vperm.xlu0 %837, %v836
    %v839 = vpop.permute.xlu0 %838
    %vm840 = vcmp.eq.s32.totalorder %v839, 1
    %v842 = vrot.slane %v834, 4
    %843 = vrot.lane.b32.xlu0 %v842, 32
    %v844 = vpop.permute.xlu0 %843
    %v846 = vsel %vm840, %v844, %v595
    %v848 = vrot.slane %v828, 4
    %849 = vrot.lane.b32.xlu0 %v848, 96
    %v850 = vpop.permute.xlu0 %849
    %v852 = vsel %vm840, %v850, %v604
    %v853 = vsel %vm840, %v844, 0.0
    %v855 = vsel %vm257, %v722, 0
    %857 = vmatprep.subr.mxu0 0.0
    %858 = vmatpush1.msra.mxu0 0.0
    %859 = vmatprep.subr.mxu0 0.0
    %860 = vmatpush1.msra.mxu0 0.0
    %861 = vmatprep.subr.mxu0 0.0
    %862 = vmatpush1.msra.mxu0 0.0
    %863 = vmatprep.subr.mxu0 0.0
    %864 = vmatpush1.msra.mxu0 0.0
    %865 = vmatprep.subr.mxu0 0.0
    %866 = vmatpush1.msra.mxu0 0.0
    %867 = vmatprep.subr.mxu0 0.0
    %868 = vmatpush1.msra.mxu0 0.0
    %869 = vmatprep.subr.mxu0 0.0
    %870 = vmatpush1.msra.mxu0 0.0
    %871 = vmatprep.subr.mxu0 0.0
    %872 = vmatpush1.msra.mxu0 0.0
    %873 = vmatprep.subr.mxu0 0.0
    %874 = vmatpush1.msra.mxu0 0.0
    %875 = vmatprep.subr.mxu0 0.0
    %876 = vmatpush1.msra.mxu0 0.0
    %877 = vmatprep.subr.mxu0 0.0
    %878 = vmatpush1.msra.mxu0 0.0
    %879 = vmatprep.subr.mxu0 0.0
    %880 = vmatpush1.msra.mxu0 0.0
    %881 = vmatprep.subr.mxu0 0.0
    %882 = vmatpush1.msra.mxu0 %v255
    %883 = vmatprep.subr.mxu0 0.0
    %884 = vmatpush1.msra.mxu0 %v254
    %885 = vmatprep.subr.mxu0 0.0
    %886 = vmatpush1.msra.mxu0 %v253
    %887 = vmatprep.subr.mxu0 0.0
    %888 = vmatpush1.msra.mxu0 %v252
    %889 = vmatprep.subr.mxu0 0.0
    %890 = vmatpush2.msra.mxu0 0.0
    %891 = vmatprep.subr.mxu0 0.0
    %892 = vmatpush2.msra.mxu0 0.0
    %893 = vmatprep.subr.mxu0 0.0
    %894 = vmatpush2.msra.mxu0 0.0
    %895 = vmatprep.subr.mxu0 0.0
    %896 = vmatpush2.msra.mxu0 0.0
    %897 = vmatprep.subr.mxu0 0.0
    %898 = vmatpush2.msra.mxu0 0.0
    %899 = vmatprep.subr.mxu0 0.0
    %900 = vmatpush2.msra.mxu0 0.0
    %901 = vmatprep.subr.mxu0 0.0
    %902 = vmatpush2.msra.mxu0 0.0
    %903 = vmatprep.subr.mxu0 0.0
    %904 = vmatpush2.msra.mxu0 0.0
    %905 = vmatprep.subr.mxu0 0.0
    %906 = vmatpush2.msra.mxu0 0.0
    %907 = vmatprep.subr.mxu0 0.0
    %908 = vmatpush2.msra.mxu0 0.0
    %909 = vmatprep.subr.mxu0 0.0
    %910 = vmatpush2.msra.mxu0 0.0
    %911 = vmatprep.subr.mxu0 0.0
    %912 = vmatpush2.msra.mxu0 0.0
    %913 = vmatprep.subr.mxu0 0.0
    %914 = vmatpush2.msra.mxu0 0.0
    %915 = vmatprep.subr.mxu0 0.0
    %916 = vmatpush2.msra.mxu0 0.0
    %917 = vmatprep.subr.mxu0 0.0
    %918 = vmatpush2.msra.mxu0 0.0
    %919 = vmatprep.subr.mxu0 0.0
    %920 = vmatpush2.msra.mxu0 0.0
    %921 = vmatprep.mubr.f32.mxu0 0.0
    %922 = vmatmul.mubr.f32.gmra.mxu0 %v855
    %v923 = vpop.f32.mrf.mxu0
    %v924 = vadd.f32 0.0, %v923
    %v925 = vpop.f32.mrf.mxu0
    %926 = vdwg.mxu0
    %v928 = vrot.slane %v924, 6
    %v930 = vadd.f32 %v246, %v928
    %v931 = vmul.f32 %v930, 0.5
    %v932 = vtanh.pop %v931
    %v933 = vadd.f32 %v932, 1.0
    %v934 = vmul.f32 %v933, 0.5
    %v935 = vmul.f32 %v934, 2.0
    %v936 = vsub.f32 %v935, 1.0
    %v938 = vrot.slane %v728, 6
    %939 = vrot.lane.b32.xlu0 %v938, 32
    %v940 = vpop.permute.xlu0 %939
    %v942 = vmul.f32 %v934, %v940
    %944 = vrot.lane.b32.xlu0 %v936, 64
    %v945 = vpop.permute.xlu0 %944
    %v947 = vmul.f32 %v934, %v945
    %949 = vrot.lane.b32.xlu0 %v947, 32
    %v950 = vpop.permute.xlu0 %949
    %v952 = vadd.f32 %v942, %v950
    %v953 = vtanh.pop %v952
    %955 = vrot.lane.b32.xlu0 %v953, 64
    %v956 = vpop.permute.xlu0 %955
    %v958 = vmul.f32 %v934, %v956
    %vm959 = vcmp.gt.s32.totalorder %v256, 5
    %v960 = vsel %vm959, 1, 0
    %961 = vset.pattern.permute.xlu0 0
    %962 = vperm.xlu0 %961, %v960
    %v963 = vpop.permute.xlu0 %962
    %vm964 = vcmp.eq.s32.totalorder %v963, 1
    %v966 = vrot.slane %v958, 2
    %967 = vrot.lane.b32.xlu0 %v966, 32
    %v968 = vpop.permute.xlu0 %967
    %v970 = vsel %vm964, %v968, %v722
    %v972 = vrot.slane %v952, 2
    %973 = vrot.lane.b32.xlu0 %v972, 96
    %v974 = vpop.permute.xlu0 %973
    %v976 = vsel %vm964, %v974, %v728
    %v977 = vsel %vm964, %v968, 0.0
    %v979 = vsel %vm257, %v846, 0
    %981 = vmatprep.subr.mxu0 0.0
    %982 = vmatpush1.msra.mxu0 0.0
    %983 = vmatprep.subr.mxu0 0.0
    %984 = vmatpush1.msra.mxu0 0.0
    %985 = vmatprep.subr.mxu0 0.0
    %986 = vmatpush1.msra.mxu0 0.0
    %987 = vmatprep.subr.mxu0 0.0
    %988 = vmatpush1.msra.mxu0 0.0
    %989 = vmatprep.subr.mxu0 0.0
    %990 = vmatpush1.msra.mxu0 0.0
    %991 = vmatprep.subr.mxu0 0.0
    %992 = vmatpush1.msra.mxu0 0.0
    %993 = vmatprep.subr.mxu0 0.0
    %994 = vmatpush1.msra.mxu0 0.0
    %995 = vmatprep.subr.mxu0 0.0
    %996 = vmatpush1.msra.mxu0 0.0
    %997 = vmatprep.subr.mxu0 0.0
    %998 = vmatpush1.msra.mxu0 0.0
    %999 = vmatprep.subr.mxu0 0.0
    %1000 = vmatpush1.msra.mxu0 0.0
    %1001 = vmatprep.subr.mxu0 0.0
    %1002 = vmatpush1.msra.mxu0 0.0
    %1003 = vmatprep.subr.mxu0 0.0
    %1004 = vmatpush1.msra.mxu0 0.0
    %1005 = vmatprep.subr.mxu0 0.0
    %1006 = vmatpush1.msra.mxu0 %v251
    %1007 = vmatprep.subr.mxu0 0.0
    %1008 = vmatpush1.msra.mxu0 %v250
    %1009 = vmatprep.subr.mxu0 0.0
    %1010 = vmatpush1.msra.mxu0 %v249
    %1011 = vmatprep.subr.mxu0 0.0
    %1012 = vmatpush1.msra.mxu0 %v248
    %1013 = vmatprep.subr.mxu0 0.0
    %1014 = vmatpush2.msra.mxu0 0.0
    %1015 = vmatprep.subr.mxu0 0.0
    %1016 = vmatpush2.msra.mxu0 0.0
    %1017 = vmatprep.subr.mxu0 0.0
    %1018 = vmatpush2.msra.mxu0 0.0
    %1019 = vmatprep.subr.mxu0 0.0
    %1020 = vmatpush2.msra.mxu0 0.0
    %1021 = vmatprep.subr.mxu0 0.0
    %1022 = vmatpush2.msra.mxu0 0.0
    %1023 = vmatprep.subr.mxu0 0.0
    %1024 = vmatpush2.msra.mxu0 0.0
    %1025 = vmatprep.subr.mxu0 0.0
    %1026 = vmatpush2.msra.mxu0 0.0
    %1027 = vmatprep.subr.mxu0 0.0
    %1028 = vmatpush2.msra.mxu0 0.0
    %1029 = vmatprep.subr.mxu0 0.0
    %1030 = vmatpush2.msra.mxu0 0.0
    %1031 = vmatprep.subr.mxu0 0.0
    %1032 = vmatpush2.msra.mxu0 0.0
    %1033 = vmatprep.subr.mxu0 0.0
    %1034 = vmatpush2.msra.mxu0 0.0
    %1035 = vmatprep.subr.mxu0 0.0
    %1036 = vmatpush2.msra.mxu0 0.0
    %1037 = vmatprep.subr.mxu0 0.0
    %1038 = vmatpush2.msra.mxu0 0.0
    %1039 = vmatprep.subr.mxu0 0.0
    %1040 = vmatpush2.msra.mxu0 0.0
    %1041 = vmatprep.subr.mxu0 0.0
    %1042 = vmatpush2.msra.mxu0 0.0
    %1043 = vmatprep.subr.mxu0 0.0
    %1044 = vmatpush2.msra.mxu0 0.0
    %1045 = vmatprep.mubr.f32.mxu0 0.0
    %1046 = vmatmul.mubr.f32.gmra.mxu0 %v979
    %v1047 = vpop.f32.mrf.mxu0
    %v1048 = vadd.f32 0.0, %v1047
    %v1049 = vpop.f32.mrf.mxu0
    %1050 = vdwg.mxu0
    %v1052 = vrot.slane %v1048, 2
    %v1054 = vadd.f32 %v238, %v1052
    %v1055 = vmul.f32 %v1054, 0.5
    %v1056 = vtanh.pop %v1055
    %v1057 = vadd.f32 %v1056, 1.0
    %v1058 = vmul.f32 %v1057, 0.5
    %v1059 = vmul.f32 %v1058, 2.0
    %v1060 = vsub.f32 %v1059, 1.0
    %v1062 = vrot.slane %v852, 2
    %1063 = vrot.lane.b32.xlu0 %v1062, 32
    %v1064 = vpop.permute.xlu0 %1063
    %v1066 = vmul.f32 %v1058, %v1064
    %1068 = vrot.lane.b32.xlu0 %v1060, 64
    %v1069 = vpop.permute.xlu0 %1068
    %v1071 = vmul.f32 %v1058, %v1069
    %1073 = vrot.lane.b32.xlu0 %v1071, 32
    %v1074 = vpop.permute.xlu0 %1073
    %v1076 = vadd.f32 %v1066, %v1074
    %v1077 = vtanh.pop %v1076
    %1079 = vrot.lane.b32.xlu0 %v1077, 64
    %v1080 = vpop.permute.xlu0 %1079
    %v1082 = vmul.f32 %v1058, %v1080
    %vm1083 = vcmp.gt.s32.totalorder %v256, 3
    %v1084 = vsel %vm1083, 1, 0
    %1085 = vset.pattern.permute.xlu0 0
    %1086 = vperm.xlu0 %1085, %v1084
    %v1087 = vpop.permute.xlu0 %1086
    %vm1088 = vcmp.eq.s32.totalorder %v1087, 1
    %v1090 = vrot.slane %v1082, 6
    %1091 = vrot.lane.b32.xlu0 %v1090, 32
    %v1092 = vpop.permute.xlu0 %1091
    %v1094 = vsel %vm1088, %v1092, %v846
    %v1096 = vrot.slane %v1076, 6
    %1097 = vrot.lane.b32.xlu0 %v1096, 96
    %v1098 = vpop.permute.xlu0 %1097
    %v1100 = vsel %vm1088, %v1098, %v852
    %v1101 = vsel %vm1088, %v1092, 0.0
    %v1103 = vsel %vm257, %v970, 0
    %1105 = vmatprep.subr.mxu0 0.0
    %1106 = vmatpush1.msra.mxu0 0.0
    %1107 = vmatprep.subr.mxu0 0.0
    %1108 = vmatpush1.msra.mxu0 0.0
    %1109 = vmatprep.subr.mxu0 0.0
    %1110 = vmatpush1.msra.mxu0 0.0
    %1111 = vmatprep.subr.mxu0 0.0
    %1112 = vmatpush1.msra.mxu0 0.0
    %1113 = vmatprep.subr.mxu0 0.0
    %1114 = vmatpush1.msra.mxu0 0.0
    %1115 = vmatprep.subr.mxu0 0.0
    %1116 = vmatpush1.msra.mxu0 0.0
    %1117 = vmatprep.subr.mxu0 0.0
    %1118 = vmatpush1.msra.mxu0 0.0
    %1119 = vmatprep.subr.mxu0 0.0
    %1120 = vmatpush1.msra.mxu0 0.0
    %1121 = vmatprep.subr.mxu0 0.0
    %1122 = vmatpush1.msra.mxu0 0.0
    %1123 = vmatprep.subr.mxu0 0.0
    %1124 = vmatpush1.msra.mxu0 0.0
    %1125 = vmatprep.subr.mxu0 0.0
    %1126 = vmatpush1.msra.mxu0 0.0
    %1127 = vmatprep.subr.mxu0 0.0
    %1128 = vmatpush1.msra.mxu0 0.0
    %1129 = vmatprep.subr.mxu0 0.0
    %1130 = vmatpush1.msra.mxu0 %v255
    %1131 = vmatprep.subr.mxu0 0.0
    %1132 = vmatpush1.msra.mxu0 %v254
    %1133 = vmatprep.subr.mxu0 0.0
    %1134 = vmatpush1.msra.mxu0 %v253
    %1135 = vmatprep.subr.mxu0 0.0
    %1136 = vmatpush1.msra.mxu0 %v252
    %1137 = vmatprep.subr.mxu0 0.0
    %1138 = vmatpush2.msra.mxu0 0.0
    %1139 = vmatprep.subr.mxu0 0.0
    %1140 = vmatpush2.msra.mxu0 0.0
    %1141 = vmatprep.subr.mxu0 0.0
    %1142 = vmatpush2.msra.mxu0 0.0
    %1143 = vmatprep.subr.mxu0 0.0
    %1144 = vmatpush2.msra.mxu0 0.0
    %1145 = vmatprep.subr.mxu0 0.0
    %1146 = vmatpush2.msra.mxu0 0.0
    %1147 = vmatprep.subr.mxu0 0.0
    %1148 = vmatpush2.msra.mxu0 0.0
    %1149 = vmatprep.subr.mxu0 0.0
    %1150 = vmatpush2.msra.mxu0 0.0
    %1151 = vmatprep.subr.mxu0 0.0
    %1152 = vmatpush2.msra.mxu0 0.0
    %1153 = vmatprep.subr.mxu0 0.0
    %1154 = vmatpush2.msra.mxu0 0.0
    %1155 = vmatprep.subr.mxu0 0.0
    %1156 = vmatpush2.msra.mxu0 0.0
    %1157 = vmatprep.subr.mxu0 0.0
    %1158 = vmatpush2.msra.mxu0 0.0
    %1159 = vmatprep.subr.mxu0 0.0
    %1160 = vmatpush2.msra.mxu0 0.0
    %1161 = vmatprep.subr.mxu0 0.0
    %1162 = vmatpush2.msra.mxu0 0.0
    %1163 = vmatprep.subr.mxu0 0.0
    %1164 = vmatpush2.msra.mxu0 0.0
    %1165 = vmatprep.subr.mxu0 0.0
    %1166 = vmatpush2.msra.mxu0 0.0
    %1167 = vmatprep.subr.mxu0 0.0
    %1168 = vmatpush2.msra.mxu0 0.0
    %1169 = vmatprep.mubr.f32.mxu0 0.0
    %1170 = vmatmul.mubr.f32.gmra.mxu0 %v1103
    %v1171 = vpop.f32.mrf.mxu0
    %v1172 = vadd.f32 0.0, %v1171
    %v1173 = vpop.f32.mrf.mxu0
    %1174 = vdwg.mxu0
    %v1175 = vadd.f32 %v246, %v1172
    %v1176 = vmul.f32 %v1175, 0.5
    %v1177 = vtanh.pop %v1176
    %v1178 = vadd.f32 %v1177, 1.0
    %v1179 = vmul.f32 %v1178, 0.5
    %v1180 = vmul.f32 %v1179, 2.0
    %v1181 = vsub.f32 %v1180, 1.0
    %1183 = vrot.lane.b32.xlu0 %v976, 32
    %v1184 = vpop.permute.xlu0 %1183
    %v1186 = vmul.f32 %v1179, %v1184
    %1188 = vrot.lane.b32.xlu0 %v1181, 64
    %v1189 = vpop.permute.xlu0 %1188
    %v1191 = vmul.f32 %v1179, %v1189
    %1193 = vrot.lane.b32.xlu0 %v1191, 32
    %v1194 = vpop.permute.xlu0 %1193
    %v1196 = vadd.f32 %v1186, %v1194
    %v1197 = vtanh.pop %v1196
    %1199 = vrot.lane.b32.xlu0 %v1197, 64
    %v1200 = vpop.permute.xlu0 %1199
    %v1202 = vmul.f32 %v1179, %v1200
    %vm1203 = vcmp.gt.s32.totalorder %v256, 4
    %v1204 = vsel %vm1203, 1, 0
    %1205 = vset.pattern.permute.xlu0 0
    %1206 = vperm.xlu0 %1205, %v1204
    %v1207 = vpop.permute.xlu0 %1206
    %vm1208 = vcmp.eq.s32.totalorder %v1207, 1
    %1209 = vrot.lane.b32.xlu0 %v970, 96
    %v1210 = vpop.permute.xlu0 %1209
    %v1212 = vsel %vm1208, %v1202, %v1210
    %v1213 = vsel %vm1208, %v1196, %v1184
    %v1214 = vsel %vm1208, %v1202, 0.0
    %v1216 = vsel %vm257, %v1094, 0
    %1218 = vmatprep.subr.mxu0 0.0
    %1219 = vmatpush1.msra.mxu0 0.0
    %1220 = vmatprep.subr.mxu0 0.0
    %1221 = vmatpush1.msra.mxu0 0.0
    %1222 = vmatprep.subr.mxu0 0.0
    %1223 = vmatpush1.msra.mxu0 0.0
    %1224 = vmatprep.subr.mxu0 0.0
    %1225 = vmatpush1.msra.mxu0 0.0
    %1226 = vmatprep.subr.mxu0 0.0
    %1227 = vmatpush1.msra.mxu0 0.0
    %1228 = vmatprep.subr.mxu0 0.0
    %1229 = vmatpush1.msra.mxu0 0.0
    %1230 = vmatprep.subr.mxu0 0.0
    %1231 = vmatpush1.msra.mxu0 0.0
    %1232 = vmatprep.subr.mxu0 0.0
    %1233 = vmatpush1.msra.mxu0 0.0
    %1234 = vmatprep.subr.mxu0 0.0
    %1235 = vmatpush1.msra.mxu0 0.0
    %1236 = vmatprep.subr.mxu0 0.0
    %1237 = vmatpush1.msra.mxu0 0.0
    %1238 = vmatprep.subr.mxu0 0.0
    %1239 = vmatpush1.msra.mxu0 0.0
    %1240 = vmatprep.subr.mxu0 0.0
    %1241 = vmatpush1.msra.mxu0 0.0
    %1242 = vmatprep.subr.mxu0 0.0
    %1243 = vmatpush1.msra.mxu0 %v251
    %1244 = vmatprep.subr.mxu0 0.0
    %1245 = vmatpush1.msra.mxu0 %v250
    %1246 = vmatprep.subr.mxu0 0.0
    %1247 = vmatpush1.msra.mxu0 %v249
    %1248 = vmatprep.subr.mxu0 0.0
    %1249 = vmatpush1.msra.mxu0 %v248
    %1250 = vmatprep.subr.mxu0 0.0
    %1251 = vmatpush2.msra.mxu0 0.0
    %1252 = vmatprep.subr.mxu0 0.0
    %1253 = vmatpush2.msra.mxu0 0.0
    %1254 = vmatprep.subr.mxu0 0.0
    %1255 = vmatpush2.msra.mxu0 0.0
    %1256 = vmatprep.subr.mxu0 0.0
    %1257 = vmatpush2.msra.mxu0 0.0
    %1258 = vmatprep.subr.mxu0 0.0
    %1259 = vmatpush2.msra.mxu0 0.0
    %1260 = vmatprep.subr.mxu0 0.0
    %1261 = vmatpush2.msra.mxu0 0.0
    %1262 = vmatprep.subr.mxu0 0.0
    %1263 = vmatpush2.msra.mxu0 0.0
    %1264 = vmatprep.subr.mxu0 0.0
    %1265 = vmatpush2.msra.mxu0 0.0
    %1266 = vmatprep.subr.mxu0 0.0
    %1267 = vmatpush2.msra.mxu0 0.0
    %1268 = vmatprep.subr.mxu0 0.0
    %1269 = vmatpush2.msra.mxu0 0.0
    %1270 = vmatprep.subr.mxu0 0.0
    %1271 = vmatpush2.msra.mxu0 0.0
    %1272 = vmatprep.subr.mxu0 0.0
    %1273 = vmatpush2.msra.mxu0 0.0
    %1274 = vmatprep.subr.mxu0 0.0
    %1275 = vmatpush2.msra.mxu0 0.0
    %1276 = vmatprep.subr.mxu0 0.0
    %1277 = vmatpush2.msra.mxu0 0.0
    %1278 = vmatprep.subr.mxu0 0.0
    %1279 = vmatpush2.msra.mxu0 0.0
    %1280 = vmatprep.subr.mxu0 0.0
    %1281 = vmatpush2.msra.mxu0 0.0
    %1282 = vmatprep.mubr.f32.mxu0 0.0
    %1283 = vmatmul.mubr.f32.gmra.mxu0 %v1216
    %v1284 = vpop.f32.mrf.mxu0
    %v1285 = vadd.f32 0.0, %v1284
    %v1286 = vpop.f32.mrf.mxu0
    %1287 = vdwg.mxu0
    %v1288 = vadd.f32 %v244, %v1285
    %v1289 = vmul.f32 %v1288, 0.5
    %v1290 = vtanh.pop %v1289
    %v1291 = vadd.f32 %v1290, 1.0
    %v1292 = vmul.f32 %v1291, 0.5
    %v1293 = vmul.f32 %v1292, 2.0
    %v1294 = vsub.f32 %v1293, 1.0
    %1296 = vrot.lane.b32.xlu0 %v1100, 32
    %v1297 = vpop.permute.xlu0 %1296
    %v1299 = vmul.f32 %v1292, %v1297
    %1301 = vrot.lane.b32.xlu0 %v1294, 64
    %v1302 = vpop.permute.xlu0 %1301
    %v1304 = vmul.f32 %v1292, %v1302
    %1306 = vrot.lane.b32.xlu0 %v1304, 32
    %v1307 = vpop.permute.xlu0 %1306
    %v1309 = vadd.f32 %v1299, %v1307
    %v1310 = vtanh.pop %v1309
    %1312 = vrot.lane.b32.xlu0 %v1310, 64
    %v1313 = vpop.permute.xlu0 %1312
    %v1315 = vmul.f32 %v1292, %v1313
    %1316 = vrot.lane.b32.xlu0 %v1094, 96
    %v1317 = vpop.permute.xlu0 %1316
    %v1319 = vsel %vm1208, %v1315, %v1317
    %v1320 = vsel %vm1208, %v1309, %v1297
    %v1321 = vsel %vm1208, %v1315, 0.0
    %1323 = vrot.lane.b32.xlu0 %v1212, 32
    %v1324 = vpop.permute.xlu0 %1323
    %v1325 = vsel %vm257, %v1324, 0
    %1327 = vmatprep.subr.mxu0 0.0
    %1328 = vmatpush1.msra.mxu0 0.0
    %1329 = vmatprep.subr.mxu0 0.0
    %1330 = vmatpush1.msra.mxu0 0.0
    %1331 = vmatprep.subr.mxu0 0.0
    %1332 = vmatpush1.msra.mxu0 0.0
    %1333 = vmatprep.subr.mxu0 0.0
    %1334 = vmatpush1.msra.mxu0 0.0
    %1335 = vmatprep.subr.mxu0 0.0
    %1336 = vmatpush1.msra.mxu0 0.0
    %1337 = vmatprep.subr.mxu0 0.0
    %1338 = vmatpush1.msra.mxu0 0.0
    %1339 = vmatprep.subr.mxu0 0.0
    %1340 = vmatpush1.msra.mxu0 0.0
    %1341 = vmatprep.subr.mxu0 0.0
    %1342 = vmatpush1.msra.mxu0 0.0
    %1343 = vmatprep.subr.mxu0 0.0
    %1344 = vmatpush1.msra.mxu0 0.0
    %1345 = vmatprep.subr.mxu0 0.0
    %1346 = vmatpush1.msra.mxu0 0.0
    %1347 = vmatprep.subr.mxu0 0.0
    %1348 = vmatpush1.msra.mxu0 0.0
    %1349 = vmatprep.subr.mxu0 0.0
    %1350 = vmatpush1.msra.mxu0 0.0
    %1351 = vmatprep.subr.mxu0 0.0
    %1352 = vmatpush1.msra.mxu0 %v255
    %1353 = vmatprep.subr.mxu0 0.0
    %1354 = vmatpush1.msra.mxu0 %v254
    %1355 = vmatprep.subr.mxu0 0.0
    %1356 = vmatpush1.msra.mxu0 %v253
    %1357 = vmatprep.subr.mxu0 0.0
    %1358 = vmatpush1.msra.mxu0 %v252
    %1359 = vmatprep.subr.mxu0 0.0
    %1360 = vmatpush2.msra.mxu0 0.0
    %1361 = vmatprep.subr.mxu0 0.0
    %1362 = vmatpush2.msra.mxu0 0.0
    %1363 = vmatprep.subr.mxu0 0.0
    %1364 = vmatpush2.msra.mxu0 0.0
    %1365 = vmatprep.subr.mxu0 0.0
    %1366 = vmatpush2.msra.mxu0 0.0
    %1367 = vmatprep.subr.mxu0 0.0
    %1368 = vmatpush2.msra.mxu0 0.0
    %1369 = vmatprep.subr.mxu0 0.0
    %1370 = vmatpush2.msra.mxu0 0.0
    %1371 = vmatprep.subr.mxu0 0.0
    %1372 = vmatpush2.msra.mxu0 0.0
    %1373 = vmatprep.subr.mxu0 0.0
    %1374 = vmatpush2.msra.mxu0 0.0
    %1375 = vmatprep.subr.mxu0 0.0
    %1376 = vmatpush2.msra.mxu0 0.0
    %1377 = vmatprep.subr.mxu0 0.0
    %1378 = vmatpush2.msra.mxu0 0.0
    %1379 = vmatprep.subr.mxu0 0.0
    %1380 = vmatpush2.msra.mxu0 0.0
    %1381 = vmatprep.subr.mxu0 0.0
    %1382 = vmatpush2.msra.mxu0 0.0
    %1383 = vmatprep.subr.mxu0 0.0
    %1384 = vmatpush2.msra.mxu0 0.0
    %1385 = vmatprep.subr.mxu0 0.0
    %1386 = vmatpush2.msra.mxu0 0.0
    %1387 = vmatprep.subr.mxu0 0.0
    %1388 = vmatpush2.msra.mxu0 0.0
    %1389 = vmatprep.subr.mxu0 0.0
    %1390 = vmatpush2.msra.mxu0 0.0
    %1391 = vmatprep.mubr.f32.mxu0 0.0
    %1392 = vmatmul.mubr.f32.gmra.mxu0 %v1325
    %v1393 = vpop.f32.mrf.mxu0
    %v1394 = vadd.f32 0.0, %v1393
    %v1395 = vpop.f32.mrf.mxu0
    %1396 = vdwg.mxu0
    %v1398 = vrot.slane %v1394, 2
    %v1400 = vadd.f32 %v240, %v1398
    %v1401 = vmul.f32 %v1400, 0.5
    %v1402 = vtanh.pop %v1401
    %v1403 = vadd.f32 %v1402, 1.0
    %v1404 = vmul.f32 %v1403, 0.5
    %v1405 = vmul.f32 %v1404, 2.0
    %v1406 = vsub.f32 %v1405, 1.0
    %v1408 = vrot.slane %v1213, 2
    %v1410 = vmul.f32 %v1404, %v1408
    %1412 = vrot.lane.b32.xlu0 %v1406, 64
    %v1413 = vpop.permute.xlu0 %1412
    %v1415 = vmul.f32 %v1404, %v1413
    %1417 = vrot.lane.b32.xlu0 %v1415, 32
    %v1418 = vpop.permute.xlu0 %1417
    %v1420 = vadd.f32 %v1410, %v1418
    %v1421 = vtanh.pop %v1420
    %1423 = vrot.lane.b32.xlu0 %v1421, 64
    %v1424 = vpop.permute.xlu0 %1423
    %v1426 = vmul.f32 %v1404, %v1424
    %v1428 = vrot.slane %v1426, 6
    %1429 = vrot.lane.b32.xlu0 %v1428, 32
    %v1430 = vpop.permute.xlu0 %1429
    %v1433 = vsel %vm1088, %v1430, %v1324
    %v1435 = vrot.slane %v1420, 6
    %1436 = vrot.lane.b32.xlu0 %v1435, 96
    %v1437 = vpop.permute.xlu0 %1436
    %1439 = vrot.lane.b32.xlu0 %v1213, 96
    %v1440 = vpop.permute.xlu0 %1439
    %v1442 = vsel %vm1088, %v1437, %v1440
    %v1443 = vsel %vm1088, %v1430, 0.0
    %1445 = vrot.lane.b32.xlu0 %v1319, 32
    %v1446 = vpop.permute.xlu0 %1445
    %v1447 = vsel %vm257, %v1446, 0
    %1449 = vmatprep.subr.mxu0 0.0
    %1450 = vmatpush1.msra.mxu0 0.0
    %1451 = vmatprep.subr.mxu0 0.0
    %1452 = vmatpush1.msra.mxu0 0.0
    %1453 = vmatprep.subr.mxu0 0.0
    %1454 = vmatpush1.msra.mxu0 0.0
    %1455 = vmatprep.subr.mxu0 0.0
    %1456 = vmatpush1.msra.mxu0 0.0
    %1457 = vmatprep.subr.mxu0 0.0
    %1458 = vmatpush1.msra.mxu0 0.0
    %1459 = vmatprep.subr.mxu0 0.0
    %1460 = vmatpush1.msra.mxu0 0.0
    %1461 = vmatprep.subr.mxu0 0.0
    %1462 = vmatpush1.msra.mxu0 0.0
    %1463 = vmatprep.subr.mxu0 0.0
    %1464 = vmatpush1.msra.mxu0 0.0
    %1465 = vmatprep.subr.mxu0 0.0
    %1466 = vmatpush1.msra.mxu0 0.0
    %1467 = vmatprep.subr.mxu0 0.0
    %1468 = vmatpush1.msra.mxu0 0.0
    %1469 = vmatprep.subr.mxu0 0.0
    %1470 = vmatpush1.msra.mxu0 0.0
    %1471 = vmatprep.subr.mxu0 0.0
    %1472 = vmatpush1.msra.mxu0 0.0
    %1473 = vmatprep.subr.mxu0 0.0
    %1474 = vmatpush1.msra.mxu0 %v251
    %1475 = vmatprep.subr.mxu0 0.0
    %1476 = vmatpush1.msra.mxu0 %v250
    %1477 = vmatprep.subr.mxu0 0.0
    %1478 = vmatpush1.msra.mxu0 %v249
    %1479 = vmatprep.subr.mxu0 0.0
    %1480 = vmatpush1.msra.mxu0 %v248
    %1481 = vmatprep.subr.mxu0 0.0
    %1482 = vmatpush2.msra.mxu0 0.0
    %1483 = vmatprep.subr.mxu0 0.0
    %1484 = vmatpush2.msra.mxu0 0.0
    %1485 = vmatprep.subr.mxu0 0.0
    %1486 = vmatpush2.msra.mxu0 0.0
    %1487 = vmatprep.subr.mxu0 0.0
    %1488 = vmatpush2.msra.mxu0 0.0
    %1489 = vmatprep.subr.mxu0 0.0
    %1490 = vmatpush2.msra.mxu0 0.0
    %1491 = vmatprep.subr.mxu0 0.0
    %1492 = vmatpush2.msra.mxu0 0.0
    %1493 = vmatprep.subr.mxu0 0.0
    %1494 = vmatpush2.msra.mxu0 0.0
    %1495 = vmatprep.subr.mxu0 0.0
    %1496 = vmatpush2.msra.mxu0 0.0
    %1497 = vmatprep.subr.mxu0 0.0
    %1498 = vmatpush2.msra.mxu0 0.0
    %1499 = vmatprep.subr.mxu0 0.0
    %1500 = vmatpush2.msra.mxu0 0.0
    %1501 = vmatprep.subr.mxu0 0.0
    %1502 = vmatpush2.msra.mxu0 0.0
    %1503 = vmatprep.subr.mxu0 0.0
    %1504 = vmatpush2.msra.mxu0 0.0
    %1505 = vmatprep.subr.mxu0 0.0
    %1506 = vmatpush2.msra.mxu0 0.0
    %1507 = vmatprep.subr.mxu0 0.0
    %1508 = vmatpush2.msra.mxu0 0.0
    %1509 = vmatprep.subr.mxu0 0.0
    %1510 = vmatpush2.msra.mxu0 0.0
    %1511 = vmatprep.subr.mxu0 0.0
    %1512 = vmatpush2.msra.mxu0 0.0
    %1513 = vmatprep.mubr.f32.mxu0 0.0
    %1514 = vmatmul.mubr.f32.gmra.mxu0 %v1447
    %v1515 = vpop.f32.mrf.mxu0
    %v1516 = vadd.f32 0.0, %v1515
    %v1517 = vpop.f32.mrf.mxu0
    %1518 = vdwg.mxu0
    %v1520 = vrot.slane %v1516, 6
    %v1522 = vadd.f32 %v244, %v1520
    %v1523 = vmul.f32 %v1522, 0.5
    %v1524 = vtanh.pop %v1523
    %v1525 = vadd.f32 %v1524, 1.0
    %v1526 = vmul.f32 %v1525, 0.5
    %v1527 = vmul.f32 %v1526, 2.0
    %v1528 = vsub.f32 %v1527, 1.0
    %v1530 = vrot.slane %v1320, 6
    %v1532 = vmul.f32 %v1526, %v1530
    %1534 = vrot.lane.b32.xlu0 %v1528, 64
    %v1535 = vpop.permute.xlu0 %1534
    %v1537 = vmul.f32 %v1526, %v1535
    %1539 = vrot.lane.b32.xlu0 %v1537, 32
    %v1540 = vpop.permute.xlu0 %1539
    %v1542 = vadd.f32 %v1532, %v1540
    %v1543 = vtanh.pop %v1542
    %1545 = vrot.lane.b32.xlu0 %v1543, 64
    %v1546 = vpop.permute.xlu0 %1545
    %v1548 = vmul.f32 %v1526, %v1546
    %v1550 = vrot.slane %v1548, 2
    %1551 = vrot.lane.b32.xlu0 %v1550, 32
    %v1552 = vpop.permute.xlu0 %1551
    %v1555 = vsel %vm964, %v1552, %v1446
    %v1557 = vrot.slane %v1542, 2
    %1558 = vrot.lane.b32.xlu0 %v1557, 96
    %v1559 = vpop.permute.xlu0 %1558
    %1561 = vrot.lane.b32.xlu0 %v1320, 96
    %v1562 = vpop.permute.xlu0 %1561
    %v1564 = vsel %vm964, %v1559, %v1562
    %v1565 = vsel %vm964, %v1552, 0.0
    %v1567 = vsel %vm257, %v1433, 0
    %1569 = vmatprep.subr.mxu0 0.0
    %1570 = vmatpush1.msra.mxu0 0.0
    %1571 = vmatprep.subr.mxu0 0.0
    %1572 = vmatpush1.msra.mxu0 0.0
    %1573 = vmatprep.subr.mxu0 0.0
    %1574 = vmatpush1.msra.mxu0 0.0
    %1575 = vmatprep.subr.mxu0 0.0
    %1576 = vmatpush1.msra.mxu0 0.0
    %1577 = vmatprep.subr.mxu0 0.0
    %1578 = vmatpush1.msra.mxu0 0.0
    %1579 = vmatprep.subr.mxu0 0.0
    %1580 = vmatpush1.msra.mxu0 0.0
    %1581 = vmatprep.subr.mxu0 0.0
    %1582 = vmatpush1.msra.mxu0 0.0
    %1583 = vmatprep.subr.mxu0 0.0
    %1584 = vmatpush1.msra.mxu0 0.0
    %1585 = vmatprep.subr.mxu0 0.0
    %1586 = vmatpush1.msra.mxu0 0.0
    %1587 = vmatprep.subr.mxu0 0.0
    %1588 = vmatpush1.msra.mxu0 0.0
    %1589 = vmatprep.subr.mxu0 0.0
    %1590 = vmatpush1.msra.mxu0 0.0
    %1591 = vmatprep.subr.mxu0 0.0
    %1592 = vmatpush1.msra.mxu0 0.0
    %1593 = vmatprep.subr.mxu0 0.0
    %1594 = vmatpush1.msra.mxu0 %v255
    %1595 = vmatprep.subr.mxu0 0.0
    %1596 = vmatpush1.msra.mxu0 %v254
    %1597 = vmatprep.subr.mxu0 0.0
    %1598 = vmatpush1.msra.mxu0 %v253
    %1599 = vmatprep.subr.mxu0 0.0
    %1600 = vmatpush1.msra.mxu0 %v252
    %1601 = vmatprep.subr.mxu0 0.0
    %1602 = vmatpush2.msra.mxu0 0.0
    %1603 = vmatprep.subr.mxu0 0.0
    %1604 = vmatpush2.msra.mxu0 0.0
    %1605 = vmatprep.subr.mxu0 0.0
    %1606 = vmatpush2.msra.mxu0 0.0
    %1607 = vmatprep.subr.mxu0 0.0
    %1608 = vmatpush2.msra.mxu0 0.0
    %1609 = vmatprep.subr.mxu0 0.0
    %1610 = vmatpush2.msra.mxu0 0.0
    %1611 = vmatprep.subr.mxu0 0.0
    %1612 = vmatpush2.msra.mxu0 0.0
    %1613 = vmatprep.subr.mxu0 0.0
    %1614 = vmatpush2.msra.mxu0 0.0
    %1615 = vmatprep.subr.mxu0 0.0
    %1616 = vmatpush2.msra.mxu0 0.0
    %1617 = vmatprep.subr.mxu0 0.0
    %1618 = vmatpush2.msra.mxu0 0.0
    %1619 = vmatprep.subr.mxu0 0.0
    %1620 = vmatpush2.msra.mxu0 0.0
    %1621 = vmatprep.subr.mxu0 0.0
    %1622 = vmatpush2.msra.mxu0 0.0
    %1623 = vmatprep.subr.mxu0 0.0
    %1624 = vmatpush2.msra.mxu0 0.0
    %1625 = vmatprep.subr.mxu0 0.0
    %1626 = vmatpush2.msra.mxu0 0.0
    %1627 = vmatprep.subr.mxu0 0.0
    %1628 = vmatpush2.msra.mxu0 0.0
    %1629 = vmatprep.subr.mxu0 0.0
    %1630 = vmatpush2.msra.mxu0 0.0
    %1631 = vmatprep.subr.mxu0 0.0
    %1632 = vmatpush2.msra.mxu0 0.0
    %1633 = vmatprep.mubr.f32.mxu0 0.0
    %1634 = vmatmul.mubr.f32.gmra.mxu0 %v1567
    %v1635 = vpop.f32.mrf.mxu0
    %v1636 = vadd.f32 0.0, %v1635
    %v1637 = vpop.f32.mrf.mxu0
    %1638 = vdwg.mxu0
    %v1640 = vrot.slane %v1636, 4
    %v1642 = vadd.f32 %v240, %v1640
    %v1643 = vmul.f32 %v1642, 0.5
    %v1644 = vtanh.pop %v1643
    %v1645 = vadd.f32 %v1644, 1.0
    %v1646 = vmul.f32 %v1645, 0.5
    %v1647 = vmul.f32 %v1646, 2.0
    %v1648 = vsub.f32 %v1647, 1.0
    %v1650 = vrot.slane %v1442, 4
    %1651 = vrot.lane.b32.xlu0 %v1650, 32
    %v1652 = vpop.permute.xlu0 %1651
    %v1654 = vmul.f32 %v1646, %v1652
    %1656 = vrot.lane.b32.xlu0 %v1648, 64
    %v1657 = vpop.permute.xlu0 %1656
    %v1659 = vmul.f32 %v1646, %v1657
    %1661 = vrot.lane.b32.xlu0 %v1659, 32
    %v1662 = vpop.permute.xlu0 %1661
    %v1664 = vadd.f32 %v1654, %v1662
    %v1665 = vtanh.pop %v1664
    %1667 = vrot.lane.b32.xlu0 %v1665, 64
    %v1668 = vpop.permute.xlu0 %1667
    %v1670 = vmul.f32 %v1646, %v1668
    %v1672 = vrot.slane %v1670, 4
    %1673 = vrot.lane.b32.xlu0 %v1672, 32
    %v1674 = vpop.permute.xlu0 %1673
    %v1676 = vsel %vm840, %v1674, %v1433
    %v1678 = vrot.slane %v1664, 4
    %1679 = vrot.lane.b32.xlu0 %v1678, 96
    %v1680 = vpop.permute.xlu0 %1679
    %v1682 = vsel %vm840, %v1680, %v1442
    %v1683 = vsel %vm840, %v1674, 0.0
    %v1685 = vsel %vm257, %v1555, 0
    %1687 = vmatprep.subr.mxu0 0.0
    %1688 = vmatpush1.msra.mxu0 0.0
    %1689 = vmatprep.subr.mxu0 0.0
    %1690 = vmatpush1.msra.mxu0 0.0
    %1691 = vmatprep.subr.mxu0 0.0
    %1692 = vmatpush1.msra.mxu0 0.0
    %1693 = vmatprep.subr.mxu0 0.0
    %1694 = vmatpush1.msra.mxu0 0.0
    %1695 = vmatprep.subr.mxu0 0.0
    %1696 = vmatpush1.msra.mxu0 0.0
    %1697 = vmatprep.subr.mxu0 0.0
    %1698 = vmatpush1.msra.mxu0 0.0
    %1699 = vmatprep.subr.mxu0 0.0
    %1700 = vmatpush1.msra.mxu0 0.0
    %1701 = vmatprep.subr.mxu0 0.0
    %1702 = vmatpush1.msra.mxu0 0.0
    %1703 = vmatprep.subr.mxu0 0.0
    %1704 = vmatpush1.msra.mxu0 0.0
    %1705 = vmatprep.subr.mxu0 0.0
    %1706 = vmatpush1.msra.mxu0 0.0
    %1707 = vmatprep.subr.mxu0 0.0
    %1708 = vmatpush1.msra.mxu0 0.0
    %1709 = vmatprep.subr.mxu0 0.0
    %1710 = vmatpush1.msra.mxu0 0.0
    %1711 = vmatprep.subr.mxu0 0.0
    %1712 = vmatpush1.msra.mxu0 %v251
    %1713 = vmatprep.subr.mxu0 0.0
    %1714 = vmatpush1.msra.mxu0 %v250
    %1715 = vmatprep.subr.mxu0 0.0
    %1716 = vmatpush1.msra.mxu0 %v249
    %1717 = vmatprep.subr.mxu0 0.0
    %1718 = vmatpush1.msra.mxu0 %v248
    %1719 = vmatprep.subr.mxu0 0.0
    %1720 = vmatpush2.msra.mxu0 0.0
    %1721 = vmatprep.subr.mxu0 0.0
    %1722 = vmatpush2.msra.mxu0 0.0
    %1723 = vmatprep.subr.mxu0 0.0
    %1724 = vmatpush2.msra.mxu0 0.0
    %1725 = vmatprep.subr.mxu0 0.0
    %1726 = vmatpush2.msra.mxu0 0.0
    %1727 = vmatprep.subr.mxu0 0.0
    %1728 = vmatpush2.msra.mxu0 0.0
    %1729 = vmatprep.subr.mxu0 0.0
    %1730 = vmatpush2.msra.mxu0 0.0
    %1731 = vmatprep.subr.mxu0 0.0
    %1732 = vmatpush2.msra.mxu0 0.0
    %1733 = vmatprep.subr.mxu0 0.0
    %1734 = vmatpush2.msra.mxu0 0.0
    %1735 = vmatprep.subr.mxu0 0.0
    %1736 = vmatpush2.msra.mxu0 0.0
    %1737 = vmatprep.subr.mxu0 0.0
    %1738 = vmatpush2.msra.mxu0 0.0
    %1739 = vmatprep.subr.mxu0 0.0
    %1740 = vmatpush2.msra.mxu0 0.0
    %1741 = vmatprep.subr.mxu0 0.0
    %1742 = vmatpush2.msra.mxu0 0.0
    %1743 = vmatprep.subr.mxu0 0.0
    %1744 = vmatpush2.msra.mxu0 0.0
    %1745 = vmatprep.subr.mxu0 0.0
    %1746 = vmatpush2.msra.mxu0 0.0
    %1747 = vmatprep.subr.mxu0 0.0
    %1748 = vmatpush2.msra.mxu0 0.0
    %1749 = vmatprep.subr.mxu0 0.0
    %1750 = vmatpush2.msra.mxu0 0.0
    %1751 = vmatprep.mubr.f32.mxu0 0.0
    %1752 = vmatmul.mubr.f32.gmra.mxu0 %v1685
    %v1753 = vpop.f32.mrf.mxu0
    %v1754 = vadd.f32 0.0, %v1753
    %v1755 = vpop.f32.mrf.mxu0
    %1756 = vdwg.mxu0
    %v1758 = vrot.slane %v1754, 4
    %v1760 = vadd.f32 %v244, %v1758
    %v1761 = vmul.f32 %v1760, 0.5
    %v1762 = vtanh.pop %v1761
    %v1763 = vadd.f32 %v1762, 1.0
    %v1764 = vmul.f32 %v1763, 0.5
    %v1765 = vmul.f32 %v1764, 2.0
    %v1766 = vsub.f32 %v1765, 1.0
    %v1768 = vrot.slane %v1564, 4
    %1769 = vrot.lane.b32.xlu0 %v1768, 32
    %v1770 = vpop.permute.xlu0 %1769
    %v1772 = vmul.f32 %v1764, %v1770
    %1774 = vrot.lane.b32.xlu0 %v1766, 64
    %v1775 = vpop.permute.xlu0 %1774
    %v1777 = vmul.f32 %v1764, %v1775
    %1779 = vrot.lane.b32.xlu0 %v1777, 32
    %v1780 = vpop.permute.xlu0 %1779
    %v1782 = vadd.f32 %v1772, %v1780
    %v1783 = vtanh.pop %v1782
    %1785 = vrot.lane.b32.xlu0 %v1783, 64
    %v1786 = vpop.permute.xlu0 %1785
    %v1788 = vmul.f32 %v1764, %v1786
    %v1790 = vrot.slane %v1788, 4
    %1791 = vrot.lane.b32.xlu0 %v1790, 32
    %v1792 = vpop.permute.xlu0 %1791
    %v1794 = vsel %vm716, %v1792, %v1555
    %v1796 = vrot.slane %v1782, 4
    %1797 = vrot.lane.b32.xlu0 %v1796, 96
    %v1798 = vpop.permute.xlu0 %1797
    %v1800 = vsel %vm716, %v1798, %v1564
    %v1801 = vsel %vm716, %v1792, 0.0
    %v1803 = vsel %vm257, %v1676, 0
    %1805 = vmatprep.subr.mxu0 0.0
    %1806 = vmatpush1.msra.mxu0 0.0
    %1807 = vmatprep.subr.mxu0 0.0
    %1808 = vmatpush1.msra.mxu0 0.0
    %1809 = vmatprep.subr.mxu0 0.0
    %1810 = vmatpush1.msra.mxu0 0.0
    %1811 = vmatprep.subr.mxu0 0.0
    %1812 = vmatpush1.msra.mxu0 0.0
    %1813 = vmatprep.subr.mxu0 0.0
    %1814 = vmatpush1.msra.mxu0 0.0
    %1815 = vmatprep.subr.mxu0 0.0
    %1816 = vmatpush1.msra.mxu0 0.0
    %1817 = vmatprep.subr.mxu0 0.0
    %1818 = vmatpush1.msra.mxu0 0.0
    %1819 = vmatprep.subr.mxu0 0.0
    %1820 = vmatpush1.msra.mxu0 0.0
    %1821 = vmatprep.subr.mxu0 0.0
    %1822 = vmatpush1.msra.mxu0 0.0
    %1823 = vmatprep.subr.mxu0 0.0
    %1824 = vmatpush1.msra.mxu0 0.0
    %1825 = vmatprep.subr.mxu0 0.0
    %1826 = vmatpush1.msra.mxu0 0.0
    %1827 = vmatprep.subr.mxu0 0.0
    %1828 = vmatpush1.msra.mxu0 0.0
    %1829 = vmatprep.subr.mxu0 0.0
    %1830 = vmatpush1.msra.mxu0 %v255
    %1831 = vmatprep.subr.mxu0 0.0
    %1832 = vmatpush1.msra.mxu0 %v254
    %1833 = vmatprep.subr.mxu0 0.0
    %1834 = vmatpush1.msra.mxu0 %v253
    %1835 = vmatprep.subr.mxu0 0.0
    %1836 = vmatpush1.msra.mxu0 %v252
    %1837 = vmatprep.subr.mxu0 0.0
    %1838 = vmatpush2.msra.mxu0 0.0
    %1839 = vmatprep.subr.mxu0 0.0
    %1840 = vmatpush2.msra.mxu0 0.0
    %1841 = vmatprep.subr.mxu0 0.0
    %1842 = vmatpush2.msra.mxu0 0.0
    %1843 = vmatprep.subr.mxu0 0.0
    %1844 = vmatpush2.msra.mxu0 0.0
    %1845 = vmatprep.subr.mxu0 0.0
    %1846 = vmatpush2.msra.mxu0 0.0
    %1847 = vmatprep.subr.mxu0 0.0
    %1848 = vmatpush2.msra.mxu0 0.0
    %1849 = vmatprep.subr.mxu0 0.0
    %1850 = vmatpush2.msra.mxu0 0.0
    %1851 = vmatprep.subr.mxu0 0.0
    %1852 = vmatpush2.msra.mxu0 0.0
    %1853 = vmatprep.subr.mxu0 0.0
    %1854 = vmatpush2.msra.mxu0 0.0
    %1855 = vmatprep.subr.mxu0 0.0
    %1856 = vmatpush2.msra.mxu0 0.0
    %1857 = vmatprep.subr.mxu0 0.0
    %1858 = vmatpush2.msra.mxu0 0.0
    %1859 = vmatprep.subr.mxu0 0.0
    %1860 = vmatpush2.msra.mxu0 0.0
    %1861 = vmatprep.subr.mxu0 0.0
    %1862 = vmatpush2.msra.mxu0 0.0
    %1863 = vmatprep.subr.mxu0 0.0
    %1864 = vmatpush2.msra.mxu0 0.0
    %1865 = vmatprep.subr.mxu0 0.0
    %1866 = vmatpush2.msra.mxu0 0.0
    %1867 = vmatprep.subr.mxu0 0.0
    %1868 = vmatpush2.msra.mxu0 0.0
    %1869 = vmatprep.mubr.f32.mxu0 0.0
    %1870 = vmatmul.mubr.f32.gmra.mxu0 %v1803
    %v1871 = vpop.f32.mrf.mxu0
    %v1872 = vadd.f32 0.0, %v1871
    %v1873 = vpop.f32.mrf.mxu0
    %1874 = vdwg.mxu0
    %v1876 = vrot.slane %v1872, 6
    %v1878 = vadd.f32 %v240, %v1876
    %v1879 = vmul.f32 %v1878, 0.5
    %v1880 = vtanh.pop %v1879
    %v1881 = vadd.f32 %v1880, 1.0
    %v1882 = vmul.f32 %v1881, 0.5
    %v1883 = vmul.f32 %v1882, 2.0
    %v1884 = vsub.f32 %v1883, 1.0
    %v1886 = vrot.slane %v1682, 6
    %1887 = vrot.lane.b32.xlu0 %v1886, 32
    %v1888 = vpop.permute.xlu0 %1887
    %v1890 = vmul.f32 %v1882, %v1888
    %1892 = vrot.lane.b32.xlu0 %v1884, 64
    %v1893 = vpop.permute.xlu0 %1892
    %v1895 = vmul.f32 %v1882, %v1893
    %1897 = vrot.lane.b32.xlu0 %v1895, 32
    %v1898 = vpop.permute.xlu0 %1897
    %v1900 = vadd.f32 %v1890, %v1898
    %v1901 = vtanh.pop %v1900
    %1903 = vrot.lane.b32.xlu0 %v1901, 64
    %v1904 = vpop.permute.xlu0 %1903
    %v1906 = vmul.f32 %v1882, %v1904
    %v1908 = vrot.slane %v1906, 2
    %1909 = vrot.lane.b32.xlu0 %v1908, 32
    %v1910 = vpop.permute.xlu0 %1909
    %v1912 = vsel %vm588, %v1910, %v1676
    %v1914 = vrot.slane %v1900, 2
    %1915 = vrot.lane.b32.xlu0 %v1914, 96
    %v1916 = vpop.permute.xlu0 %1915
    %v1918 = vsel %vm588, %v1916, %v1682
    %v1919 = vsel %vm588, %v1910, 0.0
    %v1921 = vsel %vm257, %v1794, 0
    %1923 = vmatprep.subr.mxu0 0.0
    %1924 = vmatpush1.msra.mxu0 0.0
    %1925 = vmatprep.subr.mxu0 0.0
    %1926 = vmatpush1.msra.mxu0 0.0
    %1927 = vmatprep.subr.mxu0 0.0
    %1928 = vmatpush1.msra.mxu0 0.0
    %1929 = vmatprep.subr.mxu0 0.0
    %1930 = vmatpush1.msra.mxu0 0.0
    %1931 = vmatprep.subr.mxu0 0.0
    %1932 = vmatpush1.msra.mxu0 0.0
    %1933 = vmatprep.subr.mxu0 0.0
    %1934 = vmatpush1.msra.mxu0 0.0
    %1935 = vmatprep.subr.mxu0 0.0
    %1936 = vmatpush1.msra.mxu0 0.0
    %1937 = vmatprep.subr.mxu0 0.0
    %1938 = vmatpush1.msra.mxu0 0.0
    %1939 = vmatprep.subr.mxu0 0.0
    %1940 = vmatpush1.msra.mxu0 0.0
    %1941 = vmatprep.subr.mxu0 0.0
    %1942 = vmatpush1.msra.mxu0 0.0
    %1943 = vmatprep.subr.mxu0 0.0
    %1944 = vmatpush1.msra.mxu0 0.0
    %1945 = vmatprep.subr.mxu0 0.0
    %1946 = vmatpush1.msra.mxu0 0.0
    %1947 = vmatprep.subr.mxu0 0.0
    %1948 = vmatpush1.msra.mxu0 %v251
    %1949 = vmatprep.subr.mxu0 0.0
    %1950 = vmatpush1.msra.mxu0 %v250
    %1951 = vmatprep.subr.mxu0 0.0
    %1952 = vmatpush1.msra.mxu0 %v249
    %1953 = vmatprep.subr.mxu0 0.0
    %1954 = vmatpush1.msra.mxu0 %v248
    %1955 = vmatprep.subr.mxu0 0.0
    %1956 = vmatpush2.msra.mxu0 0.0
    %1957 = vmatprep.subr.mxu0 0.0
    %1958 = vmatpush2.msra.mxu0 0.0
    %1959 = vmatprep.subr.mxu0 0.0
    %1960 = vmatpush2.msra.mxu0 0.0
    %1961 = vmatprep.subr.mxu0 0.0
    %1962 = vmatpush2.msra.mxu0 0.0
    %1963 = vmatprep.subr.mxu0 0.0
    %1964 = vmatpush2.msra.mxu0 0.0
    %1965 = vmatprep.subr.mxu0 0.0
    %1966 = vmatpush2.msra.mxu0 0.0
    %1967 = vmatprep.subr.mxu0 0.0
    %1968 = vmatpush2.msra.mxu0 0.0
    %1969 = vmatprep.subr.mxu0 0.0
    %1970 = vmatpush2.msra.mxu0 0.0
    %1971 = vmatprep.subr.mxu0 0.0
    %1972 = vmatpush2.msra.mxu0 0.0
    %1973 = vmatprep.subr.mxu0 0.0
    %1974 = vmatpush2.msra.mxu0 0.0
    %1975 = vmatprep.subr.mxu0 0.0
    %1976 = vmatpush2.msra.mxu0 0.0
    %1977 = vmatprep.subr.mxu0 0.0
    %1978 = vmatpush2.msra.mxu0 0.0
    %1979 = vmatprep.subr.mxu0 0.0
    %1980 = vmatpush2.msra.mxu0 0.0
    %1981 = vmatprep.subr.mxu0 0.0
    %1982 = vmatpush2.msra.mxu0 0.0
    %1983 = vmatprep.subr.mxu0 0.0
    %1984 = vmatpush2.msra.mxu0 0.0
    %1985 = vmatprep.subr.mxu0 0.0
    %1986 = vmatpush2.msra.mxu0 0.0
    %1987 = vmatprep.mubr.f32.mxu0 0.0
    %1988 = vmatmul.mubr.f32.gmra.mxu0 %v1921
    %v1989 = vpop.f32.mrf.mxu0
    %v1990 = vadd.f32 0.0, %v1989
    %v1991 = vpop.f32.mrf.mxu0
    %1992 = vdwg.mxu0
    %v1994 = vrot.slane %v1990, 2
    %v1996 = vadd.f32 %v244, %v1994
    %v1997 = vmul.f32 %v1996, 0.5
    %v1998 = vtanh.pop %v1997
    %v1999 = vadd.f32 %v1998, 1.0
    %v2000 = vmul.f32 %v1999, 0.5
    %v2001 = vmul.f32 %v2000, 2.0
    %v2002 = vsub.f32 %v2001, 1.0
    %v2004 = vrot.slane %v1800, 2
    %2005 = vrot.lane.b32.xlu0 %v2004, 32
    %v2006 = vpop.permute.xlu0 %2005
    %v2008 = vmul.f32 %v2000, %v2006
    %2010 = vrot.lane.b32.xlu0 %v2002, 64
    %v2011 = vpop.permute.xlu0 %2010
    %v2013 = vmul.f32 %v2000, %v2011
    %2015 = vrot.lane.b32.xlu0 %v2013, 32
    %v2016 = vpop.permute.xlu0 %2015
    %v2018 = vadd.f32 %v2008, %v2016
    %v2019 = vtanh.pop %v2018
    %2021 = vrot.lane.b32.xlu0 %v2019, 64
    %v2022 = vpop.permute.xlu0 %2021
    %v2024 = vmul.f32 %v2000, %v2022
    %v2026 = vrot.slane %v2024, 6
    %2027 = vrot.lane.b32.xlu0 %v2026, 32
    %v2028 = vpop.permute.xlu0 %2027
    %v2030 = vsel %vm465, %v2028, 0.0
    %v2032 = vsel %vm257, %v1912, 0
    %2034 = vmatprep.subr.mxu0 0.0
    %2035 = vmatpush1.msra.mxu0 0.0
    %2036 = vmatprep.subr.mxu0 0.0
    %2037 = vmatpush1.msra.mxu0 0.0
    %2038 = vmatprep.subr.mxu0 0.0
    %2039 = vmatpush1.msra.mxu0 0.0
    %2040 = vmatprep.subr.mxu0 0.0
    %2041 = vmatpush1.msra.mxu0 0.0
    %2042 = vmatprep.subr.mxu0 0.0
    %2043 = vmatpush1.msra.mxu0 0.0
    %2044 = vmatprep.subr.mxu0 0.0
    %2045 = vmatpush1.msra.mxu0 0.0
    %2046 = vmatprep.subr.mxu0 0.0
    %2047 = vmatpush1.msra.mxu0 0.0
    %2048 = vmatprep.subr.mxu0 0.0
    %2049 = vmatpush1.msra.mxu0 0.0
    %2050 = vmatprep.subr.mxu0 0.0
    %2051 = vmatpush1.msra.mxu0 0.0
    %2052 = vmatprep.subr.mxu0 0.0
    %2053 = vmatpush1.msra.mxu0 0.0
    %2054 = vmatprep.subr.mxu0 0.0
    %2055 = vmatpush1.msra.mxu0 0.0
    %2056 = vmatprep.subr.mxu0 0.0
    %2057 = vmatpush1.msra.mxu0 0.0
    %2058 = vmatprep.subr.mxu0 0.0
    %2059 = vmatpush1.msra.mxu0 %v255
    %2060 = vmatprep.subr.mxu0 0.0
    %2061 = vmatpush1.msra.mxu0 %v254
    %2062 = vmatprep.subr.mxu0 0.0
    %2063 = vmatpush1.msra.mxu0 %v253
    %2064 = vmatprep.subr.mxu0 0.0
    %2065 = vmatpush1.msra.mxu0 %v252
    %2066 = vmatprep.subr.mxu0 0.0
    %2067 = vmatpush2.msra.mxu0 0.0
    %2068 = vmatprep.subr.mxu0 0.0
    %2069 = vmatpush2.msra.mxu0 0.0
    %2070 = vmatprep.subr.mxu0 0.0
    %2071 = vmatpush2.msra.mxu0 0.0
    %2072 = vmatprep.subr.mxu0 0.0
    %2073 = vmatpush2.msra.mxu0 0.0
    %2074 = vmatprep.subr.mxu0 0.0
    %2075 = vmatpush2.msra.mxu0 0.0
    %2076 = vmatprep.subr.mxu0 0.0
    %2077 = vmatpush2.msra.mxu0 0.0
    %2078 = vmatprep.subr.mxu0 0.0
    %2079 = vmatpush2.msra.mxu0 0.0
    %2080 = vmatprep.subr.mxu0 0.0
    %2081 = vmatpush2.msra.mxu0 0.0
    %2082 = vmatprep.subr.mxu0 0.0
    %2083 = vmatpush2.msra.mxu0 0.0
    %2084 = vmatprep.subr.mxu0 0.0
    %2085 = vmatpush2.msra.mxu0 0.0
    %2086 = vmatprep.subr.mxu0 0.0
    %2087 = vmatpush2.msra.mxu0 0.0
    %2088 = vmatprep.subr.mxu0 0.0
    %2089 = vmatpush2.msra.mxu0 0.0
    %2090 = vmatprep.subr.mxu0 0.0
    %2091 = vmatpush2.msra.mxu0 0.0
    %2092 = vmatprep.subr.mxu0 0.0
    %2093 = vmatpush2.msra.mxu0 0.0
    %2094 = vmatprep.subr.mxu0 0.0
    %2095 = vmatpush2.msra.mxu0 0.0
    %2096 = vmatprep.subr.mxu0 0.0
    %2097 = vmatpush2.msra.mxu0 0.0
    %2098 = vmatprep.mubr.f32.mxu0 0.0
    %2099 = vmatmul.mubr.f32.gmra.mxu0 %v2032
    %v2100 = vpop.f32.mrf.mxu0
    %v2101 = vadd.f32 0.0, %v2100
    %v2102 = vpop.f32.mrf.mxu0
    %2103 = vdwg.mxu0
    %v2104 = vadd.f32 %v240, %v2101
    %v2105 = vmul.f32 %v2104, 0.5
    %v2106 = vtanh.pop %v2105
    %v2107 = vadd.f32 %v2106, 1.0
    %v2108 = vmul.f32 %v2107, 0.5
    %v2109 = vmul.f32 %v2108, 2.0
    %v2110 = vsub.f32 %v2109, 1.0
    %2112 = vrot.lane.b32.xlu0 %v1918, 32
    %v2113 = vpop.permute.xlu0 %2112
    %v2115 = vmul.f32 %v2108, %v2113
    %2117 = vrot.lane.b32.xlu0 %v2110, 64
    %v2118 = vpop.permute.xlu0 %2117
    %v2120 = vmul.f32 %v2108, %v2118
    %2122 = vrot.lane.b32.xlu0 %v2120, 32
    %v2123 = vpop.permute.xlu0 %2122
    %v2125 = vadd.f32 %v2115, %v2123
    %v2126 = vtanh.pop %v2125
    %2128 = vrot.lane.b32.xlu0 %v2126, 64
    %v2129 = vpop.permute.xlu0 %2128
    %v2131 = vmul.f32 %v2108, %v2129
    %v2132 = vsel %vm360, %v2131, 0.0
    %v2134 = vrot.slane %v605, 6
    %2135 = vrot.lane.b32.xlu0 %v2134, 96
    %v2136 = vpop.permute.xlu0 %2135
    %v2139 = vrot.slane %v853, 4
    %2140 = vrot.lane.b32.xlu0 %v2139, 96
    %v2141 = vpop.permute.xlu0 %2140
    %v2144 = vrot.slane %v1101, 2
    %2145 = vrot.lane.b32.xlu0 %v2144, 96
    %v2146 = vpop.permute.xlu0 %2145
    %v2149 = vrot.slane %v1565, 6
    %2150 = vrot.lane.b32.xlu0 %v2149, 96
    %v2151 = vpop.permute.xlu0 %2150
    %v2154 = vrot.slane %v1801, 4
    %2155 = vrot.lane.b32.xlu0 %v2154, 96
    %v2156 = vpop.permute.xlu0 %2155
    %v2159 = vrot.slane %v2030, 2
    %2160 = vrot.lane.b32.xlu0 %v2159, 96
    %v2161 = vpop.permute.xlu0 %2160
    %vm2163 = vcmask 1041408
    %v2164 = vsel %vm2163, %v361, %v2136
    %vm2165 = vcmask 1043456
    %v2166 = vsel %vm2165, %v2164, %v2141
    %vm2167 = vcmask 1045504
    %v2168 = vsel %vm2167, %v2166, %v2146
    %v2169 = vsel %vm2163, %v1321, %v2151
    %v2170 = vsel %vm2165, %v2169, %v2156
    %v2171 = vsel %vm2167, %v2170, %v2161
    %v2173 = vrot.slane %v1919, 6
    %2174 = vrot.lane.b32.xlu0 %v2173, 96
    %v2175 = vpop.permute.xlu0 %2174
    %v2178 = vrot.slane %v1683, 4
    %2179 = vrot.lane.b32.xlu0 %v2178, 96
    %v2180 = vpop.permute.xlu0 %2179
    %v2183 = vrot.slane %v1443, 2
    %2184 = vrot.lane.b32.xlu0 %v2183, 96
    %v2185 = vpop.permute.xlu0 %2184
    %v2188 = vrot.slane %v977, 6
    %2189 = vrot.lane.b32.xlu0 %v2188, 96
    %v2190 = vpop.permute.xlu0 %2189
    %v2193 = vrot.slane %v729, 4
    %2194 = vrot.lane.b32.xlu0 %v2193, 96
    %v2195 = vpop.permute.xlu0 %2194
    %v2197 = vrot.slane %v471, 2
    %2198 = vrot.lane.b32.xlu0 %v2197, 96
    %v2199 = vpop.permute.xlu0 %2198
    %v2201 = vsel %vm2163, %v2132, %v2175
    %v2202 = vsel %vm2165, %v2201, %v2180
    %v2203 = vsel %vm2167, %v2202, %v2185
    %v2204 = vsel %vm2163, %v1214, %v2190
    %v2205 = vsel %vm2165, %v2204, %v2195
    %v2206 = vsel %vm2167, %v2205, %v2199
    %v2207 = vld [vmem:[#allocation10] sm:$0xff]
    %v2208 = vld [vmem:[#allocation10 + $0x8] sm:$0xff]
    %v2209 = vld [vmem:[#allocation10 + $0x10] sm:$0xff]
    %v2210 = vld [vmem:[#allocation10 + $0x18] sm:$0xff]
    %v2211 = vld [vmem:[#allocation11] sm:$0xff]
    %v2212 = vld [vmem:[#allocation11 + $0x8] sm:$0xff]
    %v2213 = vld [vmem:[#allocation11 + $0x10] sm:$0xff]
    %v2214 = vld [vmem:[#allocation11 + $0x18] sm:$0xff]
    %2217 = vrot.lane.b32.xlu0 %v2203, 32
    %v2218 = vpop.permute.xlu0 %2217
    %2219 = vrot.lane.b32.xlu0 %v2206, 32
    %v2220 = vpop.permute.xlu0 %2219
    %v2221 = vsel %vm257, %v2218, 0
    %v2223 = vsel %vm257, %v2220, 0
    %2225 = vmatprep.subr.mxu0 0.0
    %2226 = vmatpush1.msra.mxu0 0.0
    %2227 = vmatprep.subr.mxu0 0.0
    %2228 = vmatpush1.msra.mxu0 0.0
    %2229 = vmatprep.subr.mxu0 0.0
    %2230 = vmatpush1.msra.mxu0 0.0
    %2231 = vmatprep.subr.mxu0 0.0
    %2232 = vmatpush1.msra.mxu0 0.0
    %2233 = vmatprep.subr.mxu0 0.0
    %2234 = vmatpush1.msra.mxu0 0.0
    %2235 = vmatprep.subr.mxu0 0.0
    %2236 = vmatpush1.msra.mxu0 0.0
    %2237 = vmatprep.subr.mxu0 0.0
    %2238 = vmatpush1.msra.mxu0 0.0
    %2239 = vmatprep.subr.mxu0 0.0
    %2240 = vmatpush1.msra.mxu0 0.0
    %2241 = vmatprep.subr.mxu0 0.0
    %2242 = vmatpush1.msra.mxu0 0.0
    %2243 = vmatprep.subr.mxu0 0.0
    %2244 = vmatpush1.msra.mxu0 0.0
    %2245 = vmatprep.subr.mxu0 0.0
    %2246 = vmatpush1.msra.mxu0 0.0
    %2247 = vmatprep.subr.mxu0 0.0
    %2248 = vmatpush1.msra.mxu0 0.0
    %2249 = vmatprep.subr.mxu0 0.0
    %2250 = vmatpush1.msra.mxu0 %v2214
    %2251 = vmatprep.subr.mxu0 0.0
    %2252 = vmatpush1.msra.mxu0 %v2213
    %2253 = vmatprep.subr.mxu0 0.0
    %2254 = vmatpush1.msra.mxu0 %v2212
    %2255 = vmatprep.subr.mxu0 0.0
    %2256 = vmatpush1.msra.mxu0 %v2211
    %2257 = vmatprep.subr.mxu0 0.0
    %2258 = vmatpush2.msra.mxu0 0.0
    %2259 = vmatprep.subr.mxu0 0.0
    %2260 = vmatpush2.msra.mxu0 0.0
    %2261 = vmatprep.subr.mxu0 0.0
    %2262 = vmatpush2.msra.mxu0 0.0
    %2263 = vmatprep.subr.mxu0 0.0
    %2264 = vmatpush2.msra.mxu0 0.0
    %2265 = vmatprep.subr.mxu0 0.0
    %2266 = vmatpush2.msra.mxu0 0.0
    %2267 = vmatprep.subr.mxu0 0.0
    %2268 = vmatpush2.msra.mxu0 0.0
    %2269 = vmatprep.subr.mxu0 0.0
    %2270 = vmatpush2.msra.mxu0 0.0
    %2271 = vmatprep.subr.mxu0 0.0
    %2272 = vmatpush2.msra.mxu0 0.0
    %2273 = vmatprep.subr.mxu0 0.0
    %2274 = vmatpush2.msra.mxu0 0.0
    %2275 = vmatprep.subr.mxu0 0.0
    %2276 = vmatpush2.msra.mxu0 0.0
    %2277 = vmatprep.subr.mxu0 0.0
    %2278 = vmatpush2.msra.mxu0 0.0
    %2279 = vmatprep.subr.mxu0 0.0
    %2280 = vmatpush2.msra.mxu0 0.0
    %2281 = vmatprep.subr.mxu0 0.0
    %2282 = vmatpush2.msra.mxu0 0.0
    %2283 = vmatprep.subr.mxu0 0.0
    %2284 = vmatpush2.msra.mxu0 0.0
    %2285 = vmatprep.subr.mxu0 0.0
    %2286 = vmatpush2.msra.mxu0 0.0
    %2287 = vmatprep.subr.mxu0 0.0
    %2288 = vmatpush2.msra.mxu0 0.0
    %2289 = vmatprep.mubr.f32.mxu0 0.0
    %2290 = vmatmul.mubr.f32.gmra.mxu0 %v2221
    %v2291 = vpop.f32.mrf.mxu0
    %v2292 = vadd.f32 0.0, %v2291
    %v2293 = vpop.f32.mrf.mxu0
    %2294 = vmatprep.mubr.f32.mxu0 0.0
    %2295 = vmatmul.mubr.f32.gmra.mxu0 %v2223
    %v2296 = vpop.f32.mrf.mxu0
    %v2297 = vadd.f32 0.0, %v2296
    %v2298 = vpop.f32.mrf.mxu0
    %2299 = vdwg.mxu0
    %2302 = vrot.lane.b32.xlu0 %v2168, 32
    %v2303 = vpop.permute.xlu0 %2302
    %2304 = vrot.lane.b32.xlu0 %v2171, 32
    %v2305 = vpop.permute.xlu0 %2304
    %v2306 = vsel %vm257, %v2303, 0
    %v2308 = vsel %vm257, %v2305, 0
    %2310 = vmatprep.subr.mxu0 0.0
    %2311 = vmatpush1.msra.mxu0 0.0
    %2312 = vmatprep.subr.mxu0 0.0
    %2313 = vmatpush1.msra.mxu0 0.0
    %2314 = vmatprep.subr.mxu0 0.0
    %2315 = vmatpush1.msra.mxu0 0.0
    %2316 = vmatprep.subr.mxu0 0.0
    %2317 = vmatpush1.msra.mxu0 0.0
    %2318 = vmatprep.subr.mxu0 0.0
    %2319 = vmatpush1.msra.mxu0 0.0
    %2320 = vmatprep.subr.mxu0 0.0
    %2321 = vmatpush1.msra.mxu0 0.0
    %2322 = vmatprep.subr.mxu0 0.0
    %2323 = vmatpush1.msra.mxu0 0.0
    %2324 = vmatprep.subr.mxu0 0.0
    %2325 = vmatpush1.msra.mxu0 0.0
    %2326 = vmatprep.subr.mxu0 0.0
    %2327 = vmatpush1.msra.mxu0 0.0
    %2328 = vmatprep.subr.mxu0 0.0
    %2329 = vmatpush1.msra.mxu0 0.0
    %2330 = vmatprep.subr.mxu0 0.0
    %2331 = vmatpush1.msra.mxu0 0.0
    %2332 = vmatprep.subr.mxu0 0.0
    %2333 = vmatpush1.msra.mxu0 0.0
    %2334 = vmatprep.subr.mxu0 0.0
    %2335 = vmatpush1.msra.mxu0 %v2210
    %2336 = vmatprep.subr.mxu0 0.0
    %2337 = vmatpush1.msra.mxu0 %v2209
    %2338 = vmatprep.subr.mxu0 0.0
    %2339 = vmatpush1.msra.mxu0 %v2208
    %2340 = vmatprep.subr.mxu0 0.0
    %2341 = vmatpush1.msra.mxu0 %v2207
    %2342 = vmatprep.subr.mxu0 0.0
    %2343 = vmatpush2.msra.mxu0 0.0
    %2344 = vmatprep.subr.mxu0 0.0
    %2345 = vmatpush2.msra.mxu0 0.0
    %2346 = vmatprep.subr.mxu0 0.0
    %2347 = vmatpush2.msra.mxu0 0.0
    %2348 = vmatprep.subr.mxu0 0.0
    %2349 = vmatpush2.msra.mxu0 0.0
    %2350 = vmatprep.subr.mxu0 0.0
    %2351 = vmatpush2.msra.mxu0 0.0
    %2352 = vmatprep.subr.mxu0 0.0
    %2353 = vmatpush2.msra.mxu0 0.0
    %2354 = vmatprep.subr.mxu0 0.0
    %2355 = vmatpush2.msra.mxu0 0.0
    %2356 = vmatprep.subr.mxu0 0.0
    %2357 = vmatpush2.msra.mxu0 0.0
    %2358 = vmatprep.subr.mxu0 0.0
    %2359 = vmatpush2.msra.mxu0 0.0
    %2360 = vmatprep.subr.mxu0 0.0
    %2361 = vmatpush2.msra.mxu0 0.0
    %2362 = vmatprep.subr.mxu0 0.0
    %2363 = vmatpush2.msra.mxu0 0.0
    %2364 = vmatprep.subr.mxu0 0.0
    %2365 = vmatpush2.msra.mxu0 0.0
    %2366 = vmatprep.subr.mxu0 0.0
    %2367 = vmatpush2.msra.mxu0 0.0
    %2368 = vmatprep.subr.mxu0 0.0
    %2369 = vmatpush2.msra.mxu0 0.0
    %2370 = vmatprep.subr.mxu0 0.0
    %2371 = vmatpush2.msra.mxu0 0.0
    %2372 = vmatprep.subr.mxu0 0.0
    %2373 = vmatpush2.msra.mxu0 0.0
    %2374 = vmatprep.mubr.f32.mxu0 0.0
    %2375 = vmatmul.mubr.f32.gmra.mxu0 %v2306
    %v2376 = vpop.f32.mrf.mxu0
    %v2377 = vadd.f32 %v2292, %v2376
    %v2378 = vpop.f32.mrf.mxu0
    %2379 = vmatprep.mubr.f32.mxu0 0.0
    %2380 = vmatmul.mubr.f32.gmra.mxu0 %v2308
    %v2381 = vpop.f32.mrf.mxu0
    %v2382 = vadd.f32 %v2297, %v2381
    %v2383 = vpop.f32.mrf.mxu0
    %2384 = vdwg.mxu0
    %v2385 = vld [vmem:[%s8] sm:$0x1]
    %v2387 = vlaneseq
    %v2388 = vshrl.u32 %v2387, 7
    %v2389 = vsub.s32 0, %v2388
    %v2390 = vrot.slane %v2385, %v2389
    %v2392 = vadd.f32 %v2377, %v2390
    %v2393 = vadd.f32 %v2382, %v2390
    %vm2394 = vcmp.gt.f32.partialorder %v2392, 0.0
    %vm2395 = vcmp.gt.f32.partialorder %v2393, 0.0
    %v2396 = vmin.f32 %v2392, 0.0
    %v2397 = vmin.f32 %v2393, 0.0
    %v2398 = vmul.f32 %v2396, 1.442695
    %v2399 = vpow.pop %v2398
    %v2400 = vmul.f32 %v2397, 1.442695
    %v2401 = vpow.pop %v2400
    %v2402 = vsub.f32 %v2399, 1.0
    %v2403 = vsub.f32 %v2401, 1.0
    %v2404 = vsel %vm2394, %v2392, %v2402
    %v2405 = vsel %vm2395, %v2393, %v2403
    %v2406 = vld [vmem:[#allocation13] sm:$0xff]
    %v2407 = vld [vmem:[#allocation13 + $0x8] sm:$0xff]
    %v2408 = vld [vmem:[#allocation13 + $0x10] sm:$0xff]
    %v2409 = vld [vmem:[#allocation13 + $0x18] sm:$0xff]
    %v2410 = vld [vmem:[%s10] sm:$0x1]
    %v2412 = vlaneseq
    %v2413 = vshrl.u32 %v2412, 7
    %v2414 = vsub.s32 0, %v2413
    %v2415 = vrot.slane %v2410, %v2414
    %v2418 = vsel %vm257, %v2404, 0
    %v2421 = vsel %vm257, %v2405, 0
    %2423 = vmatprep.subr.mxu0 0.0
    %2424 = vmatpush1.msra.mxu0 0.0
    %2425 = vmatprep.subr.mxu0 0.0
    %2426 = vmatpush1.msra.mxu0 0.0
    %2427 = vmatprep.subr.mxu0 0.0
    %2428 = vmatpush1.msra.mxu0 0.0
    %2429 = vmatprep.subr.mxu0 0.0
    %2430 = vmatpush1.msra.mxu0 0.0
    %2431 = vmatprep.subr.mxu0 0.0
    %2432 = vmatpush1.msra.mxu0 0.0
    %2433 = vmatprep.subr.mxu0 0.0
    %2434 = vmatpush1.msra.mxu0 0.0
    %2435 = vmatprep.subr.mxu0 0.0
    %2436 = vmatpush1.msra.mxu0 0.0
    %2437 = vmatprep.subr.mxu0 0.0
    %2438 = vmatpush1.msra.mxu0 0.0
    %2439 = vmatprep.subr.mxu0 0.0
    %2440 = vmatpush1.msra.mxu0 0.0
    %2441 = vmatprep.subr.mxu0 0.0
    %2442 = vmatpush1.msra.mxu0 0.0
    %2443 = vmatprep.subr.mxu0 0.0
    %2444 = vmatpush1.msra.mxu0 0.0
    %2445 = vmatprep.subr.mxu0 0.0
    %2446 = vmatpush1.msra.mxu0 0.0
    %2447 = vmatprep.subr.mxu0 0.0
    %2448 = vmatpush1.msra.mxu0 %v2409
    %2449 = vmatprep.subr.mxu0 0.0
    %2450 = vmatpush1.msra.mxu0 %v2408
    %2451 = vmatprep.subr.mxu0 0.0
    %2452 = vmatpush1.msra.mxu0 %v2407
    %2453 = vmatprep.subr.mxu0 0.0
    %2454 = vmatpush1.msra.mxu0 %v2406
    %2455 = vmatprep.subr.mxu0 0.0
    %2456 = vmatpush2.msra.mxu0 0.0
    %2457 = vmatprep.subr.mxu0 0.0
    %2458 = vmatpush2.msra.mxu0 0.0
    %2459 = vmatprep.subr.mxu0 0.0
    %2460 = vmatpush2.msra.mxu0 0.0
    %2461 = vmatprep.subr.mxu0 0.0
    %2462 = vmatpush2.msra.mxu0 0.0
    %2463 = vmatprep.subr.mxu0 0.0
    %2464 = vmatpush2.msra.mxu0 0.0
    %2465 = vmatprep.subr.mxu0 0.0
    %2466 = vmatpush2.msra.mxu0 0.0
    %2467 = vmatprep.subr.mxu0 0.0
    %2468 = vmatpush2.msra.mxu0 0.0
    %2469 = vmatprep.subr.mxu0 0.0
    %2470 = vmatpush2.msra.mxu0 0.0
    %2471 = vmatprep.subr.mxu0 0.0
    %2472 = vmatpush2.msra.mxu0 0.0
    %2473 = vmatprep.subr.mxu0 0.0
    %2474 = vmatpush2.msra.mxu0 0.0
    %2475 = vmatprep.subr.mxu0 0.0
    %2476 = vmatpush2.msra.mxu0 0.0
    %2477 = vmatprep.subr.mxu0 0.0
    %2478 = vmatpush2.msra.mxu0 0.0
    %2479 = vmatprep.subr.mxu0 0.0
    %2480 = vmatpush2.msra.mxu0 0.0
    %2481 = vmatprep.subr.mxu0 0.0
    %2482 = vmatpush2.msra.mxu0 0.0
    %2483 = vmatprep.subr.mxu0 0.0
    %2484 = vmatpush2.msra.mxu0 0.0
    %2485 = vmatprep.subr.mxu0 0.0
    %2486 = vmatpush2.msra.mxu0 0.0
    %2487 = vmatprep.mubr.f32.mxu0 0.0
    %2488 = vmatmul.mubr.f32.gmra.mxu0 %v2418
    %v2489 = vpop.f32.mrf.mxu0
    %v2490 = vadd.f32 %v2415, %v2489
    %v2491 = vpop.f32.mrf.mxu0
    %2492 = vmatprep.mubr.f32.mxu0 0.0
    %2493 = vmatmul.mubr.f32.gmra.mxu0 %v2421
    %v2494 = vpop.f32.mrf.mxu0
    %v2495 = vadd.f32 %v2415, %v2494
    %v2496 = vpop.f32.mrf.mxu0
    %2497 = vdwg.mxu0
    %2498 = vst [vmem:[#allocation14] sm:$0xff] %v2490
    %2499 = vst [vmem:[#allocation14 + $0x8] sm:$0xff] %v2495
    // Predicated region
    $region74: #{tpu_custom_call.1} parent=1 // pred_check
      _
    $region75: #{tpu_custom_call.1} parent=1 // pred_check_branch
      %2501 = sbr.rel (0) target = $region77
    $region76: #{tpu_custom_call.1} parent=1 // pred_region
      %s2503 = ssub.s32 256, 256
      %2504 = vsyncadd [#allocation4], %s2503
      %s2505 = sshll.u32 [#allocation14], 4
      %s2506 = int_to_ptr.vmem [resolvable:$true] %s2505
      %2511 = dma.vmem_to_hbm [thread:$0]  %s2506, 256, %s11, [#allocation4], 128, 128, 8
    $region77: #{tpu_custom_call.1} parent=1 // pred_fallthru
      _
    // Predicated region
    $region78: #{tpu_custom_call.1} parent=1 // pred_check
      _
    $region79: #{tpu_custom_call.1} parent=1 // pred_check_branch
      %2513 = sbr.rel (0) target = $region81
    $region80: #{tpu_custom_call.1} parent=1 // pred_region
      %2514 = dma.done [#allocation4], 256
    $region81: #{tpu_custom_call.1} parent=1 // pred_fallthru
      _
    %2515 = vsyncpa [#allocation3], 1
    %2516 = vsyncpa [#allocation6], 1
    %2517 = vsyncpa [#allocation9], 1
    %2518 = vsyncpa [#allocation12], 1
    %2519 = vsyncpa [#allocation4], 1

</llo_original>
